<compile_context>
chip_gen: v7x
topology: tpu7x:2x2x1
jax: 0.10.0
libtpu: 0.0.40
codegen_flags: <defaults>
</compile_context>

<pallas_src>
import functools

import jax
import jax.numpy as jnp
from jax.experimental import pallas as pl
from jax.experimental.pallas import tpu as pltpu

H1 = 800   # layer_1 / layer_4 width
H2 = 600   # layer_2 / layer_5 width


def _critic_kernel(s_ref, a_ref, w1_ref, b1_ref, w2s_ref, misc_ref, q_ref,
                   *, action_dim):
    """One grid step == one Q head (head axis squeezed out of weight refs).

    misc slab rows (f32, width H2):
      [0 .. action_dim-1] : W2a rows   (action_dim, 600)
      [action_dim]        : b2a        (600,)
      [action_dim + 1]    : W3 row     (600,)
      [action_dim + 2]    : b3 at col0
    """
    s = s_ref[...]                       # (B, state_dim) f32
    a = a_ref[...]                       # (B, action_dim) f32
    misc = misc_ref[...]                 # (rows, H2) f32  (one vld, sliced below)

    # ---- layer 1: relu(s @ W1 + b1) ------------------------------- (B, 800)
    s1 = jnp.dot(s.astype(jnp.bfloat16), w1_ref[...],
                 preferred_element_type=jnp.float32)
    s1 = jnp.maximum(s1 + b1_ref[...], 0.0)

    # ---- layer 2: relu(s1 @ W2s + a @ W2a + b2a) ------------------ (B, 600)
    # big K=800 matmul on the MXU (bf16 in / f32 acc)
    acc = jnp.dot(s1.astype(jnp.bfloat16), w2s_ref[...],
                  preferred_element_type=jnp.float32)
    # fold bias, then tiny K=action_dim matmul as VPU broadcast multiply-adds
    acc = acc + misc[action_dim:action_dim + 1, :]
    for k in range(action_dim):                      # static, small
        acc = acc + a[:, k:k + 1] * misc[k:k + 1, :]
    h = jnp.maximum(acc, 0.0)

    # ---- layer 3 (N=1): lane reduction instead of MXU matmul ------ (B, 1)
    w3 = misc[action_dim + 1:action_dim + 2, :]
    b3 = misc[action_dim + 2:action_dim + 3, 0:1]
    q_ref[...] = jnp.sum(h * w3, axis=-1, keepdims=True) + b3


def _head_axis_semantics():
    """v7x (2 TC/chip): shard the two heads across cores; else plain grid."""
    try:
        kind = jax.devices()[0].device_kind.lower()
    except Exception:
        kind = ""
    if "v7" in kind or "tpu7" in kind:
        return (pltpu.CORE_PARALLEL,)
    return ("parallel",)


def critic_forward(s, a, params):
    """Twin-Q critic forward.  `params` = (w1, b1, w2s, misc), head-stacked.

    Returns (q1, q2), each (B, 1) float32.
    """
    w1, b1, w2s, misc = params
    B, state_dim = s.shape
    action_dim = a.shape[1]
    mrows = misc.shape[1]

    grid_spec = pltpu.PrefetchScalarGridSpec(
        num_scalar_prefetch=0,
        grid=(2,),                                         # head axis
        in_specs=[
            pl.BlockSpec((B, state_dim),        lambda h: (0, 0)),
            pl.BlockSpec((B, action_dim),       lambda h: (0, 0)),
            pl.BlockSpec((None, state_dim, H1), lambda h: (h, 0, 0)),
            pl.BlockSpec((None, 1, H1),         lambda h: (h, 0, 0)),
            pl.BlockSpec((None, H1, H2),        lambda h: (h, 0, 0)),
            pl.BlockSpec((None, mrows, H2),     lambda h: (h, 0, 0)),
        ],
        out_specs=pl.BlockSpec((None, B, 1), lambda h: (h, 0, 0)),
    )

    q = pl.pallas_call(
        functools.partial(_critic_kernel, action_dim=action_dim),
        out_shape=jax.ShapeDtypeStruct((2, B, 1), jnp.float32),
        grid_spec=grid_spec,
        compiler_params=pltpu.CompilerParams(
            dimension_semantics=_head_axis_semantics()),
    )(s, a, w1, b1, w2s, misc)

    return q[0], q[1]


def _init_linear(key, in_features, out_features):
    """PyTorch nn.Linear init; returns (W transposed (in,out), bias row)."""
    k_w, k_b = jax.random.split(key)
    bound = 1.0 / (in_features ** 0.5)
    w = jax.random.uniform(k_w, (in_features, out_features), jnp.float32,
                           minval=-bound, maxval=bound)
    b = jax.random.uniform(k_b, (1, out_features), jnp.float32,
                           minval=-bound, maxval=bound)
    return w, b


def make_critic_params(key, state_dim, action_dim):
    """Head-stacked params: w1/b1/w2s (leading dim 2) + packed misc slab."""
    keys = jax.random.split(key, 8)
    mrows = ((action_dim + 3 + 7) // 8) * 8          # sublane-friendly row count
    w1_l, b1_l, w2s_l, misc_l = [], [], [], []
    for h in range(2):
        w1, b1 = _init_linear(keys[4 * h + 0], state_dim, H1)
        w2s, _unused = _init_linear(keys[4 * h + 1], H1, H2)   # bias unused (spec)
        w2a, b2a = _init_linear(keys[4 * h + 2], action_dim, H2)
        w3, b3 = _init_linear(keys[4 * h + 3], H2, 1)
        misc = jnp.zeros((mrows, H2), jnp.float32)
        misc = misc.at[:action_dim, :].set(w2a)
        misc = misc.at[action_dim, :].set(b2a[0])
        misc = misc.at[action_dim + 1, :].set(w3[:, 0])
        misc = misc.at[action_dim + 2, 0].set(b3[0, 0])
        w1_l.append(w1); b1_l.append(b1); w2s_l.append(w2s); misc_l.append(misc)

    w1 = jnp.stack(w1_l).astype(jnp.bfloat16)        # (2, state_dim, 800) bf16
    b1 = jnp.stack(b1_l)                             # (2, 1, 800) f32
    w2s = jnp.stack(w2s_l).astype(jnp.bfloat16)      # (2, 800, 600) bf16
    misc = jnp.stack(misc_l)                         # (2, mrows, 600) f32
    return (w1, b1, w2s, misc)


def _head_ref(s, a, params, head):
    """Pure-JAX reference mirroring the kernel's numerics (bf16 weights)."""
    w1, b1, w2s, misc = (p[head] for p in params)
    A = a.shape[1]
    s1 = jax.nn.relu(
        jnp.dot(s.astype(jnp.bfloat16), w1,
                preferred_element_type=jnp.float32) + b1)
    acc = jnp.dot(s1.astype(jnp.bfloat16), w2s,
                  preferred_element_type=jnp.float32)
    acc = acc + misc[A:A + 1, :]
    for k in range(A):
        acc = acc + a[:, k:k + 1] * misc[k:k + 1, :]
    h = jax.nn.relu(acc)
    return jnp.sum(h * misc[A + 1:A + 2, :], axis=-1, keepdims=True) + misc[A + 2, 0]


if __name__ == "__main__":
    # TD3 robot-nav critic shapes; B=128 is a realistic minibatch that
    # amortizes the (batch-independent) weight streaming.
    B, STATE_DIM, ACTION_DIM = 128, 24, 2

    key = jax.random.PRNGKey(0)
    k_s, k_a, k_p = jax.random.split(key, 3)
    s = jax.random.normal(k_s, (B, STATE_DIM), jnp.float32)
    a = jax.random.uniform(k_a, (B, ACTION_DIM), jnp.float32,
                           minval=-1.0, maxval=1.0)

    params = make_critic_params(k_p, STATE_DIM, ACTION_DIM)

    q1, q2 = jax.jit(critic_forward)(s, a, params)
    q1 = jax.block_until_ready(q1)
    q2 = jax.block_until_ready(q2)

    # Verify against a pure-JAX reference with matching (bf16-weight) numerics.
    q1_ref = _head_ref(s, a, params, 0)
    q2_ref = _head_ref(s, a, params, 1)
    assert q1.shape == (B, 1) and q2.shape == (B, 1)
    assert jnp.allclose(q1, q1_ref, atol=2e-3, rtol=2e-3)
    assert jnp.allclose(q2, q2_ref, atol=2e-3, rtol=2e-3)

    print("KERNEL_OK")
</pallas_src>

<mosaic_0001>
module attributes {stable_mosaic.version = 11 : i64} {
  func.func @_critic_kernel(%arg0: i32, %arg1: memref<128x24xf32, #tpu.memory_space<vmem>>, %arg2: memref<128x2xf32, #tpu.memory_space<vmem>>, %arg3: memref<1x24x800xbf16, #tpu.memory_space<vmem>>, %arg4: memref<1x1x800xf32, #tpu.memory_space<vmem>>, %arg5: memref<1x800x600xbf16, #tpu.memory_space<vmem>>, %arg6: memref<1x8x600xf32, #tpu.memory_space<vmem>>, %arg7: memref<1x128x1xf32, #tpu.memory_space<vmem>>) attributes {dimension_semantics = [#tpu.dimension_semantics<parallel>], iteration_bounds = array<i64: 2>, scalar_prefetch = 0 : i64, scratch_operands = 0 : i64, tpu.core_type = #tpu.core_type<tc>, window_params = [{pipeline_mode = #tpu.pipeline_mode<synchronous>, transform_indices = @transform_0, window_bounds = array<i64: 128, 24>}, {pipeline_mode = #tpu.pipeline_mode<synchronous>, transform_indices = @transform_1, window_bounds = array<i64: 128, 2>}, {transform_indices = @transform_2, window_bounds = array<i64: 1, 24, 800>}, {transform_indices = @transform_3, window_bounds = array<i64: 1, 1, 800>}, {transform_indices = @transform_4, window_bounds = array<i64: 1, 800, 600>}, {transform_indices = @transform_5, window_bounds = array<i64: 1, 8, 600>}, {transform_indices = @transform_6, window_bounds = array<i64: 1, 128, 1>}]} {
    %c0 = arith.constant 0 : index
    %c0_0 = arith.constant 0 : index
    %0 = vector.load %arg1[%c0, %c0_0] : memref<128x24xf32, #tpu.memory_space<vmem>>, vector<128x24xf32>
    %c0_1 = arith.constant 0 : index
    %c0_2 = arith.constant 0 : index
    %1 = vector.load %arg2[%c0_1, %c0_2] : memref<128x2xf32, #tpu.memory_space<vmem>>, vector<128x2xf32>
    %c0_3 = arith.constant 0 : index
    %c0_4 = arith.constant 0 : index
    %c0_5 = arith.constant 0 : index
    %2 = vector.load %arg6[%c0_3, %c0_4, %c0_5] : memref<1x8x600xf32, #tpu.memory_space<vmem>>, vector<1x8x600xf32>
    %3 = vector.shape_cast %2 : vector<1x8x600xf32> to vector<8x600xf32>
    %4 = arith.truncf %0 : vector<128x24xf32> to vector<128x24xbf16>
    %c0_6 = arith.constant 0 : index
    %c0_7 = arith.constant 0 : index
    %c0_8 = arith.constant 0 : index
    %5 = vector.load %arg3[%c0_6, %c0_7, %c0_8] : memref<1x24x800xbf16, #tpu.memory_space<vmem>>, vector<1x24x800xbf16>
    %6 = vector.shape_cast %5 : vector<1x24x800xbf16> to vector<24x800xbf16>
    %cst = arith.constant dense<0.000000e+00> : vector<128x800xf32>
    %7 = tpu.matmul %4, %6, %cst {dimension_numbers = #tpu.dot_dimension_numbers<[1], [0], [0], [1], [0, 0, 1, 1], [], []>} : vector<128x24xbf16>, vector<24x800xbf16>, vector<128x800xf32> -> vector<128x800xf32>
    %c0_9 = arith.constant 0 : index
    %c0_10 = arith.constant 0 : index
    %c0_11 = arith.constant 0 : index
    %8 = vector.load %arg4[%c0_9, %c0_10, %c0_11] : memref<1x1x800xf32, #tpu.memory_space<vmem>>, vector<1x1x800xf32>
    %9 = vector.shape_cast %8 : vector<1x1x800xf32> to vector<1x800xf32>
    %10 = vector.broadcast %9 : vector<1x800xf32> to vector<128x800xf32>
    %11 = arith.addf %7, %10 : vector<128x800xf32>
    %cst_12 = arith.constant 0.000000e+00 : f32
    %12 = vector.broadcast %cst_12 : f32 to vector<128x800xf32>
    %13 = arith.maximumf %11, %12 : vector<128x800xf32>
    %14 = arith.truncf %13 : vector<128x800xf32> to vector<128x800xbf16>
    %c0_13 = arith.constant 0 : index
    %c0_14 = arith.constant 0 : index
    %c0_15 = arith.constant 0 : index
    %15 = vector.load %arg5[%c0_13, %c0_14, %c0_15] : memref<1x800x600xbf16, #tpu.memory_space<vmem>>, vector<1x800x600xbf16>
    %16 = vector.shape_cast %15 : vector<1x800x600xbf16> to vector<800x600xbf16>
    %cst_16 = arith.constant dense<0.000000e+00> : vector<128x600xf32>
    %17 = tpu.matmul %14, %16, %cst_16 {dimension_numbers = #tpu.dot_dimension_numbers<[1], [0], [0], [1], [0, 0, 1, 1], [], []>} : vector<128x800xbf16>, vector<800x600xbf16>, vector<128x600xf32> -> vector<128x600xf32>
    %18 = vector.extract_strided_slice %3 {offsets = [2, 0], sizes = [1, 600], strides = [1, 1]} : vector<8x600xf32> to vector<1x600xf32>
    %19 = vector.broadcast %18 : vector<1x600xf32> to vector<128x600xf32>
    %20 = arith.addf %17, %19 : vector<128x600xf32>
    %21 = vector.extract_strided_slice %1 {offsets = [0, 0], sizes = [128, 1], strides = [1, 1]} : vector<128x2xf32> to vector<128x1xf32>
    %22 = vector.extract_strided_slice %3 {offsets = [0, 0], sizes = [1, 600], strides = [1, 1]} : vector<8x600xf32> to vector<1x600xf32>
    %23 = vector.broadcast %21 : vector<128x1xf32> to vector<128x600xf32>
    %24 = vector.broadcast %22 : vector<1x600xf32> to vector<128x600xf32>
    %25 = arith.mulf %23, %24 : vector<128x600xf32>
    %26 = arith.addf %20, %25 : vector<128x600xf32>
    %27 = vector.extract_strided_slice %1 {offsets = [0, 1], sizes = [128, 1], strides = [1, 1]} : vector<128x2xf32> to vector<128x1xf32>
    %28 = vector.extract_strided_slice %3 {offsets = [1, 0], sizes = [1, 600], strides = [1, 1]} : vector<8x600xf32> to vector<1x600xf32>
    %29 = vector.broadcast %27 : vector<128x1xf32> to vector<128x600xf32>
    %30 = vector.broadcast %28 : vector<1x600xf32> to vector<128x600xf32>
    %31 = arith.mulf %29, %30 : vector<128x600xf32>
    %32 = arith.addf %26, %31 : vector<128x600xf32>
    %cst_17 = arith.constant 0.000000e+00 : f32
    %33 = vector.broadcast %cst_17 : f32 to vector<128x600xf32>
    %34 = arith.maximumf %32, %33 : vector<128x600xf32>
    %35 = vector.extract_strided_slice %3 {offsets = [3, 0], sizes = [1, 600], strides = [1, 1]} : vector<8x600xf32> to vector<1x600xf32>
    %36 = vector.extract_strided_slice %3 {offsets = [4, 0], sizes = [1, 1], strides = [1, 1]} : vector<8x600xf32> to vector<1x1xf32>
    %37 = vector.broadcast %35 : vector<1x600xf32> to vector<128x600xf32>
    %38 = arith.mulf %34, %37 : vector<128x600xf32>
    %cst_18 = arith.constant dense<0.000000e+00> : vector<128xf32>
    %39 = vector.multi_reduction <add>, %38, %cst_18 [1] : vector<128x600xf32> to vector<128xf32>
    %40 = vector.shape_cast %39 : vector<128xf32> to vector<128x1xf32>
    %41 = vector.broadcast %36 : vector<1x1xf32> to vector<128x1xf32>
    %42 = arith.addf %40, %41 : vector<128x1xf32>
    %c0_19 = arith.constant 0 : index
    %c0_20 = arith.constant 0 : index
    %c0_21 = arith.constant 0 : index
    %43 = vector.load %arg7[%c0_19, %c0_20, %c0_21] : memref<1x128x1xf32, #tpu.memory_space<vmem>>, vector<1x128x1xf32>
    %44 = vector.shape_cast %43 : vector<1x128x1xf32> to vector<128x1xf32>
    %45 = vector.shape_cast %42 : vector<128x1xf32> to vector<1x128x1xf32>
    tpu.vector_store %arg7[%c0_19, %c0_20, %c0_21], %45 {strides = array<i32>} : memref<1x128x1xf32, #tpu.memory_space<vmem>>, vector<1x128x1xf32>,
    return
  }
  func.func @transform_0(%arg0: i32) -> (i32, i32) {
    %c0_i32 = arith.constant 0 : i32
    %c0_i32_0 = arith.constant 0 : i32
    %c0_i32_1 = arith.constant 0 : i32
    return %c0_i32, %c0_i32_0 : i32, i32
  }
  func.func @transform_1(%arg0: i32) -> (i32, i32) {
    %c0_i32 = arith.constant 0 : i32
    %c0_i32_0 = arith.constant 0 : i32
    %c0_i32_1 = arith.constant 0 : i32
    return %c0_i32, %c0_i32_0 : i32, i32
  }
  func.func @transform_2(%arg0: i32) -> (i32, i32, i32) {
    %c0_i32 = arith.constant 0 : i32
    %c0_i32_0 = arith.constant 0 : i32
    %c0_i32_1 = arith.constant 0 : i32
    return %arg0, %c0_i32, %c0_i32_0 : i32, i32, i32
  }
  func.func @transform_3(%arg0: i32) -> (i32, i32, i32) {
    %c0_i32 = arith.constant 0 : i32
    %c0_i32_0 = arith.constant 0 : i32
    %c0_i32_1 = arith.constant 0 : i32
    return %arg0, %c0_i32, %c0_i32_0 : i32, i32, i32
  }
  func.func @transform_4(%arg0: i32) -> (i32, i32, i32) {
    %c0_i32 = arith.constant 0 : i32
    %c0_i32_0 = arith.constant 0 : i32
    %c0_i32_1 = arith.constant 0 : i32
    return %arg0, %c0_i32, %c0_i32_0 : i32, i32, i32
  }
  func.func @transform_5(%arg0: i32) -> (i32, i32, i32) {
    %c0_i32 = arith.constant 0 : i32
    %c0_i32_0 = arith.constant 0 : i32
    %c0_i32_1 = arith.constant 0 : i32
    return %arg0, %c0_i32, %c0_i32_0 : i32, i32, i32
  }
  func.func @transform_6(%arg0: i32) -> (i32, i32, i32) {
    %c0_i32 = arith.constant 0 : i32
    %c0_i32_0 = arith.constant 0 : i32
    %c0_i32_1 = arith.constant 0 : i32
    return %arg0, %c0_i32, %c0_i32_0 : i32, i32, i32
  }
}

</mosaic_0001>

<llo_original>
// kernel: critic_forward.1
$region0: #{critic_forward.1}
  #allocation0 [shape = 'u32[]', space=smem, size = 0x4, offset = 0x4, fixed_abs, tag = 'smem constant byte address 0x4 - core index']
  #allocation1 [shape = 'u32[144,128]{1,0:T(1,128)}', space=vmem, size = 0x12000, scoped, tag = 'internal scratch']
  %s0 = inlined_call_operand.vmem [shape: f32[128,24], index: 0, kind: input, shape index: {}]
  %s1 = inlined_call_operand.vmem [shape: f32[128,2], index: 1, kind: input, shape index: {}]
  %s2 = inlined_call_operand.hbm [shape: bf16[2,24,800], index: 2, kind: input, shape index: {}]
  %s3 = inlined_call_operand.hbm [shape: f32[2,1,800], index: 3, kind: input, shape index: {}]
  %s4 = inlined_call_operand.hbm [shape: bf16[2,800,600], index: 4, kind: input, shape index: {}]
  %s5 = inlined_call_operand.hbm [shape: f32[2,8,600], index: 5, kind: input, shape index: {}]
  %s6 = inlined_call_operand.vmem [shape: f32[2,128,1], index: 6, kind: output, shape index: {}]
  %s7 = sld [smem:[#allocation0]]
  $region73: #{critic_forward.1} parent=0
    _
  %s9 = ssub.s32 1, %s7
  %s10 = scalar_select 0, %s9, %s7
  $region1: #{critic_forward.1} parent=0
    #allocation2 [shape = 'u8[86016]{0}', space=vmem, size = 0x15000, scoped, tag = 'input window, operand 2']
    #allocation3 [shape = 's32[2]{0}', space=sflag, size = 0x8, scoped, tag = 'scoped memory for critic_forward.1']
    #allocation4 [shape = 'u8[7168]{0}', space=vmem, size = 0x1c00, scoped, tag = 'input window, operand 3']
    #allocation5 [shape = 's32[2]{0}', space=sflag, size = 0x8, scoped, tag = 'scoped memory for critic_forward.1']
    #allocation6 [shape = 'u8[2048000]{0}', space=vmem, size = 0x1f4000, scoped, tag = 'input window, operand 4']
    #allocation7 [shape = 'u8[40960]{0}', space=vmem, size = 0xa000, scoped, tag = 'input window, operand 5']
    #allocation8 [shape = 's32[2]{0}', space=sflag, size = 0x8, scoped, tag = 'scoped memory for critic_forward.1']
    %11 = vsyncpa [#allocation3], 0
    %s12 = scalar_lea.sflag [#allocation3], 1
    %13 = vsyncpa %s12, 0
    %14 = vsyncpa [#allocation5], 0
    %s15 = scalar_lea.sflag [#allocation5], 1
    %16 = vsyncpa %s15, 0
    %17 = vsyncpa [#allocation8], 0
    %s18 = scalar_lea.sflag [#allocation8], 1
    %19 = vsyncpa %s18, 0
    loop: start=0, step=1, limit=4
    $region2: #{critic_forward.1} parent=1 // loop_pre_header
      _
    $region3: #{critic_forward.1} parent=1 // loop_header
      %s21 = sphi 0, %s25
      %p22 = scmp.ge.s32.totalorder %s21, 4
      %s29 = sphi 0, %s29
      %s31 = sphi 0, %s29
      %s32 = sphi 0, %s31
      %s46 = sphi 0, %s32
      %s50 = sphi 0, %s50
      %s52 = sphi 0, %s50
      %s53 = sphi 0, %s52
      %s67 = sphi 0, %s53
      %s73 = sphi 0, %s75
      %s76 = sphi 0, %s73
      %s77 = sphi 0, %s76
      %s93 = sphi 0, %s77
      %s99 = sphi 0, %s101
      %s102 = sphi 0, %s99
      %s103 = sphi 0, %s102
      %s119 = sphi 0, %s103
      %s125 = sphi 0, %s127
      %s128 = sphi 0, %s125
      %s129 = sphi 0, %s128
      %s145 = sphi 0, %s129
      %s151 = sphi 0, %s153
      %s154 = sphi 0, %s151
      %s155 = sphi 0, %s154
      %s171 = sphi 0, %s155
      %s177 = sphi 0, %s179
      %s180 = sphi 0, %s177
      %s181 = sphi 0, %s180
      %s197 = sphi 0, %s181
    $region4: #{critic_forward.1} parent=1 // loop_header_branch
      %24 = sbr.rel (%p22) target = $region8
    $region5: #{critic_forward.1} parent=1 // loop_body
      %s26 = ssub.s32 %s21, 1
      %s27 = ssub.s32 %s21, 2
      %s28 = sadd.s32 %s21, 1
      %s30 = sadd.s32 %s29, 1
      %p33 = scmp.eq.s32.totalorder %s21, 1
      %p34 = scmp.ne.s32.totalorder %s29, %s31
      %p35 = scmp.eq.s32.totalorder %s21, 0
      %p36 = por %p34, %p35
      %p37 = scmp.ne.s32.totalorder %s29, %s31
      %p38 = scmp.eq.s32.totalorder %s26, 1
      %p39 = por %p37, %p38
      %p40 = scmp.ne.s32.totalorder %s31, %s32
      %p41 = scmp.eq.s32.totalorder %s26, 0
      %p42 = por %p40, %p41
      %p43 = scmp.ne.s32.totalorder %s31, %s32
      %p44 = scmp.eq.s32.totalorder %s27, 1
      %p45 = por %p43, %p44
      %p47 = scmp.ne.s32.totalorder %s32, %s46
      %p48 = scmp.eq.s32.totalorder %s27, 0
      %p49 = por %p47, %p48
      %s51 = sadd.s32 %s50, 1
      %p54 = scmp.eq.s32.totalorder %s21, 1
      %p55 = scmp.ne.s32.totalorder %s50, %s52
      %p56 = scmp.eq.s32.totalorder %s21, 0
      %p57 = por %p55, %p56
      %p58 = scmp.ne.s32.totalorder %s50, %s52
      %p59 = scmp.eq.s32.totalorder %s26, 1
      %p60 = por %p58, %p59
      %p61 = scmp.ne.s32.totalorder %s52, %s53
      %p62 = scmp.eq.s32.totalorder %s26, 0
      %p63 = por %p61, %p62
      %p64 = scmp.ne.s32.totalorder %s52, %s53
      %p65 = scmp.eq.s32.totalorder %s27, 1
      %p66 = por %p64, %p65
      %p68 = scmp.ne.s32.totalorder %s53, %s67
      %p69 = scmp.eq.s32.totalorder %s27, 0
      %p70 = por %p68, %p69
      %s71 = ssub.s32 %s21, %s28
      %p72 = scmp.eq.s32.totalorder %s71, 0
      %s74 = sadd.s32 %s73, 1
      %s75 = scalar_select %p72, %s73, %s74
      %p78 = pneg %p72
      %p79 = scmp.eq.s32.totalorder %s21, 1
      %p80 = por %p78, %p79
      %p81 = scmp.ne.s32.totalorder %s73, %s76
      %p82 = scmp.eq.s32.totalorder %s21, 0
      %p83 = por %p81, %p82
      %p84 = scmp.ne.s32.totalorder %s73, %s76
      %p85 = scmp.eq.s32.totalorder %s26, 1
      %p86 = por %p84, %p85
      %p87 = scmp.ne.s32.totalorder %s76, %s77
      %p88 = scmp.eq.s32.totalorder %s26, 0
      %p89 = por %p87, %p88
      %p90 = scmp.ne.s32.totalorder %s76, %s77
      %p91 = scmp.eq.s32.totalorder %s27, 1
      %p92 = por %p90, %p91
      %p94 = scmp.ne.s32.totalorder %s77, %s93
      %p95 = scmp.eq.s32.totalorder %s27, 0
      %p96 = por %p94, %p95
      %s97 = ssub.s32 %s21, %s28
      %p98 = scmp.eq.s32.totalorder %s97, 0
      %s100 = sadd.s32 %s99, 1
      %s101 = scalar_select %p98, %s99, %s100
      %p104 = pneg %p98
      %p105 = scmp.eq.s32.totalorder %s21, 1
      %p106 = por %p104, %p105
      %p107 = scmp.ne.s32.totalorder %s99, %s102
      %p108 = scmp.eq.s32.totalorder %s21, 0
      %p109 = por %p107, %p108
      %p110 = scmp.ne.s32.totalorder %s99, %s102
      %p111 = scmp.eq.s32.totalorder %s26, 1
      %p112 = por %p110, %p111
      %p113 = scmp.ne.s32.totalorder %s102, %s103
      %p114 = scmp.eq.s32.totalorder %s26, 0
      %p115 = por %p113, %p114
      %p116 = scmp.ne.s32.totalorder %s102, %s103
      %p117 = scmp.eq.s32.totalorder %s27, 1
      %p118 = por %p116, %p117
      %p120 = scmp.ne.s32.totalorder %s103, %s119
      %p121 = scmp.eq.s32.totalorder %s27, 0
      %p122 = por %p120, %p121
      %s123 = ssub.s32 %s21, %s28
      %p124 = scmp.eq.s32.totalorder %s123, 0
      %s126 = sadd.s32 %s125, 1
      %s127 = scalar_select %p124, %s125, %s126
      %p130 = pneg %p124
      %p131 = scmp.eq.s32.totalorder %s21, 1
      %p132 = por %p130, %p131
      %p133 = scmp.ne.s32.totalorder %s125, %s128
      %p134 = scmp.eq.s32.totalorder %s21, 0
      %p135 = por %p133, %p134
      %p136 = scmp.ne.s32.totalorder %s125, %s128
      %p137 = scmp.eq.s32.totalorder %s26, 1
      %p138 = por %p136, %p137
      %p139 = scmp.ne.s32.totalorder %s128, %s129
      %p140 = scmp.eq.s32.totalorder %s26, 0
      %p141 = por %p139, %p140
      %p142 = scmp.ne.s32.totalorder %s128, %s129
      %p143 = scmp.eq.s32.totalorder %s27, 1
      %p144 = por %p142, %p143
      %p146 = scmp.ne.s32.totalorder %s129, %s145
      %p147 = scmp.eq.s32.totalorder %s27, 0
      %p148 = por %p146, %p147
      %s149 = ssub.s32 %s21, %s28
      %p150 = scmp.eq.s32.totalorder %s149, 0
      %s152 = sadd.s32 %s151, 1
      %s153 = scalar_select %p150, %s151, %s152
      %p156 = pneg %p150
      %p157 = scmp.eq.s32.totalorder %s21, 1
      %p158 = por %p156, %p157
      %p159 = scmp.ne.s32.totalorder %s151, %s154
      %p160 = scmp.eq.s32.totalorder %s21, 0
      %p161 = por %p159, %p160
      %p162 = scmp.ne.s32.totalorder %s151, %s154
      %p163 = scmp.eq.s32.totalorder %s26, 1
      %p164 = por %p162, %p163
      %p165 = scmp.ne.s32.totalorder %s154, %s155
      %p166 = scmp.eq.s32.totalorder %s26, 0
      %p167 = por %p165, %p166
      %p168 = scmp.ne.s32.totalorder %s154, %s155
      %p169 = scmp.eq.s32.totalorder %s27, 1
      %p170 = por %p168, %p169
      %p172 = scmp.ne.s32.totalorder %s155, %s171
      %p173 = scmp.eq.s32.totalorder %s27, 0
      %p174 = por %p172, %p173
      %s175 = ssub.s32 %s21, %s28
      %p176 = scmp.eq.s32.totalorder %s175, 0
      %s178 = sadd.s32 %s177, 1
      %s179 = scalar_select %p176, %s177, %s178
      %p182 = pneg %p176
      %p183 = scmp.eq.s32.totalorder %s21, 1
      %p184 = por %p182, %p183
      %p185 = scmp.ne.s32.totalorder %s177, %s180
      %p186 = scmp.eq.s32.totalorder %s21, 0
      %p187 = por %p185, %p186
      %p188 = scmp.ne.s32.totalorder %s177, %s180
      %p189 = scmp.eq.s32.totalorder %s26, 1
      %p190 = por %p188, %p189
      %p191 = scmp.ne.s32.totalorder %s180, %s181
      %p192 = scmp.eq.s32.totalorder %s26, 0
      %p193 = por %p191, %p192
      %p194 = scmp.ne.s32.totalorder %s180, %s181
      %p195 = scmp.eq.s32.totalorder %s27, 1
      %p196 = por %p194, %p195
      %p198 = scmp.ne.s32.totalorder %s181, %s197
      %p199 = scmp.eq.s32.totalorder %s27, 0
      %p200 = por %p198, %p199
      %p201 = scmp.le.s32.totalorder 1, %s21
      %p202 = scmp.lt.s32.totalorder %s21, 3
      %p203 = pnand %p201, %p202
      %p204 = pneg %p203
      // Predicated region
      $region9: #{critic_forward.1} parent=5 // pred_check
        _
      $region10: #{critic_forward.1} parent=5 // pred_check_branch
        %206 = sbr.rel (%p203) target = $region12
      $region11: #{critic_forward.1} parent=5 // pred_region
        %s207 = ssub.s32 %s21, 1
        // Predicated region
        $region13: #{critic_forward.1} parent=11 // pred_check
          %p208 = pneg %p42
        $region14: #{critic_forward.1} parent=11 // pred_check_branch
          %210 = sbr.rel (%p208) target = $region16
        $region15: #{critic_forward.1} parent=11 // pred_region
          _
        $region16: #{critic_forward.1} parent=11 // pred_fallthru
          _
        // Predicated region
        $region17: #{critic_forward.1} parent=11 // pred_check
          %p211 = pneg %p63
        $region18: #{critic_forward.1} parent=11 // pred_check_branch
          %213 = sbr.rel (%p211) target = $region20
        $region19: #{critic_forward.1} parent=11 // pred_region
          _
        $region20: #{critic_forward.1} parent=11 // pred_fallthru
          _
      $region12: #{critic_forward.1} parent=5 // pred_fallthru
        _
      %p214 = scmp.lt.s32.totalorder %s21, 2
      // Predicated region
      $region21: #{critic_forward.1} parent=5 // pred_check
        %p215 = pneg %p214
      $region22: #{critic_forward.1} parent=5 // pred_check_branch
        %217 = sbr.rel (%p215) target = $region24
      $region23: #{critic_forward.1} parent=5 // pred_region
        // Predicated region
        $region25: #{critic_forward.1} parent=23 // pred_check
          %p218 = pneg %p83
        $region26: #{critic_forward.1} parent=23 // pred_check_branch
          %220 = sbr.rel (%p218) target = $region28
        $region27: #{critic_forward.1} parent=23 // pred_region
          %s221 = sand.u32 %s73, 1
          %s222 = scalar_lea.sflag [#allocation3], %s221
          %s223 = sand.u32 %s73, 1
          %s224 = smul.addr %s223, 84
          %s225 = scalar_lea.vmem [#allocation2], %s224
          %s227 = ssub.s32 1344, 1344
          %228 = vsyncadd %s222, %s227
          %s229 = smul.addr %s21, 21
          %s230 = smul.addr %s229, 64
          %s231 = scalar_lea.hbm %s2, %s230
          %s232 = sshll.u32 %s225, 4
          %s233 = int_to_ptr.vmem [resolvable:$true] %s232
          %238 = dma.hbm_to_vmem [thread:$0]  %s231, 1344, %s233, %s222, 448, 448, 28
        $region28: #{critic_forward.1} parent=23 // pred_fallthru
          _
        // Predicated region
        $region29: #{critic_forward.1} parent=23 // pred_check
          %p239 = pneg %p109
        $region30: #{critic_forward.1} parent=23 // pred_check_branch
          %241 = sbr.rel (%p239) target = $region32
        $region31: #{critic_forward.1} parent=23 // pred_region
          %s242 = sand.u32 %s21, 1
          %s243 = scalar_lea.sflag [#allocation5], %s242
          %s244 = sand.u32 %s99, 1
          %s245 = smul.addr %s244, 7
          %s246 = scalar_lea.vmem [#allocation4], %s245
          %s248 = ssub.s32 112, 112
          %249 = vsyncadd %s243, %s248
          %s250 = smul.addr %s21, 7
          %s251 = smul.addr %s250, 16
          %s252 = scalar_lea.hbm %s3, %s251
          %s254 = sshll.u32 %s246, 4
          %s255 = int_to_ptr.vmem [resolvable:$true] %s254
          %257 = dma.hbm_to_vmem [thread:$0]  %s252, 112, %s255, %s243
        $region32: #{critic_forward.1} parent=23 // pred_fallthru
          _
        // Predicated region
        $region33: #{critic_forward.1} parent=23 // pred_check
          %p258 = pneg %p135
        $region34: #{critic_forward.1} parent=23 // pred_check_branch
          %260 = sbr.rel (%p258) target = $region36
        $region35: #{critic_forward.1} parent=23 // pred_region
          %s261 = sand.u32 %s21, 1
          %s262 = scalar_lea.sflag [#allocation5], %s261
          %s263 = sand.u32 %s125, 1
          %s264 = smul.addr %s263, 2000
          %s265 = scalar_lea.vmem [#allocation6], %s264
          %s267 = ssub.s32 32000, 32000
          %268 = vsyncadd %s262, %s267
          %s269 = smul.addr %s21, 500
          %s270 = smul.addr %s269, 64
          %s271 = scalar_lea.hbm %s4, %s270
          %s272 = sshll.u32 %s265, 4
          %s273 = int_to_ptr.vmem [resolvable:$true] %s272
          %278 = dma.hbm_to_vmem [thread:$0]  %s271, 32000, %s273, %s262, 320, 320, 20
        $region36: #{critic_forward.1} parent=23 // pred_fallthru
          _
        // Predicated region
        $region37: #{critic_forward.1} parent=23 // pred_check
          %p279 = pneg %p161
        $region38: #{critic_forward.1} parent=23 // pred_check_branch
          %281 = sbr.rel (%p279) target = $region40
        $region39: #{critic_forward.1} parent=23 // pred_region
          %s282 = sand.u32 %s151, 1
          %s283 = scalar_lea.sflag [#allocation8], %s282
          %s284 = sand.u32 %s151, 1
          %s285 = smul.addr %s284, 40
          %s286 = scalar_lea.vmem [#allocation7], %s285
          %s288 = ssub.s32 640, 640
          %289 = vsyncadd %s283, %s288
          %s290 = smul.addr %s21, 5
          %s291 = smul.addr %s290, 128
          %s292 = scalar_lea.hbm %s5, %s291
          %s294 = sshll.u32 %s286, 4
          %s295 = int_to_ptr.vmem [resolvable:$true] %s294
          %297 = dma.hbm_to_vmem [thread:$0]  %s292, 640, %s295, %s283
        $region40: #{critic_forward.1} parent=23 // pred_fallthru
          _
      $region24: #{critic_forward.1} parent=5 // pred_fallthru
        _
      %p298 = scmp.le.s32.totalorder 1, %s21
      %p299 = scmp.lt.s32.totalorder %s21, 3
      %p300 = pnand %p298, %p299
      %p301 = pneg %p300
      // Predicated region
      $region41: #{critic_forward.1} parent=5 // pred_check
        _
      $region42: #{critic_forward.1} parent=5 // pred_check_branch
        %303 = sbr.rel (%p300) target = $region44
      $region43: #{critic_forward.1} parent=5 // pred_region
        %s304 = ssub.s32 %s21, 1
        %s305 = sand.u32 %s76, 1
        %s306 = scalar_lea.sflag [#allocation3], %s305
        %s307 = sand.u32 %s76, 1
        %s308 = smul.addr %s307, 84
        %s309 = scalar_lea.vmem [#allocation2], %s308
        // Predicated region
        $region45: #{critic_forward.1} parent=43 // pred_check
          %p310 = pneg %p89
        $region46: #{critic_forward.1} parent=43 // pred_check_branch
          %312 = sbr.rel (%p310) target = $region48
        $region47: #{critic_forward.1} parent=43 // pred_region
          %313 = dma.done %s306, 1344
        $region48: #{critic_forward.1} parent=43 // pred_fallthru
          _
        %s314 = sand.u32 %s26, 1
        %s315 = scalar_lea.sflag [#allocation5], %s314
        %s316 = sand.u32 %s102, 1
        %s317 = smul.addr %s316, 7
        %s318 = scalar_lea.vmem [#allocation4], %s317
        // Predicated region
        $region49: #{critic_forward.1} parent=43 // pred_check
          %p319 = pneg %p115
        $region50: #{critic_forward.1} parent=43 // pred_check_branch
          %321 = sbr.rel (%p319) target = $region52
        $region51: #{critic_forward.1} parent=43 // pred_region
          %322 = dma.done %s315, 112
        $region52: #{critic_forward.1} parent=43 // pred_fallthru
          _
        %s323 = sand.u32 %s26, 1
        %s324 = scalar_lea.sflag [#allocation5], %s323
        %s325 = sand.u32 %s128, 1
        %s326 = smul.addr %s325, 2000
        %s327 = scalar_lea.vmem [#allocation6], %s326
        // Predicated region
        $region53: #{critic_forward.1} parent=43 // pred_check
          %p328 = pneg %p141
        $region54: #{critic_forward.1} parent=43 // pred_check_branch
          %330 = sbr.rel (%p328) target = $region56
        $region55: #{critic_forward.1} parent=43 // pred_region
          %331 = dma.done %s324, 32000
        $region56: #{critic_forward.1} parent=43 // pred_fallthru
          _
        %s332 = sand.u32 %s154, 1
        %s333 = scalar_lea.sflag [#allocation8], %s332
        %s334 = sand.u32 %s154, 1
        %s335 = smul.addr %s334, 40
        %s336 = scalar_lea.vmem [#allocation7], %s335
        // Predicated region
        $region57: #{critic_forward.1} parent=43 // pred_check
          %p337 = pneg %p167
        $region58: #{critic_forward.1} parent=43 // pred_check_branch
          %339 = sbr.rel (%p337) target = $region60
        $region59: #{critic_forward.1} parent=43 // pred_region
          %340 = dma.done %s333, 640
        $region60: #{critic_forward.1} parent=43 // pred_fallthru
          _
        %p341 = pneg %p42
        %p342 = pneg %p39
        %p343 = pneg %p63
        %p344 = pneg %p60
        %s345 = sand.u32 %s76, 1
        %s346 = scalar_lea.sflag [#allocation3], %s345
        %s347 = sand.u32 %s76, 1
        %s348 = smul.addr %s347, 84
        %s349 = scalar_lea.vmem [#allocation2], %s348
        %p350 = pneg %p89
        %p351 = pneg %p86
        %s352 = sand.u32 %s26, 1
        %s353 = scalar_lea.sflag [#allocation5], %s352
        %s354 = sand.u32 %s102, 1
        %s355 = smul.addr %s354, 7
        %s356 = scalar_lea.vmem [#allocation4], %s355
        %p357 = pneg %p115
        %p358 = pneg %p112
        %s359 = sand.u32 %s26, 1
        %s360 = scalar_lea.sflag [#allocation5], %s359
        %s361 = sand.u32 %s128, 1
        %s362 = smul.addr %s361, 2000
        %s363 = scalar_lea.vmem [#allocation6], %s362
        %p364 = pneg %p141
        %p365 = pneg %p138
        %s366 = sand.u32 %s154, 1
        %s367 = scalar_lea.sflag [#allocation8], %s366
        %s368 = sand.u32 %s154, 1
        %s369 = smul.addr %s368, 40
        %s370 = scalar_lea.vmem [#allocation7], %s369
        %p371 = pneg %p167
        %p372 = pneg %p164
        %p373 = pneg %p193
        %p374 = pneg %p190
        %p375 = scmp.lt.s32.totalorder %s26, 1
        %s376 = scalar_select %p375, %s26, 1
        %s377 = smul.addr %s376, 16
        %s378 = smul.addr %s377, 8
        %s379 = scalar_lea.vmem %s6, %s378
        %p380 = scmp.lt.s32.totalorder %s26, 1
        %s381 = scalar_select %p380, %s26, 1
        %s382 = smul.addr %s381, 16
        %s383 = smul.addr %s382, 8
        %s384 = scalar_lea.vmem %s6, %s383
        %v386 = vld [vmem:[%s0] sm:$0xff]
        %v387 = vld [vmem:[%s0 + $0x8] sm:$0xff]
        %v388 = vld [vmem:[%s0 + $0x10] sm:$0xff]
        %v389 = vld [vmem:[%s0 + $0x18] sm:$0xff]
        %v390 = vld [vmem:[%s0 + $0x20] sm:$0xff]
        %v391 = vld [vmem:[%s0 + $0x28] sm:$0xff]
        %v392 = vld [vmem:[%s0 + $0x30] sm:$0xff]
        %v393 = vld [vmem:[%s0 + $0x38] sm:$0xff]
        %v394 = vld [vmem:[%s0 + $0x40] sm:$0xff]
        %v395 = vld [vmem:[%s0 + $0x48] sm:$0xff]
        %v396 = vld [vmem:[%s0 + $0x50] sm:$0xff]
        %v397 = vld [vmem:[%s0 + $0x58] sm:$0xff]
        %v398 = vld [vmem:[%s0 + $0x60] sm:$0xff]
        %v399 = vld [vmem:[%s0 + $0x68] sm:$0xff]
        %v400 = vld [vmem:[%s0 + $0x70] sm:$0xff]
        %v401 = vld [vmem:[%s0 + $0x78] sm:$0xff]
        %v402 = vld [vmem:[%s1] sm:$0xff]
        %v403 = vld [vmem:[%s1 + $0x8] sm:$0xff]
        %v404 = vld [vmem:[%s1 + $0x10] sm:$0xff]
        %v405 = vld [vmem:[%s1 + $0x18] sm:$0xff]
        %v406 = vld [vmem:[%s1 + $0x20] sm:$0xff]
        %v407 = vld [vmem:[%s1 + $0x28] sm:$0xff]
        %v408 = vld [vmem:[%s1 + $0x30] sm:$0xff]
        %v409 = vld [vmem:[%s1 + $0x38] sm:$0xff]
        %v410 = vld [vmem:[%s1 + $0x40] sm:$0xff]
        %v411 = vld [vmem:[%s1 + $0x48] sm:$0xff]
        %v412 = vld [vmem:[%s1 + $0x50] sm:$0xff]
        %v413 = vld [vmem:[%s1 + $0x58] sm:$0xff]
        %v414 = vld [vmem:[%s1 + $0x60] sm:$0xff]
        %v415 = vld [vmem:[%s1 + $0x68] sm:$0xff]
        %v416 = vld [vmem:[%s1 + $0x70] sm:$0xff]
        %v417 = vld [vmem:[%s1 + $0x78] sm:$0xff]
        %v418 = vld [vmem:[%s336] sm:$0xff]
        %v419 = vld [vmem:[%s336 + $0x8] sm:$0xff]
        %v420 = vld [vmem:[%s336 + $0x10] sm:$0xff]
        %v421 = vld [vmem:[%s336 + $0x18] sm:$0xff]
        %v422 = vld [vmem:[%s336 + $0x20] sm:$0xff]
        %v423 = vpack.c.bf16 %v387, %v386
        %v424 = vpack.c.bf16 %v389, %v388
        %v425 = vpack.c.bf16 %v391, %v390
        %v426 = vpack.c.bf16 %v393, %v392
        %v427 = vpack.c.bf16 %v395, %v394
        %v428 = vpack.c.bf16 %v397, %v396
        %v429 = vpack.c.bf16 %v399, %v398
        %v430 = vpack.c.bf16 %v401, %v400
        %v431 = vld [vmem:[%s309] sm:$0xff]
        %v432 = vld [vmem:[%s309 + $0x8] sm:$0xff]
        %v433 = vld [vmem:[%s309 + $0x10] sm:$0xff]
        %v434 = vld [vmem:[%s309 + $0x18] sm:$0xf]
        %v435 = vld [vmem:[%s309 + $0x1c] sm:$0xff]
        %v436 = vld [vmem:[%s309 + $0x24] sm:$0xff]
        %v437 = vld [vmem:[%s309 + $0x2c] sm:$0xff]
        %v438 = vld [vmem:[%s309 + $0x34] sm:$0xf]
        %v439 = vld [vmem:[%s309 + $0x38] sm:$0xff]
        %v440 = vld [vmem:[%s309 + $0x40] sm:$0xff]
        %v441 = vld [vmem:[%s309 + $0x48] sm:$0xff]
        %v442 = vld [vmem:[%s309 + $0x50] sm:$0xf]
        %v443 = vld [vmem:[%s318] sm:$0x7f]
        %v445 = vlaneseq
        %v446 = vshrl.u32 %v445, 7
        %v447 = vsub.s32 0, %v446
        %v448 = vrot.slane %v443, %v447
        %v449 = vlaneseq
        %v450 = vshrl.u32 %v449, 7
        %v451 = vsub.s32 1, %v450
        %v452 = vrot.slane %v443, %v451
        %v453 = vlaneseq
        %v454 = vshrl.u32 %v453, 7
        %v455 = vsub.s32 2, %v454
        %v456 = vrot.slane %v443, %v455
        %v457 = vlaneseq
        %v458 = vshrl.u32 %v457, 7
        %v459 = vsub.s32 3, %v458
        %v460 = vrot.slane %v443, %v459
        %v461 = vlaneseq
        %v462 = vshrl.u32 %v461, 7
        %v463 = vsub.s32 4, %v462
        %v464 = vrot.slane %v443, %v463
        %v465 = vlaneseq
        %v466 = vshrl.u32 %v465, 7
        %v467 = vsub.s32 5, %v466
        %v468 = vrot.slane %v443, %v467
        %v469 = vlaneseq
        %v470 = vshrl.u32 %v469, 7
        %v471 = vsub.s32 6, %v470
        %v472 = vrot.slane %v443, %v471
        %v492 = vunpack.c.l.b16 %v431
        %v493 = vunpack.c.h.b16 %v431
        %v494 = vunpack.c.l.b16 %v432
        %v495 = vunpack.c.h.b16 %v432
        %v496 = vunpack.c.l.b16 %v433
        %v497 = vunpack.c.h.b16 %v433
        %v498 = vunpack.c.l.b16 %v434
        %v499 = vunpack.c.l.b16 %v435
        %v500 = vunpack.c.h.b16 %v435
        %v501 = vunpack.c.l.b16 %v436
        %v502 = vunpack.c.h.b16 %v436
        %v503 = vunpack.c.l.b16 %v437
        %v504 = vunpack.c.h.b16 %v437
        %v505 = vunpack.c.l.b16 %v438
        %v506 = vunpack.c.l.b16 %v439
        %v507 = vunpack.c.h.b16 %v439
        %v508 = vunpack.c.l.b16 %v440
        %v509 = vunpack.c.h.b16 %v440
        %v510 = vunpack.c.l.b16 %v441
        %v511 = vunpack.c.h.b16 %v441
        %v512 = vunpack.c.l.b16 %v442
        %v513 = vpack.c.b16 %v499, %v492
        %v514 = vpack.c.b16 %v500, %v493
        %v515 = vpack.c.b16 %v501, %v494
        %v516 = vpack.c.b16 %v502, %v495
        %v517 = vpack.c.b16 %v503, %v496
        %v518 = vpack.c.b16 %v504, %v497
        %v519 = vpack.c.b16 %v505, %v498
        %v520 = vpack.c.b16 %v506, %v506
        %v521 = vpack.c.b16 %v507, %v507
        %v522 = vpack.c.b16 %v508, %v508
        %v523 = vpack.c.b16 %v509, %v509
        %v524 = vpack.c.b16 %v510, %v510
        %v525 = vpack.c.b16 %v511, %v511
        %v526 = vpack.c.b16 %v512, %v512
        %vm534 = vcmask 195584
        %v536 = vsel %vm534, %v423, 0
        %v539 = vsel %vm534, %v424, 0
        %v542 = vsel %vm534, %v425, 0
        %v545 = vsel %vm534, %v426, 0
        %v548 = vsel %vm534, %v427, 0
        %v551 = vsel %vm534, %v428, 0
        %v554 = vsel %vm534, %v429, 0
        %v557 = vsel %vm534, %v430, 0
        %vm559 = vcmask 1043456
        %v561 = vsel %vm559, %v520, 0
        %v564 = vsel %vm559, %v521, 0
        %v567 = vsel %vm559, %v522, 0
        %v570 = vsel %vm559, %v523, 0
        %v573 = vsel %vm559, %v524, 0
        %v576 = vsel %vm559, %v525, 0
        %v579 = vsel %vm559, %v526, 0
        %581 = vmatprep.subr.bf16.mxu0 %v514
        %582 = vmatpush1.bf16.msra.mxu0 %v513
        %583 = vmatprep.subr.bf16.mxu0 %v564
        %584 = vmatpush1.bf16.msra.mxu0 %v561
        %585 = vmatprep.subr.bf16.mxu0 0
        %586 = vmatpush1.bf16.msra.mxu0 0
        %587 = vmatprep.subr.bf16.mxu0 0
        %588 = vmatpush1.bf16.msra.mxu0 0
        %589 = vmatprep.subr.bf16.mxu0 0
        %590 = vmatpush1.bf16.msra.mxu0 0
        %591 = vmatprep.subr.bf16.mxu0 0
        %592 = vmatpush1.bf16.msra.mxu0 0
        %593 = vmatprep.subr.bf16.mxu0 0
        %594 = vmatpush1.bf16.msra.mxu0 0
        %595 = vmatprep.subr.bf16.mxu0 0
        %596 = vmatpush1.bf16.msra.mxu0 0
        %597 = vmatprep.subr.bf16.mxu0 0
        %598 = vmatpush1.bf16.msra.mxu0 0
        %599 = vmatprep.subr.bf16.mxu0 0
        %600 = vmatpush1.bf16.msra.mxu0 0
        %601 = vmatprep.subr.bf16.mxu0 0
        %602 = vmatpush1.bf16.msra.mxu0 0
        %603 = vmatprep.subr.bf16.mxu0 0
        %604 = vmatpush1.bf16.msra.mxu0 0
        %605 = vmatprep.subr.bf16.mxu0 0
        %606 = vmatpush1.bf16.msra.mxu0 0
        %607 = vmatprep.subr.bf16.mxu0 0
        %608 = vmatpush1.bf16.msra.mxu0 0
        %609 = vmatprep.subr.bf16.mxu0 0
        %610 = vmatpush1.bf16.msra.mxu0 0
        %611 = vmatprep.subr.bf16.mxu0 0
        %612 = vmatpush1.bf16.msra.mxu0 0
        %613 = vmatprep.mubr.bf16.mxu0 0
        %614 = vmatmul.mubr.bf16.gmra.mrb[0].mxu0 %v536
        %v615 = vpop.f32.mrb[0].mxu0
        %v616 = vadd.f32 %v448, %v615
        %v617 = vpop.f32.mrb[0].mxu0
        %v618 = vadd.f32 %v452, %v617
        %v619 = vpop.f32.mrb[0].mxu0
        %v620 = vadd.f32 %v448, %v619
        %v621 = vpop.f32.mrb[0].mxu0
        %v622 = vadd.f32 %v452, %v621
        %623 = vmatprep.mubr.bf16.mxu0 0
        %624 = vmatmul.mubr.bf16.gmra.mrb[0].mxu0 %v539
        %v625 = vpop.f32.mrb[0].mxu0
        %v626 = vadd.f32 %v448, %v625
        %v627 = vpop.f32.mrb[0].mxu0
        %v628 = vadd.f32 %v452, %v627
        %v629 = vpop.f32.mrb[0].mxu0
        %v630 = vadd.f32 %v448, %v629
        %v631 = vpop.f32.mrb[0].mxu0
        %v632 = vadd.f32 %v452, %v631
        %633 = vmatprep.mubr.bf16.mxu0 0
        %634 = vmatmul.mubr.bf16.gmra.mrb[0].mxu0 %v542
        %v635 = vpop.f32.mrb[0].mxu0
        %v636 = vadd.f32 %v448, %v635
        %v637 = vpop.f32.mrb[0].mxu0
        %v638 = vadd.f32 %v452, %v637
        %v639 = vpop.f32.mrb[0].mxu0
        %v640 = vadd.f32 %v448, %v639
        %v641 = vpop.f32.mrb[0].mxu0
        %v642 = vadd.f32 %v452, %v641
        %643 = vmatprep.mubr.bf16.mxu0 0
        %644 = vmatmul.mubr.bf16.gmra.mrb[0].mxu0 %v545
        %v645 = vpop.f32.mrb[0].mxu0
        %v646 = vadd.f32 %v448, %v645
        %v647 = vpop.f32.mrb[0].mxu0
        %v648 = vadd.f32 %v452, %v647
        %v649 = vpop.f32.mrb[0].mxu0
        %v650 = vadd.f32 %v448, %v649
        %v651 = vpop.f32.mrb[0].mxu0
        %v652 = vadd.f32 %v452, %v651
        %653 = vmatprep.mubr.bf16.mxu0 0
        %654 = vmatmul.mubr.bf16.gmra.mrb[0].mxu0 %v548
        %v655 = vpop.f32.mrb[0].mxu0
        %v656 = vadd.f32 %v448, %v655
        %v657 = vpop.f32.mrb[0].mxu0
        %v658 = vadd.f32 %v452, %v657
        %v659 = vpop.f32.mrb[0].mxu0
        %v660 = vadd.f32 %v448, %v659
        %v661 = vpop.f32.mrb[0].mxu0
        %v662 = vadd.f32 %v452, %v661
        %663 = vmatprep.mubr.bf16.mxu0 0
        %664 = vmatmul.mubr.bf16.gmra.mrb[0].mxu0 %v551
        %v665 = vpop.f32.mrb[0].mxu0
        %v666 = vadd.f32 %v448, %v665
        %v667 = vpop.f32.mrb[0].mxu0
        %v668 = vadd.f32 %v452, %v667
        %v669 = vpop.f32.mrb[0].mxu0
        %v670 = vadd.f32 %v448, %v669
        %v671 = vpop.f32.mrb[0].mxu0
        %v672 = vadd.f32 %v452, %v671
        %673 = vmatprep.mubr.bf16.mxu0 0
        %674 = vmatmul.mubr.bf16.gmra.mrb[0].mxu0 %v554
        %v675 = vpop.f32.mrb[0].mxu0
        %v676 = vadd.f32 %v448, %v675
        %v677 = vpop.f32.mrb[0].mxu0
        %v678 = vadd.f32 %v452, %v677
        %v679 = vpop.f32.mrb[0].mxu0
        %v680 = vadd.f32 %v448, %v679
        %v681 = vpop.f32.mrb[0].mxu0
        %v682 = vadd.f32 %v452, %v681
        %683 = vmatprep.mubr.bf16.mxu0 0
        %684 = vmatmul.mubr.bf16.gmra.mrb[0].mxu0 %v557
        %v685 = vpop.f32.mrb[0].mxu0
        %v686 = vadd.f32 %v448, %v685
        %v687 = vpop.f32.mrb[0].mxu0
        %v688 = vadd.f32 %v452, %v687
        %v689 = vpop.f32.mrb[0].mxu0
        %v690 = vadd.f32 %v448, %v689
        %v691 = vpop.f32.mrb[0].mxu0
        %v692 = vadd.f32 %v452, %v691
        %693 = vdwg.mxu0
        %694 = vmatprep.subr.bf16.mxu0 %v516
        %695 = vmatpush1.bf16.msra.mxu0 %v515
        %696 = vmatprep.subr.bf16.mxu0 %v570
        %697 = vmatpush1.bf16.msra.mxu0 %v567
        %698 = vmatprep.subr.bf16.mxu0 0
        %699 = vmatpush1.bf16.msra.mxu0 0
        %700 = vmatprep.subr.bf16.mxu0 0
        %701 = vmatpush1.bf16.msra.mxu0 0
        %702 = vmatprep.subr.bf16.mxu0 0
        %703 = vmatpush1.bf16.msra.mxu0 0
        %704 = vmatprep.subr.bf16.mxu0 0
        %705 = vmatpush1.bf16.msra.mxu0 0
        %706 = vmatprep.subr.bf16.mxu0 0
        %707 = vmatpush1.bf16.msra.mxu0 0
        %708 = vmatprep.subr.bf16.mxu0 0
        %709 = vmatpush1.bf16.msra.mxu0 0
        %710 = vmatprep.subr.bf16.mxu0 0
        %711 = vmatpush1.bf16.msra.mxu0 0
        %712 = vmatprep.subr.bf16.mxu0 0
        %713 = vmatpush1.bf16.msra.mxu0 0
        %714 = vmatprep.subr.bf16.mxu0 0
        %715 = vmatpush1.bf16.msra.mxu0 0
        %716 = vmatprep.subr.bf16.mxu0 0
        %717 = vmatpush1.bf16.msra.mxu0 0
        %718 = vmatprep.subr.bf16.mxu0 0
        %719 = vmatpush1.bf16.msra.mxu0 0
        %720 = vmatprep.subr.bf16.mxu0 0
        %721 = vmatpush1.bf16.msra.mxu0 0
        %722 = vmatprep.subr.bf16.mxu0 0
        %723 = vmatpush1.bf16.msra.mxu0 0
        %724 = vmatprep.subr.bf16.mxu0 0
        %725 = vmatpush1.bf16.msra.mxu0 0
        %726 = vmatprep.mubr.bf16.mxu0 0
        %727 = vmatmul.mubr.bf16.gmra.mrb[0].mxu0 %v536
        %v728 = vpop.f32.mrb[0].mxu0
        %v729 = vadd.f32 %v456, %v728
        %v730 = vpop.f32.mrb[0].mxu0
        %v731 = vadd.f32 %v460, %v730
        %v732 = vpop.f32.mrb[0].mxu0
        %v733 = vadd.f32 %v456, %v732
        %v734 = vpop.f32.mrb[0].mxu0
        %v735 = vadd.f32 %v460, %v734
        %736 = vmatprep.mubr.bf16.mxu0 0
        %737 = vmatmul.mubr.bf16.gmra.mrb[0].mxu0 %v539
        %v738 = vpop.f32.mrb[0].mxu0
        %v739 = vadd.f32 %v456, %v738
        %v740 = vpop.f32.mrb[0].mxu0
        %v741 = vadd.f32 %v460, %v740
        %v742 = vpop.f32.mrb[0].mxu0
        %v743 = vadd.f32 %v456, %v742
        %v744 = vpop.f32.mrb[0].mxu0
        %v745 = vadd.f32 %v460, %v744
        %746 = vmatprep.mubr.bf16.mxu0 0
        %747 = vmatmul.mubr.bf16.gmra.mrb[0].mxu0 %v542
        %v748 = vpop.f32.mrb[0].mxu0
        %v749 = vadd.f32 %v456, %v748
        %v750 = vpop.f32.mrb[0].mxu0
        %v751 = vadd.f32 %v460, %v750
        %v752 = vpop.f32.mrb[0].mxu0
        %v753 = vadd.f32 %v456, %v752
        %v754 = vpop.f32.mrb[0].mxu0
        %v755 = vadd.f32 %v460, %v754
        %756 = vmatprep.mubr.bf16.mxu0 0
        %757 = vmatmul.mubr.bf16.gmra.mrb[0].mxu0 %v545
        %v758 = vpop.f32.mrb[0].mxu0
        %v759 = vadd.f32 %v456, %v758
        %v760 = vpop.f32.mrb[0].mxu0
        %v761 = vadd.f32 %v460, %v760
        %v762 = vpop.f32.mrb[0].mxu0
        %v763 = vadd.f32 %v456, %v762
        %v764 = vpop.f32.mrb[0].mxu0
        %v765 = vadd.f32 %v460, %v764
        %766 = vmatprep.mubr.bf16.mxu0 0
        %767 = vmatmul.mubr.bf16.gmra.mrb[0].mxu0 %v548
        %v768 = vpop.f32.mrb[0].mxu0
        %v769 = vadd.f32 %v456, %v768
        %v770 = vpop.f32.mrb[0].mxu0
        %v771 = vadd.f32 %v460, %v770
        %v772 = vpop.f32.mrb[0].mxu0
        %v773 = vadd.f32 %v456, %v772
        %v774 = vpop.f32.mrb[0].mxu0
        %v775 = vadd.f32 %v460, %v774
        %776 = vmatprep.mubr.bf16.mxu0 0
        %777 = vmatmul.mubr.bf16.gmra.mrb[0].mxu0 %v551
        %v778 = vpop.f32.mrb[0].mxu0
        %v779 = vadd.f32 %v456, %v778
        %v780 = vpop.f32.mrb[0].mxu0
        %v781 = vadd.f32 %v460, %v780
        %v782 = vpop.f32.mrb[0].mxu0
        %v783 = vadd.f32 %v456, %v782
        %v784 = vpop.f32.mrb[0].mxu0
        %v785 = vadd.f32 %v460, %v784
        %786 = vmatprep.mubr.bf16.mxu0 0
        %787 = vmatmul.mubr.bf16.gmra.mrb[0].mxu0 %v554
        %v788 = vpop.f32.mrb[0].mxu0
        %v789 = vadd.f32 %v456, %v788
        %v790 = vpop.f32.mrb[0].mxu0
        %v791 = vadd.f32 %v460, %v790
        %v792 = vpop.f32.mrb[0].mxu0
        %v793 = vadd.f32 %v456, %v792
        %v794 = vpop.f32.mrb[0].mxu0
        %v795 = vadd.f32 %v460, %v794
        %796 = vmatprep.mubr.bf16.mxu0 0
        %797 = vmatmul.mubr.bf16.gmra.mrb[0].mxu0 %v557
        %v798 = vpop.f32.mrb[0].mxu0
        %v799 = vadd.f32 %v456, %v798
        %v800 = vpop.f32.mrb[0].mxu0
        %v801 = vadd.f32 %v460, %v800
        %v802 = vpop.f32.mrb[0].mxu0
        %v803 = vadd.f32 %v456, %v802
        %v804 = vpop.f32.mrb[0].mxu0
        %v805 = vadd.f32 %v460, %v804
        %806 = vdwg.mxu0
        %807 = vmatprep.subr.bf16.mxu0 %v518
        %808 = vmatpush1.bf16.msra.mxu0 %v517
        %809 = vmatprep.subr.bf16.mxu0 %v576
        %810 = vmatpush1.bf16.msra.mxu0 %v573
        %811 = vmatprep.subr.bf16.mxu0 0
        %812 = vmatpush1.bf16.msra.mxu0 0
        %813 = vmatprep.subr.bf16.mxu0 0
        %814 = vmatpush1.bf16.msra.mxu0 0
        %815 = vmatprep.subr.bf16.mxu0 0
        %816 = vmatpush1.bf16.msra.mxu0 0
        %817 = vmatprep.subr.bf16.mxu0 0
        %818 = vmatpush1.bf16.msra.mxu0 0
        %819 = vmatprep.subr.bf16.mxu0 0
        %820 = vmatpush1.bf16.msra.mxu0 0
        %821 = vmatprep.subr.bf16.mxu0 0
        %822 = vmatpush1.bf16.msra.mxu0 0
        %823 = vmatprep.subr.bf16.mxu0 0
        %824 = vmatpush1.bf16.msra.mxu0 0
        %825 = vmatprep.subr.bf16.mxu0 0
        %826 = vmatpush1.bf16.msra.mxu0 0
        %827 = vmatprep.subr.bf16.mxu0 0
        %828 = vmatpush1.bf16.msra.mxu0 0
        %829 = vmatprep.subr.bf16.mxu0 0
        %830 = vmatpush1.bf16.msra.mxu0 0
        %831 = vmatprep.subr.bf16.mxu0 0
        %832 = vmatpush1.bf16.msra.mxu0 0
        %833 = vmatprep.subr.bf16.mxu0 0
        %834 = vmatpush1.bf16.msra.mxu0 0
        %835 = vmatprep.subr.bf16.mxu0 0
        %836 = vmatpush1.bf16.msra.mxu0 0
        %837 = vmatprep.subr.bf16.mxu0 0
        %838 = vmatpush1.bf16.msra.mxu0 0
        %839 = vmatprep.mubr.bf16.mxu0 0
        %840 = vmatmul.mubr.bf16.gmra.mrb[0].mxu0 %v536
        %v841 = vpop.f32.mrb[0].mxu0
        %v842 = vadd.f32 %v464, %v841
        %v843 = vpop.f32.mrb[0].mxu0
        %v844 = vadd.f32 %v468, %v843
        %v845 = vpop.f32.mrb[0].mxu0
        %v846 = vadd.f32 %v464, %v845
        %v847 = vpop.f32.mrb[0].mxu0
        %v848 = vadd.f32 %v468, %v847
        %849 = vmatprep.mubr.bf16.mxu0 0
        %850 = vmatmul.mubr.bf16.gmra.mrb[0].mxu0 %v539
        %v851 = vpop.f32.mrb[0].mxu0
        %v852 = vadd.f32 %v464, %v851
        %v853 = vpop.f32.mrb[0].mxu0
        %v854 = vadd.f32 %v468, %v853
        %v855 = vpop.f32.mrb[0].mxu0
        %v856 = vadd.f32 %v464, %v855
        %v857 = vpop.f32.mrb[0].mxu0
        %v858 = vadd.f32 %v468, %v857
        %859 = vmatprep.mubr.bf16.mxu0 0
        %860 = vmatmul.mubr.bf16.gmra.mrb[0].mxu0 %v542
        %v861 = vpop.f32.mrb[0].mxu0
        %v862 = vadd.f32 %v464, %v861
        %v863 = vpop.f32.mrb[0].mxu0
        %v864 = vadd.f32 %v468, %v863
        %v865 = vpop.f32.mrb[0].mxu0
        %v866 = vadd.f32 %v464, %v865
        %v867 = vpop.f32.mrb[0].mxu0
        %v868 = vadd.f32 %v468, %v867
        %869 = vmatprep.mubr.bf16.mxu0 0
        %870 = vmatmul.mubr.bf16.gmra.mrb[0].mxu0 %v545
        %v871 = vpop.f32.mrb[0].mxu0
        %v872 = vadd.f32 %v464, %v871
        %v873 = vpop.f32.mrb[0].mxu0
        %v874 = vadd.f32 %v468, %v873
        %v875 = vpop.f32.mrb[0].mxu0
        %v876 = vadd.f32 %v464, %v875
        %v877 = vpop.f32.mrb[0].mxu0
        %v878 = vadd.f32 %v468, %v877
        %879 = vmatprep.mubr.bf16.mxu0 0
        %880 = vmatmul.mubr.bf16.gmra.mrb[0].mxu0 %v548
        %v881 = vpop.f32.mrb[0].mxu0
        %v882 = vadd.f32 %v464, %v881
        %v883 = vpop.f32.mrb[0].mxu0
        %v884 = vadd.f32 %v468, %v883
        %v885 = vpop.f32.mrb[0].mxu0
        %v886 = vadd.f32 %v464, %v885
        %v887 = vpop.f32.mrb[0].mxu0
        %v888 = vadd.f32 %v468, %v887
        %889 = vmatprep.mubr.bf16.mxu0 0
        %890 = vmatmul.mubr.bf16.gmra.mrb[0].mxu0 %v551
        %v891 = vpop.f32.mrb[0].mxu0
        %v892 = vadd.f32 %v464, %v891
        %v893 = vpop.f32.mrb[0].mxu0
        %v894 = vadd.f32 %v468, %v893
        %v895 = vpop.f32.mrb[0].mxu0
        %v896 = vadd.f32 %v464, %v895
        %v897 = vpop.f32.mrb[0].mxu0
        %v898 = vadd.f32 %v468, %v897
        %899 = vmatprep.mubr.bf16.mxu0 0
        %900 = vmatmul.mubr.bf16.gmra.mrb[0].mxu0 %v554
        %v901 = vpop.f32.mrb[0].mxu0
        %v902 = vadd.f32 %v464, %v901
        %v903 = vpop.f32.mrb[0].mxu0
        %v904 = vadd.f32 %v468, %v903
        %v905 = vpop.f32.mrb[0].mxu0
        %v906 = vadd.f32 %v464, %v905
        %v907 = vpop.f32.mrb[0].mxu0
        %v908 = vadd.f32 %v468, %v907
        %909 = vmatprep.mubr.bf16.mxu0 0
        %910 = vmatmul.mubr.bf16.gmra.mrb[0].mxu0 %v557
        %v911 = vpop.f32.mrb[0].mxu0
        %v912 = vadd.f32 %v464, %v911
        %v913 = vpop.f32.mrb[0].mxu0
        %v914 = vadd.f32 %v468, %v913
        %v915 = vpop.f32.mrb[0].mxu0
        %v916 = vadd.f32 %v464, %v915
        %v917 = vpop.f32.mrb[0].mxu0
        %v918 = vadd.f32 %v468, %v917
        %919 = vdwg.mxu0
        %920 = vmatprep.subr.bf16.mxu0 0
        %921 = vmatpush1.bf16.msra.mxu0 %v519
        %922 = vmatprep.subr.bf16.mxu0 0
        %923 = vmatpush1.bf16.msra.mxu0 %v579
        %924 = vmatprep.subr.bf16.mxu0 0
        %925 = vmatpush1.bf16.msra.mxu0 0
        %926 = vmatprep.subr.bf16.mxu0 0
        %927 = vmatpush1.bf16.msra.mxu0 0
        %928 = vmatprep.subr.bf16.mxu0 0
        %929 = vmatpush1.bf16.msra.mxu0 0
        %930 = vmatprep.subr.bf16.mxu0 0
        %931 = vmatpush1.bf16.msra.mxu0 0
        %932 = vmatprep.subr.bf16.mxu0 0
        %933 = vmatpush1.bf16.msra.mxu0 0
        %934 = vmatprep.subr.bf16.mxu0 0
        %935 = vmatpush1.bf16.msra.mxu0 0
        %936 = vmatprep.subr.bf16.mxu0 0
        %937 = vmatpush1.bf16.msra.mxu0 0
        %938 = vmatprep.subr.bf16.mxu0 0
        %939 = vmatpush1.bf16.msra.mxu0 0
        %940 = vmatprep.subr.bf16.mxu0 0
        %941 = vmatpush1.bf16.msra.mxu0 0
        %942 = vmatprep.subr.bf16.mxu0 0
        %943 = vmatpush1.bf16.msra.mxu0 0
        %944 = vmatprep.subr.bf16.mxu0 0
        %945 = vmatpush1.bf16.msra.mxu0 0
        %946 = vmatprep.subr.bf16.mxu0 0
        %947 = vmatpush1.bf16.msra.mxu0 0
        %948 = vmatprep.subr.bf16.mxu0 0
        %949 = vmatpush1.bf16.msra.mxu0 0
        %950 = vmatprep.subr.bf16.mxu0 0
        %951 = vmatpush1.bf16.msra.mxu0 0
        %952 = vmatprep.mubr.bf16.mxu0 0
        %953 = vmatmul.mubr.bf16.gmra.mrb[0].mxu0 %v536
        %v954 = vpop.f32.mrb[0].mxu0
        %v955 = vadd.f32 %v472, %v954
        %v956 = vpop.f32.mrb[0].mxu0
        %v957 = vpop.f32.mrb[0].mxu0
        %v958 = vadd.f32 %v472, %v957
        %v959 = vpop.f32.mrb[0].mxu0
        %960 = vmatprep.mubr.bf16.mxu0 0
        %961 = vmatmul.mubr.bf16.gmra.mrb[0].mxu0 %v539
        %v962 = vpop.f32.mrb[0].mxu0
        %v963 = vadd.f32 %v472, %v962
        %v964 = vpop.f32.mrb[0].mxu0
        %v965 = vpop.f32.mrb[0].mxu0
        %v966 = vadd.f32 %v472, %v965
        %v967 = vpop.f32.mrb[0].mxu0
        %968 = vmatprep.mubr.bf16.mxu0 0
        %969 = vmatmul.mubr.bf16.gmra.mrb[0].mxu0 %v542
        %v970 = vpop.f32.mrb[0].mxu0
        %v971 = vadd.f32 %v472, %v970
        %v972 = vpop.f32.mrb[0].mxu0
        %v973 = vpop.f32.mrb[0].mxu0
        %v974 = vadd.f32 %v472, %v973
        %v975 = vpop.f32.mrb[0].mxu0
        %976 = vmatprep.mubr.bf16.mxu0 0
        %977 = vmatmul.mubr.bf16.gmra.mrb[0].mxu0 %v545
        %v978 = vpop.f32.mrb[0].mxu0
        %v979 = vadd.f32 %v472, %v978
        %v980 = vpop.f32.mrb[0].mxu0
        %v981 = vpop.f32.mrb[0].mxu0
        %v982 = vadd.f32 %v472, %v981
        %v983 = vpop.f32.mrb[0].mxu0
        %984 = vmatprep.mubr.bf16.mxu0 0
        %985 = vmatmul.mubr.bf16.gmra.mrb[0].mxu0 %v548
        %v986 = vpop.f32.mrb[0].mxu0
        %v987 = vadd.f32 %v472, %v986
        %v988 = vpop.f32.mrb[0].mxu0
        %v989 = vpop.f32.mrb[0].mxu0
        %v990 = vadd.f32 %v472, %v989
        %v991 = vpop.f32.mrb[0].mxu0
        %992 = vmatprep.mubr.bf16.mxu0 0
        %993 = vmatmul.mubr.bf16.gmra.mrb[0].mxu0 %v551
        %v994 = vpop.f32.mrb[0].mxu0
        %v995 = vadd.f32 %v472, %v994
        %v996 = vpop.f32.mrb[0].mxu0
        %v997 = vpop.f32.mrb[0].mxu0
        %v998 = vadd.f32 %v472, %v997
        %v999 = vpop.f32.mrb[0].mxu0
        %1000 = vmatprep.mubr.bf16.mxu0 0
        %1001 = vmatmul.mubr.bf16.gmra.mrb[0].mxu0 %v554
        %v1002 = vpop.f32.mrb[0].mxu0
        %v1003 = vadd.f32 %v472, %v1002
        %v1004 = vpop.f32.mrb[0].mxu0
        %v1005 = vpop.f32.mrb[0].mxu0
        %v1006 = vadd.f32 %v472, %v1005
        %v1007 = vpop.f32.mrb[0].mxu0
        %1008 = vmatprep.mubr.bf16.mxu0 0
        %1009 = vmatmul.mubr.bf16.gmra.mrb[0].mxu0 %v557
        %v1010 = vpop.f32.mrb[0].mxu0
        %v1011 = vadd.f32 %v472, %v1010
        %v1012 = vpop.f32.mrb[0].mxu0
        %v1013 = vpop.f32.mrb[0].mxu0
        %v1014 = vadd.f32 %v472, %v1013
        %v1015 = vpop.f32.mrb[0].mxu0
        %1016 = vdwg.mxu0
        %v1017 = vmax.f32 %v616, 0.0
        %v1018 = vmax.f32 %v618, 0.0
        %v1019 = vmax.f32 %v729, 0.0
        %v1020 = vmax.f32 %v731, 0.0
        %v1021 = vmax.f32 %v842, 0.0
        %v1022 = vmax.f32 %v844, 0.0
        %v1023 = vmax.f32 %v955, 0.0
        %v1024 = vmax.f32 %v620, 0.0
        %v1025 = vmax.f32 %v622, 0.0
        %v1026 = vmax.f32 %v733, 0.0
        %v1027 = vmax.f32 %v735, 0.0
        %v1028 = vmax.f32 %v846, 0.0
        %v1029 = vmax.f32 %v848, 0.0
        %v1030 = vmax.f32 %v958, 0.0
        %v1031 = vmax.f32 %v626, 0.0
        %v1032 = vmax.f32 %v628, 0.0
        %v1033 = vmax.f32 %v739, 0.0
        %v1034 = vmax.f32 %v741, 0.0
        %v1035 = vmax.f32 %v852, 0.0
        %v1036 = vmax.f32 %v854, 0.0
        %v1037 = vmax.f32 %v963, 0.0
        %v1038 = vmax.f32 %v630, 0.0
        %v1039 = vmax.f32 %v632, 0.0
        %v1040 = vmax.f32 %v743, 0.0
        %v1041 = vmax.f32 %v745, 0.0
        %v1042 = vmax.f32 %v856, 0.0
        %v1043 = vmax.f32 %v858, 0.0
        %v1044 = vmax.f32 %v966, 0.0
        %v1045 = vmax.f32 %v636, 0.0
        %v1046 = vmax.f32 %v638, 0.0
        %v1047 = vmax.f32 %v749, 0.0
        %v1048 = vmax.f32 %v751, 0.0
        %v1049 = vmax.f32 %v862, 0.0
        %v1050 = vmax.f32 %v864, 0.0
        %v1051 = vmax.f32 %v971, 0.0
        %v1052 = vmax.f32 %v640, 0.0
        %v1053 = vmax.f32 %v642, 0.0
        %v1054 = vmax.f32 %v753, 0.0
        %v1055 = vmax.f32 %v755, 0.0
        %v1056 = vmax.f32 %v866, 0.0
        %v1057 = vmax.f32 %v868, 0.0
        %v1058 = vmax.f32 %v974, 0.0
        %v1059 = vmax.f32 %v646, 0.0
        %v1060 = vmax.f32 %v648, 0.0
        %v1061 = vmax.f32 %v759, 0.0
        %v1062 = vmax.f32 %v761, 0.0
        %v1063 = vmax.f32 %v872, 0.0
        %v1064 = vmax.f32 %v874, 0.0
        %v1065 = vmax.f32 %v979, 0.0
        %v1066 = vmax.f32 %v650, 0.0
        %v1067 = vmax.f32 %v652, 0.0
        %v1068 = vmax.f32 %v763, 0.0
        %v1069 = vmax.f32 %v765, 0.0
        %v1070 = vmax.f32 %v876, 0.0
        %v1071 = vmax.f32 %v878, 0.0
        %v1072 = vmax.f32 %v982, 0.0
        %v1073 = vmax.f32 %v656, 0.0
        %v1074 = vmax.f32 %v658, 0.0
        %v1075 = vmax.f32 %v769, 0.0
        %v1076 = vmax.f32 %v771, 0.0
        %v1077 = vmax.f32 %v882, 0.0
        %v1078 = vmax.f32 %v884, 0.0
        %v1079 = vmax.f32 %v987, 0.0
        %v1080 = vmax.f32 %v660, 0.0
        %v1081 = vmax.f32 %v662, 0.0
        %v1082 = vmax.f32 %v773, 0.0
        %v1083 = vmax.f32 %v775, 0.0
        %v1084 = vmax.f32 %v886, 0.0
        %v1085 = vmax.f32 %v888, 0.0
        %v1086 = vmax.f32 %v990, 0.0
        %v1087 = vmax.f32 %v666, 0.0
        %v1088 = vmax.f32 %v668, 0.0
        %v1089 = vmax.f32 %v779, 0.0
        %v1090 = vmax.f32 %v781, 0.0
        %v1091 = vmax.f32 %v892, 0.0
        %v1092 = vmax.f32 %v894, 0.0
        %v1093 = vmax.f32 %v995, 0.0
        %v1094 = vmax.f32 %v670, 0.0
        %v1095 = vmax.f32 %v672, 0.0
        %v1096 = vmax.f32 %v783, 0.0
        %v1097 = vmax.f32 %v785, 0.0
        %v1098 = vmax.f32 %v896, 0.0
        %v1099 = vmax.f32 %v898, 0.0
        %v1100 = vmax.f32 %v998, 0.0
        %v1101 = vmax.f32 %v676, 0.0
        %v1102 = vmax.f32 %v678, 0.0
        %v1103 = vmax.f32 %v789, 0.0
        %v1104 = vmax.f32 %v791, 0.0
        %v1105 = vmax.f32 %v902, 0.0
        %v1106 = vmax.f32 %v904, 0.0
        %v1107 = vmax.f32 %v1003, 0.0
        %v1108 = vmax.f32 %v680, 0.0
        %v1109 = vmax.f32 %v682, 0.0
        %v1110 = vmax.f32 %v793, 0.0
        %v1111 = vmax.f32 %v795, 0.0
        %v1112 = vmax.f32 %v906, 0.0
        %v1113 = vmax.f32 %v908, 0.0
        %v1114 = vmax.f32 %v1006, 0.0
        %v1115 = vmax.f32 %v686, 0.0
        %v1116 = vmax.f32 %v688, 0.0
        %v1117 = vmax.f32 %v799, 0.0
        %v1118 = vmax.f32 %v801, 0.0
        %v1119 = vmax.f32 %v912, 0.0
        %v1120 = vmax.f32 %v914, 0.0
        %v1121 = vmax.f32 %v1011, 0.0
        %v1122 = vmax.f32 %v690, 0.0
        %v1123 = vmax.f32 %v692, 0.0
        %v1124 = vmax.f32 %v803, 0.0
        %v1125 = vmax.f32 %v805, 0.0
        %v1126 = vmax.f32 %v916, 0.0
        %v1127 = vmax.f32 %v918, 0.0
        %v1128 = vmax.f32 %v1014, 0.0
        %v1129 = vpack.c.bf16 %v1024, %v1017
        %v1130 = vpack.c.bf16 %v1025, %v1018
        %v1131 = vpack.c.bf16 %v1026, %v1019
        %v1132 = vpack.c.bf16 %v1027, %v1020
        %v1133 = vpack.c.bf16 %v1028, %v1021
        %v1134 = vpack.c.bf16 %v1029, %v1022
        %v1135 = vpack.c.bf16 %v1030, %v1023
        %v1136 = vpack.c.bf16 %v1038, %v1031
        %v1137 = vpack.c.bf16 %v1039, %v1032
        %v1138 = vpack.c.bf16 %v1040, %v1033
        %v1139 = vpack.c.bf16 %v1041, %v1034
        %v1140 = vpack.c.bf16 %v1042, %v1035
        %v1141 = vpack.c.bf16 %v1043, %v1036
        %v1142 = vpack.c.bf16 %v1044, %v1037
        %v1143 = vpack.c.bf16 %v1052, %v1045
        %v1144 = vpack.c.bf16 %v1053, %v1046
        %v1145 = vpack.c.bf16 %v1054, %v1047
        %v1146 = vpack.c.bf16 %v1055, %v1048
        %v1147 = vpack.c.bf16 %v1056, %v1049
        %v1148 = vpack.c.bf16 %v1057, %v1050
        %v1149 = vpack.c.bf16 %v1058, %v1051
        %v1150 = vpack.c.bf16 %v1066, %v1059
        %v1151 = vpack.c.bf16 %v1067, %v1060
        %v1152 = vpack.c.bf16 %v1068, %v1061
        %v1153 = vpack.c.bf16 %v1069, %v1062
        %v1154 = vpack.c.bf16 %v1070, %v1063
        %v1155 = vpack.c.bf16 %v1071, %v1064
        %v1156 = vpack.c.bf16 %v1072, %v1065
        %v1157 = vpack.c.bf16 %v1080, %v1073
        %v1158 = vpack.c.bf16 %v1081, %v1074
        %v1159 = vpack.c.bf16 %v1082, %v1075
        %v1160 = vpack.c.bf16 %v1083, %v1076
        %v1161 = vpack.c.bf16 %v1084, %v1077
        %v1162 = vpack.c.bf16 %v1085, %v1078
        %v1163 = vpack.c.bf16 %v1086, %v1079
        %v1164 = vpack.c.bf16 %v1094, %v1087
        %v1165 = vpack.c.bf16 %v1095, %v1088
        %v1166 = vpack.c.bf16 %v1096, %v1089
        %v1167 = vpack.c.bf16 %v1097, %v1090
        %v1168 = vpack.c.bf16 %v1098, %v1091
        %v1169 = vpack.c.bf16 %v1099, %v1092
        %v1170 = vpack.c.bf16 %v1100, %v1093
        %v1171 = vpack.c.bf16 %v1108, %v1101
        %v1172 = vpack.c.bf16 %v1109, %v1102
        %v1173 = vpack.c.bf16 %v1110, %v1103
        %v1174 = vpack.c.bf16 %v1111, %v1104
        %v1175 = vpack.c.bf16 %v1112, %v1105
        %v1176 = vpack.c.bf16 %v1113, %v1106
        %v1177 = vpack.c.bf16 %v1114, %v1107
        %v1178 = vpack.c.bf16 %v1122, %v1115
        %v1179 = vpack.c.bf16 %v1123, %v1116
        %v1180 = vpack.c.bf16 %v1124, %v1117
        %v1181 = vpack.c.bf16 %v1125, %v1118
        %v1182 = vpack.c.bf16 %v1126, %v1119
        %v1183 = vpack.c.bf16 %v1127, %v1120
        %v1184 = vpack.c.bf16 %v1128, %v1121
        %v1185 = vld [vmem:[%s327] sm:$0xff]
        %v1186 = vld [vmem:[%s327 + $0x8] sm:$0xff]
        %v1187 = vld [vmem:[%s327 + $0x10] sm:$0xf]
        %v1188 = vld [vmem:[%s327 + $0x14] sm:$0xff]
        %v1189 = vld [vmem:[%s327 + $0x1c] sm:$0xff]
        %v1190 = vld [vmem:[%s327 + $0x24] sm:$0xf]
        %v1191 = vld [vmem:[%s327 + $0x28] sm:$0xff]
        %v1192 = vld [vmem:[%s327 + $0x30] sm:$0xff]
        %v1193 = vld [vmem:[%s327 + $0x38] sm:$0xf]
        %v1194 = vld [vmem:[%s327 + $0x3c] sm:$0xff]
        %v1195 = vld [vmem:[%s327 + $0x44] sm:$0xff]
        %v1196 = vld [vmem:[%s327 + $0x4c] sm:$0xf]
        %v1197 = vld [vmem:[%s327 + $0x50] sm:$0xff]
        %v1198 = vld [vmem:[%s327 + $0x58] sm:$0xff]
        %v1199 = vld [vmem:[%s327 + $0x60] sm:$0xf]
        %v1200 = vld [vmem:[%s327 + $0x64] sm:$0xff]
        %v1201 = vld [vmem:[%s327 + $0x6c] sm:$0xff]
        %v1202 = vld [vmem:[%s327 + $0x74] sm:$0xf]
        %v1203 = vld [vmem:[%s327 + $0x78] sm:$0xff]
        %v1204 = vld [vmem:[%s327 + $0x80] sm:$0xff]
        %v1205 = vld [vmem:[%s327 + $0x88] sm:$0xf]
        %v1206 = vld [vmem:[%s327 + $0x8c] sm:$0xff]
        %v1207 = vld [vmem:[%s327 + $0x94] sm:$0xff]
        %v1208 = vld [vmem:[%s327 + $0x9c] sm:$0xf]
        %v1209 = vld [vmem:[%s327 + $0xa0] sm:$0xff]
        %v1210 = vld [vmem:[%s327 + $0xa8] sm:$0xff]
        %v1211 = vld [vmem:[%s327 + $0xb0] sm:$0xf]
        %v1212 = vld [vmem:[%s327 + $0xb4] sm:$0xff]
        %v1213 = vld [vmem:[%s327 + $0xbc] sm:$0xff]
        %v1214 = vld [vmem:[%s327 + $0xc4] sm:$0xf]
        %v1215 = vld [vmem:[%s327 + $0xc8] sm:$0xff]
        %v1216 = vld [vmem:[%s327 + $0xd0] sm:$0xff]
        %v1217 = vld [vmem:[%s327 + $0xd8] sm:$0xf]
        %v1218 = vld [vmem:[%s327 + $0xdc] sm:$0xff]
        %v1219 = vld [vmem:[%s327 + $0xe4] sm:$0xff]
        %v1220 = vld [vmem:[%s327 + $0xec] sm:$0xf]
        %v1221 = vld [vmem:[%s327 + $0xf0] sm:$0xff]
        %v1222 = vld [vmem:[%s327 + $0xf8] sm:$0xff]
        %v1223 = vld [vmem:[%s327 + $0x100] sm:$0xf]
        %v1224 = vld [vmem:[%s327 + $0x104] sm:$0xff]
        %v1225 = vld [vmem:[%s327 + $0x10c] sm:$0xff]
        %v1226 = vld [vmem:[%s327 + $0x114] sm:$0xf]
        %v1227 = vld [vmem:[%s327 + $0x118] sm:$0xff]
        %v1228 = vld [vmem:[%s327 + $0x120] sm:$0xff]
        %v1229 = vld [vmem:[%s327 + $0x128] sm:$0xf]
        %v1230 = vld [vmem:[%s327 + $0x12c] sm:$0xff]
        %v1231 = vld [vmem:[%s327 + $0x134] sm:$0xff]
        %v1232 = vld [vmem:[%s327 + $0x13c] sm:$0xf]
        %v1233 = vld [vmem:[%s327 + $0x140] sm:$0xff]
        %v1234 = vld [vmem:[%s327 + $0x148] sm:$0xff]
        %v1235 = vld [vmem:[%s327 + $0x150] sm:$0xf]
        %v1236 = vld [vmem:[%s327 + $0x154] sm:$0xff]
        %v1237 = vld [vmem:[%s327 + $0x15c] sm:$0xff]
        %v1238 = vld [vmem:[%s327 + $0x164] sm:$0xf]
        %v1239 = vld [vmem:[%s327 + $0x168] sm:$0xff]
        %v1240 = vld [vmem:[%s327 + $0x170] sm:$0xff]
        %v1241 = vld [vmem:[%s327 + $0x178] sm:$0xf]
        %v1242 = vld [vmem:[%s327 + $0x17c] sm:$0xff]
        %v1243 = vld [vmem:[%s327 + $0x184] sm:$0xff]
        %v1244 = vld [vmem:[%s327 + $0x18c] sm:$0xf]
        %v1245 = vld [vmem:[%s327 + $0x190] sm:$0xff]
        %v1246 = vld [vmem:[%s327 + $0x198] sm:$0xff]
        %v1247 = vld [vmem:[%s327 + $0x1a0] sm:$0xf]
        %v1248 = vld [vmem:[%s327 + $0x1a4] sm:$0xff]
        %v1249 = vld [vmem:[%s327 + $0x1ac] sm:$0xff]
        %v1250 = vld [vmem:[%s327 + $0x1b4] sm:$0xf]
        %v1251 = vld [vmem:[%s327 + $0x1b8] sm:$0xff]
        %v1252 = vld [vmem:[%s327 + $0x1c0] sm:$0xff]
        %v1253 = vld [vmem:[%s327 + $0x1c8] sm:$0xf]
        %v1254 = vld [vmem:[%s327 + $0x1cc] sm:$0xff]
        %v1255 = vld [vmem:[%s327 + $0x1d4] sm:$0xff]
        %v1256 = vld [vmem:[%s327 + $0x1dc] sm:$0xf]
        %v1257 = vld [vmem:[%s327 + $0x1e0] sm:$0xff]
        %v1258 = vld [vmem:[%s327 + $0x1e8] sm:$0xff]
        %v1259 = vld [vmem:[%s327 + $0x1f0] sm:$0xf]
        %v1260 = vld [vmem:[%s327 + $0x1f4] sm:$0xff]
        %v1261 = vld [vmem:[%s327 + $0x1fc] sm:$0xff]
        %v1262 = vld [vmem:[%s327 + $0x204] sm:$0xf]
        %v1263 = vld [vmem:[%s327 + $0x208] sm:$0xff]
        %v1264 = vld [vmem:[%s327 + $0x210] sm:$0xff]
        %v1265 = vld [vmem:[%s327 + $0x218] sm:$0xf]
        %v1266 = vld [vmem:[%s327 + $0x21c] sm:$0xff]
        %v1267 = vld [vmem:[%s327 + $0x224] sm:$0xff]
        %v1268 = vld [vmem:[%s327 + $0x22c] sm:$0xf]
        %v1269 = vld [vmem:[%s327 + $0x230] sm:$0xff]
        %v1270 = vld [vmem:[%s327 + $0x238] sm:$0xff]
        %v1271 = vld [vmem:[%s327 + $0x240] sm:$0xf]
        %v1272 = vld [vmem:[%s327 + $0x244] sm:$0xff]
        %v1273 = vld [vmem:[%s327 + $0x24c] sm:$0xff]
        %v1274 = vld [vmem:[%s327 + $0x254] sm:$0xf]
        %v1275 = vld [vmem:[%s327 + $0x258] sm:$0xff]
        %v1276 = vld [vmem:[%s327 + $0x260] sm:$0xff]
        %v1277 = vld [vmem:[%s327 + $0x268] sm:$0xf]
        %v1278 = vld [vmem:[%s327 + $0x26c] sm:$0xff]
        %v1279 = vld [vmem:[%s327 + $0x274] sm:$0xff]
        %v1280 = vld [vmem:[%s327 + $0x27c] sm:$0xf]
        %v1281 = vld [vmem:[%s327 + $0x280] sm:$0xff]
        %v1282 = vld [vmem:[%s327 + $0x288] sm:$0xff]
        %v1283 = vld [vmem:[%s327 + $0x290] sm:$0xf]
        %v1284 = vld [vmem:[%s327 + $0x294] sm:$0xff]
        %v1285 = vld [vmem:[%s327 + $0x29c] sm:$0xff]
        %v1286 = vld [vmem:[%s327 + $0x2a4] sm:$0xf]
        %v1287 = vld [vmem:[%s327 + $0x2a8] sm:$0xff]
        %v1288 = vld [vmem:[%s327 + $0x2b0] sm:$0xff]
        %v1289 = vld [vmem:[%s327 + $0x2b8] sm:$0xf]
        %v1290 = vld [vmem:[%s327 + $0x2bc] sm:$0xff]
        %v1291 = vld [vmem:[%s327 + $0x2c4] sm:$0xff]
        %v1292 = vld [vmem:[%s327 + $0x2cc] sm:$0xf]
        %v1293 = vld [vmem:[%s327 + $0x2d0] sm:$0xff]
        %v1294 = vld [vmem:[%s327 + $0x2d8] sm:$0xff]
        %v1295 = vld [vmem:[%s327 + $0x2e0] sm:$0xf]
        %v1296 = vld [vmem:[%s327 + $0x2e4] sm:$0xff]
        %v1297 = vld [vmem:[%s327 + $0x2ec] sm:$0xff]
        %v1298 = vld [vmem:[%s327 + $0x2f4] sm:$0xf]
        %v1299 = vld [vmem:[%s327 + $0x2f8] sm:$0xff]
        %v1300 = vld [vmem:[%s327 + $0x300] sm:$0xff]
        %v1301 = vld [vmem:[%s327 + $0x308] sm:$0xf]
        %v1302 = vld [vmem:[%s327 + $0x30c] sm:$0xff]
        %v1303 = vld [vmem:[%s327 + $0x314] sm:$0xff]
        %v1304 = vld [vmem:[%s327 + $0x31c] sm:$0xf]
        %v1305 = vld [vmem:[%s327 + $0x320] sm:$0xff]
        %v1306 = vld [vmem:[%s327 + $0x328] sm:$0xff]
        %v1307 = vld [vmem:[%s327 + $0x330] sm:$0xf]
        %v1308 = vld [vmem:[%s327 + $0x334] sm:$0xff]
        %v1309 = vld [vmem:[%s327 + $0x33c] sm:$0xff]
        %v1310 = vld [vmem:[%s327 + $0x344] sm:$0xf]
        %v1311 = vld [vmem:[%s327 + $0x348] sm:$0xff]
        %v1312 = vld [vmem:[%s327 + $0x350] sm:$0xff]
        %v1313 = vld [vmem:[%s327 + $0x358] sm:$0xf]
        %v1314 = vld [vmem:[%s327 + $0x35c] sm:$0xff]
        %v1315 = vld [vmem:[%s327 + $0x364] sm:$0xff]
        %v1316 = vld [vmem:[%s327 + $0x36c] sm:$0xf]
        %v1317 = vld [vmem:[%s327 + $0x370] sm:$0xff]
        %v1318 = vld [vmem:[%s327 + $0x378] sm:$0xff]
        %v1319 = vld [vmem:[%s327 + $0x380] sm:$0xf]
        %v1320 = vld [vmem:[%s327 + $0x384] sm:$0xff]
        %v1321 = vld [vmem:[%s327 + $0x38c] sm:$0xff]
        %v1322 = vld [vmem:[%s327 + $0x394] sm:$0xf]
        %v1323 = vld [vmem:[%s327 + $0x398] sm:$0xff]
        %v1324 = vld [vmem:[%s327 + $0x3a0] sm:$0xff]
        %v1325 = vld [vmem:[%s327 + $0x3a8] sm:$0xf]
        %v1326 = vld [vmem:[%s327 + $0x3ac] sm:$0xff]
        %v1327 = vld [vmem:[%s327 + $0x3b4] sm:$0xff]
        %v1328 = vld [vmem:[%s327 + $0x3bc] sm:$0xf]
        %v1329 = vld [vmem:[%s327 + $0x3c0] sm:$0xff]
        %v1330 = vld [vmem:[%s327 + $0x3c8] sm:$0xff]
        %v1331 = vld [vmem:[%s327 + $0x3d0] sm:$0xf]
        %v1332 = vld [vmem:[%s327 + $0x3d4] sm:$0xff]
        %v1333 = vld [vmem:[%s327 + $0x3dc] sm:$0xff]
        %v1334 = vld [vmem:[%s327 + $0x3e4] sm:$0xf]
        %v1335 = vld [vmem:[%s327 + $0x3e8] sm:$0xff]
        %v1336 = vld [vmem:[%s327 + $0x3f0] sm:$0xff]
        %v1337 = vld [vmem:[%s327 + $0x3f8] sm:$0xf]
        %v1338 = vld [vmem:[%s327 + $0x3fc] sm:$0xff]
        %v1339 = vld [vmem:[%s327 + $0x404] sm:$0xff]
        %v1340 = vld [vmem:[%s327 + $0x40c] sm:$0xf]
        %v1341 = vld [vmem:[%s327 + $0x410] sm:$0xff]
        %v1342 = vld [vmem:[%s327 + $0x418] sm:$0xff]
        %v1343 = vld [vmem:[%s327 + $0x420] sm:$0xf]
        %v1344 = vld [vmem:[%s327 + $0x424] sm:$0xff]
        %v1345 = vld [vmem:[%s327 + $0x42c] sm:$0xff]
        %v1346 = vld [vmem:[%s327 + $0x434] sm:$0xf]
        %v1347 = vld [vmem:[%s327 + $0x438] sm:$0xff]
        %v1348 = vld [vmem:[%s327 + $0x440] sm:$0xff]
        %v1349 = vld [vmem:[%s327 + $0x448] sm:$0xf]
        %v1350 = vld [vmem:[%s327 + $0x44c] sm:$0xff]
        %v1351 = vld [vmem:[%s327 + $0x454] sm:$0xff]
        %v1352 = vld [vmem:[%s327 + $0x45c] sm:$0xf]
        %v1353 = vld [vmem:[%s327 + $0x460] sm:$0xff]
        %v1354 = vld [vmem:[%s327 + $0x468] sm:$0xff]
        %v1355 = vld [vmem:[%s327 + $0x470] sm:$0xf]
        %v1356 = vld [vmem:[%s327 + $0x474] sm:$0xff]
        %v1357 = vld [vmem:[%s327 + $0x47c] sm:$0xff]
        %v1358 = vld [vmem:[%s327 + $0x484] sm:$0xf]
        %v1359 = vld [vmem:[%s327 + $0x488] sm:$0xff]
        %v1360 = vld [vmem:[%s327 + $0x490] sm:$0xff]
        %v1361 = vld [vmem:[%s327 + $0x498] sm:$0xf]
        %v1362 = vld [vmem:[%s327 + $0x49c] sm:$0xff]
        %v1363 = vld [vmem:[%s327 + $0x4a4] sm:$0xff]
        %v1364 = vld [vmem:[%s327 + $0x4ac] sm:$0xf]
        %v1365 = vld [vmem:[%s327 + $0x4b0] sm:$0xff]
        %v1366 = vld [vmem:[%s327 + $0x4b8] sm:$0xff]
        %v1367 = vld [vmem:[%s327 + $0x4c0] sm:$0xf]
        %v1368 = vld [vmem:[%s327 + $0x4c4] sm:$0xff]
        %v1369 = vld [vmem:[%s327 + $0x4cc] sm:$0xff]
        %v1370 = vld [vmem:[%s327 + $0x4d4] sm:$0xf]
        %v1371 = vld [vmem:[%s327 + $0x4d8] sm:$0xff]
        %v1372 = vld [vmem:[%s327 + $0x4e0] sm:$0xff]
        %v1373 = vld [vmem:[%s327 + $0x4e8] sm:$0xf]
        %v1374 = vld [vmem:[%s327 + $0x4ec] sm:$0xff]
        %v1375 = vld [vmem:[%s327 + $0x4f4] sm:$0xff]
        %v1376 = vld [vmem:[%s327 + $0x4fc] sm:$0xf]
        %v1377 = vld [vmem:[%s327 + $0x500] sm:$0xff]
        %v1378 = vld [vmem:[%s327 + $0x508] sm:$0xff]
        %v1379 = vld [vmem:[%s327 + $0x510] sm:$0xf]
        %v1380 = vld [vmem:[%s327 + $0x514] sm:$0xff]
        %v1381 = vld [vmem:[%s327 + $0x51c] sm:$0xff]
        %v1382 = vld [vmem:[%s327 + $0x524] sm:$0xf]
        %v1383 = vld [vmem:[%s327 + $0x528] sm:$0xff]
        %v1384 = vld [vmem:[%s327 + $0x530] sm:$0xff]
        %v1385 = vld [vmem:[%s327 + $0x538] sm:$0xf]
        %v1386 = vld [vmem:[%s327 + $0x53c] sm:$0xff]
        %v1387 = vld [vmem:[%s327 + $0x544] sm:$0xff]
        %v1388 = vld [vmem:[%s327 + $0x54c] sm:$0xf]
        %v1389 = vld [vmem:[%s327 + $0x550] sm:$0xff]
        %v1390 = vld [vmem:[%s327 + $0x558] sm:$0xff]
        %v1391 = vld [vmem:[%s327 + $0x560] sm:$0xf]
        %v1392 = vld [vmem:[%s327 + $0x564] sm:$0xff]
        %v1393 = vld [vmem:[%s327 + $0x56c] sm:$0xff]
        %v1394 = vld [vmem:[%s327 + $0x574] sm:$0xf]
        %v1395 = vld [vmem:[%s327 + $0x578] sm:$0xff]
        %v1396 = vld [vmem:[%s327 + $0x580] sm:$0xff]
        %v1397 = vld [vmem:[%s327 + $0x588] sm:$0xf]
        %v1398 = vld [vmem:[%s327 + $0x58c] sm:$0xff]
        %v1399 = vld [vmem:[%s327 + $0x594] sm:$0xff]
        %v1400 = vld [vmem:[%s327 + $0x59c] sm:$0xf]
        %v1401 = vld [vmem:[%s327 + $0x5a0] sm:$0xff]
        %v1402 = vld [vmem:[%s327 + $0x5a8] sm:$0xff]
        %v1403 = vld [vmem:[%s327 + $0x5b0] sm:$0xf]
        %v1404 = vld [vmem:[%s327 + $0x5b4] sm:$0xff]
        %v1405 = vld [vmem:[%s327 + $0x5bc] sm:$0xff]
        %v1406 = vld [vmem:[%s327 + $0x5c4] sm:$0xf]
        %v1407 = vld [vmem:[%s327 + $0x5c8] sm:$0xff]
        %v1408 = vld [vmem:[%s327 + $0x5d0] sm:$0xff]
        %v1409 = vld [vmem:[%s327 + $0x5d8] sm:$0xf]
        %v1410 = vld [vmem:[%s327 + $0x5dc] sm:$0xff]
        %v1411 = vld [vmem:[%s327 + $0x5e4] sm:$0xff]
        %v1412 = vld [vmem:[%s327 + $0x5ec] sm:$0xf]
        %v1413 = vld [vmem:[%s327 + $0x5f0] sm:$0xff]
        %v1414 = vld [vmem:[%s327 + $0x5f8] sm:$0xff]
        %v1415 = vld [vmem:[%s327 + $0x600] sm:$0xf]
        %v1416 = vld [vmem:[%s327 + $0x604] sm:$0xff]
        %v1417 = vld [vmem:[%s327 + $0x60c] sm:$0xff]
        %v1418 = vld [vmem:[%s327 + $0x614] sm:$0xf]
        %v1419 = vld [vmem:[%s327 + $0x618] sm:$0xff]
        %v1420 = vld [vmem:[%s327 + $0x620] sm:$0xff]
        %v1421 = vld [vmem:[%s327 + $0x628] sm:$0xf]
        %v1422 = vld [vmem:[%s327 + $0x62c] sm:$0xff]
        %v1423 = vld [vmem:[%s327 + $0x634] sm:$0xff]
        %v1424 = vld [vmem:[%s327 + $0x63c] sm:$0xf]
        %v1425 = vld [vmem:[%s327 + $0x640] sm:$0xff]
        %v1426 = vld [vmem:[%s327 + $0x648] sm:$0xff]
        %v1427 = vld [vmem:[%s327 + $0x650] sm:$0xf]
        %v1428 = vld [vmem:[%s327 + $0x654] sm:$0xff]
        %v1429 = vld [vmem:[%s327 + $0x65c] sm:$0xff]
        %v1430 = vld [vmem:[%s327 + $0x664] sm:$0xf]
        %v1431 = vld [vmem:[%s327 + $0x668] sm:$0xff]
        %v1432 = vld [vmem:[%s327 + $0x670] sm:$0xff]
        %v1433 = vld [vmem:[%s327 + $0x678] sm:$0xf]
        %v1434 = vld [vmem:[%s327 + $0x67c] sm:$0xff]
        %v1435 = vld [vmem:[%s327 + $0x684] sm:$0xff]
        %v1436 = vld [vmem:[%s327 + $0x68c] sm:$0xf]
        %v1437 = vld [vmem:[%s327 + $0x690] sm:$0xff]
        %v1438 = vld [vmem:[%s327 + $0x698] sm:$0xff]
        %v1439 = vld [vmem:[%s327 + $0x6a0] sm:$0xf]
        %v1440 = vld [vmem:[%s327 + $0x6a4] sm:$0xff]
        %v1441 = vld [vmem:[%s327 + $0x6ac] sm:$0xff]
        %v1442 = vld [vmem:[%s327 + $0x6b4] sm:$0xf]
        %v1443 = vld [vmem:[%s327 + $0x6b8] sm:$0xff]
        %v1444 = vld [vmem:[%s327 + $0x6c0] sm:$0xff]
        %v1445 = vld [vmem:[%s327 + $0x6c8] sm:$0xf]
        %v1446 = vld [vmem:[%s327 + $0x6cc] sm:$0xff]
        %v1447 = vld [vmem:[%s327 + $0x6d4] sm:$0xff]
        %v1448 = vld [vmem:[%s327 + $0x6dc] sm:$0xf]
        %v1449 = vld [vmem:[%s327 + $0x6e0] sm:$0xff]
        %v1450 = vld [vmem:[%s327 + $0x6e8] sm:$0xff]
        %v1451 = vld [vmem:[%s327 + $0x6f0] sm:$0xf]
        %v1452 = vld [vmem:[%s327 + $0x6f4] sm:$0xff]
        %v1453 = vld [vmem:[%s327 + $0x6fc] sm:$0xff]
        %v1454 = vld [vmem:[%s327 + $0x704] sm:$0xf]
        %v1455 = vld [vmem:[%s327 + $0x708] sm:$0xff]
        %v1456 = vld [vmem:[%s327 + $0x710] sm:$0xff]
        %v1457 = vld [vmem:[%s327 + $0x718] sm:$0xf]
        %v1458 = vld [vmem:[%s327 + $0x71c] sm:$0xff]
        %v1459 = vld [vmem:[%s327 + $0x724] sm:$0xff]
        %v1460 = vld [vmem:[%s327 + $0x72c] sm:$0xf]
        %v1461 = vld [vmem:[%s327 + $0x730] sm:$0xff]
        %v1462 = vld [vmem:[%s327 + $0x738] sm:$0xff]
        %v1463 = vld [vmem:[%s327 + $0x740] sm:$0xf]
        %v1464 = vld [vmem:[%s327 + $0x744] sm:$0xff]
        %v1465 = vld [vmem:[%s327 + $0x74c] sm:$0xff]
        %v1466 = vld [vmem:[%s327 + $0x754] sm:$0xf]
        %v1467 = vld [vmem:[%s327 + $0x758] sm:$0xff]
        %v1468 = vld [vmem:[%s327 + $0x760] sm:$0xff]
        %v1469 = vld [vmem:[%s327 + $0x768] sm:$0xf]
        %v1470 = vld [vmem:[%s327 + $0x76c] sm:$0xff]
        %v1471 = vld [vmem:[%s327 + $0x774] sm:$0xff]
        %v1472 = vld [vmem:[%s327 + $0x77c] sm:$0xf]
        %v1473 = vld [vmem:[%s327 + $0x780] sm:$0xff]
        %v1474 = vld [vmem:[%s327 + $0x788] sm:$0xff]
        %v1475 = vld [vmem:[%s327 + $0x790] sm:$0xf]
        %v1476 = vld [vmem:[%s327 + $0x794] sm:$0xff]
        %v1477 = vld [vmem:[%s327 + $0x79c] sm:$0xff]
        %v1478 = vld [vmem:[%s327 + $0x7a4] sm:$0xf]
        %v1479 = vld [vmem:[%s327 + $0x7a8] sm:$0xff]
        %v1480 = vld [vmem:[%s327 + $0x7b0] sm:$0xff]
        %v1481 = vld [vmem:[%s327 + $0x7b8] sm:$0xf]
        %v1482 = vld [vmem:[%s327 + $0x7bc] sm:$0xff]
        %v1483 = vld [vmem:[%s327 + $0x7c4] sm:$0xff]
        %v1484 = vld [vmem:[%s327 + $0x7cc] sm:$0xf]
        %v1485 = vlaneseq
        %v1486 = vshrl.u32 %v1485, 7
        %v1487 = vsub.s32 2, %v1486
        %v1488 = vrot.slane %v418, %v1487
        %v1489 = vlaneseq
        %v1490 = vshrl.u32 %v1489, 7
        %v1491 = vsub.s32 2, %v1490
        %v1492 = vrot.slane %v419, %v1491
        %v1493 = vlaneseq
        %v1494 = vshrl.u32 %v1493, 7
        %v1495 = vsub.s32 2, %v1494
        %v1496 = vrot.slane %v420, %v1495
        %v1497 = vlaneseq
        %v1498 = vshrl.u32 %v1497, 7
        %v1499 = vsub.s32 2, %v1498
        %v1500 = vrot.slane %v421, %v1499
        %v1501 = vlaneseq
        %v1502 = vshrl.u32 %v1501, 7
        %v1503 = vsub.s32 2, %v1502
        %v1504 = vrot.slane %v422, %v1503
        %v1805 = vunpack.c.l.b16 %v1185
        %v1806 = vunpack.c.h.b16 %v1185
        %v1807 = vunpack.c.l.b16 %v1186
        %v1808 = vunpack.c.h.b16 %v1186
        %v1809 = vunpack.c.l.b16 %v1187
        %v1810 = vunpack.c.l.b16 %v1188
        %v1811 = vunpack.c.h.b16 %v1188
        %v1812 = vunpack.c.l.b16 %v1189
        %v1813 = vunpack.c.h.b16 %v1189
        %v1814 = vunpack.c.l.b16 %v1190
        %v1815 = vunpack.c.l.b16 %v1191
        %v1816 = vunpack.c.h.b16 %v1191
        %v1817 = vunpack.c.l.b16 %v1192
        %v1818 = vunpack.c.h.b16 %v1192
        %v1819 = vunpack.c.l.b16 %v1193
        %v1820 = vunpack.c.l.b16 %v1194
        %v1821 = vunpack.c.h.b16 %v1194
        %v1822 = vunpack.c.l.b16 %v1195
        %v1823 = vunpack.c.h.b16 %v1195
        %v1824 = vunpack.c.l.b16 %v1196
        %v1825 = vunpack.c.l.b16 %v1197
        %v1826 = vunpack.c.h.b16 %v1197
        %v1827 = vunpack.c.l.b16 %v1198
        %v1828 = vunpack.c.h.b16 %v1198
        %v1829 = vunpack.c.l.b16 %v1199
        %v1830 = vunpack.c.l.b16 %v1200
        %v1831 = vunpack.c.h.b16 %v1200
        %v1832 = vunpack.c.l.b16 %v1201
        %v1833 = vunpack.c.h.b16 %v1201
        %v1834 = vunpack.c.l.b16 %v1202
        %v1835 = vunpack.c.l.b16 %v1203
        %v1836 = vunpack.c.h.b16 %v1203
        %v1837 = vunpack.c.l.b16 %v1204
        %v1838 = vunpack.c.h.b16 %v1204
        %v1839 = vunpack.c.l.b16 %v1205
        %v1840 = vunpack.c.l.b16 %v1206
        %v1841 = vunpack.c.h.b16 %v1206
        %v1842 = vunpack.c.l.b16 %v1207
        %v1843 = vunpack.c.h.b16 %v1207
        %v1844 = vunpack.c.l.b16 %v1208
        %v1845 = vunpack.c.l.b16 %v1209
        %v1846 = vunpack.c.h.b16 %v1209
        %v1847 = vunpack.c.l.b16 %v1210
        %v1848 = vunpack.c.h.b16 %v1210
        %v1849 = vunpack.c.l.b16 %v1211
        %v1850 = vunpack.c.l.b16 %v1212
        %v1851 = vunpack.c.h.b16 %v1212
        %v1852 = vunpack.c.l.b16 %v1213
        %v1853 = vunpack.c.h.b16 %v1213
        %v1854 = vunpack.c.l.b16 %v1214
        %v1855 = vunpack.c.l.b16 %v1215
        %v1856 = vunpack.c.h.b16 %v1215
        %v1857 = vunpack.c.l.b16 %v1216
        %v1858 = vunpack.c.h.b16 %v1216
        %v1859 = vunpack.c.l.b16 %v1217
        %v1860 = vunpack.c.l.b16 %v1218
        %v1861 = vunpack.c.h.b16 %v1218
        %v1862 = vunpack.c.l.b16 %v1219
        %v1863 = vunpack.c.h.b16 %v1219
        %v1864 = vunpack.c.l.b16 %v1220
        %v1865 = vunpack.c.l.b16 %v1221
        %v1866 = vunpack.c.h.b16 %v1221
        %v1867 = vunpack.c.l.b16 %v1222
        %v1868 = vunpack.c.h.b16 %v1222
        %v1869 = vunpack.c.l.b16 %v1223
        %v1870 = vunpack.c.l.b16 %v1224
        %v1871 = vunpack.c.h.b16 %v1224
        %v1872 = vunpack.c.l.b16 %v1225
        %v1873 = vunpack.c.h.b16 %v1225
        %v1874 = vunpack.c.l.b16 %v1226
        %v1875 = vunpack.c.l.b16 %v1227
        %v1876 = vunpack.c.h.b16 %v1227
        %v1877 = vunpack.c.l.b16 %v1228
        %v1878 = vunpack.c.h.b16 %v1228
        %v1879 = vunpack.c.l.b16 %v1229
        %v1880 = vunpack.c.l.b16 %v1230
        %v1881 = vunpack.c.h.b16 %v1230
        %v1882 = vunpack.c.l.b16 %v1231
        %v1883 = vunpack.c.h.b16 %v1231
        %v1884 = vunpack.c.l.b16 %v1232
        %v1885 = vunpack.c.l.b16 %v1233
        %v1886 = vunpack.c.h.b16 %v1233
        %v1887 = vunpack.c.l.b16 %v1234
        %v1888 = vunpack.c.h.b16 %v1234
        %v1889 = vunpack.c.l.b16 %v1235
        %v1890 = vunpack.c.l.b16 %v1236
        %v1891 = vunpack.c.h.b16 %v1236
        %v1892 = vunpack.c.l.b16 %v1237
        %v1893 = vunpack.c.h.b16 %v1237
        %v1894 = vunpack.c.l.b16 %v1238
        %v1895 = vunpack.c.l.b16 %v1239
        %v1896 = vunpack.c.h.b16 %v1239
        %v1897 = vunpack.c.l.b16 %v1240
        %v1898 = vunpack.c.h.b16 %v1240
        %v1899 = vunpack.c.l.b16 %v1241
        %v1900 = vunpack.c.l.b16 %v1242
        %v1901 = vunpack.c.h.b16 %v1242
        %v1902 = vunpack.c.l.b16 %v1243
        %v1903 = vunpack.c.h.b16 %v1243
        %v1904 = vunpack.c.l.b16 %v1244
        %v1905 = vunpack.c.l.b16 %v1245
        %v1906 = vunpack.c.h.b16 %v1245
        %v1907 = vunpack.c.l.b16 %v1246
        %v1908 = vunpack.c.h.b16 %v1246
        %v1909 = vunpack.c.l.b16 %v1247
        %v1910 = vunpack.c.l.b16 %v1248
        %v1911 = vunpack.c.h.b16 %v1248
        %v1912 = vunpack.c.l.b16 %v1249
        %v1913 = vunpack.c.h.b16 %v1249
        %v1914 = vunpack.c.l.b16 %v1250
        %v1915 = vunpack.c.l.b16 %v1251
        %v1916 = vunpack.c.h.b16 %v1251
        %v1917 = vunpack.c.l.b16 %v1252
        %v1918 = vunpack.c.h.b16 %v1252
        %v1919 = vunpack.c.l.b16 %v1253
        %v1920 = vunpack.c.l.b16 %v1254
        %v1921 = vunpack.c.h.b16 %v1254
        %v1922 = vunpack.c.l.b16 %v1255
        %v1923 = vunpack.c.h.b16 %v1255
        %v1924 = vunpack.c.l.b16 %v1256
        %v1925 = vunpack.c.l.b16 %v1257
        %v1926 = vunpack.c.h.b16 %v1257
        %v1927 = vunpack.c.l.b16 %v1258
        %v1928 = vunpack.c.h.b16 %v1258
        %v1929 = vunpack.c.l.b16 %v1259
        %v1930 = vunpack.c.l.b16 %v1260
        %v1931 = vunpack.c.h.b16 %v1260
        %v1932 = vunpack.c.l.b16 %v1261
        %v1933 = vunpack.c.h.b16 %v1261
        %v1934 = vunpack.c.l.b16 %v1262
        %v1935 = vunpack.c.l.b16 %v1263
        %v1936 = vunpack.c.h.b16 %v1263
        %v1937 = vunpack.c.l.b16 %v1264
        %v1938 = vunpack.c.h.b16 %v1264
        %v1939 = vunpack.c.l.b16 %v1265
        %v1940 = vunpack.c.l.b16 %v1266
        %v1941 = vunpack.c.h.b16 %v1266
        %v1942 = vunpack.c.l.b16 %v1267
        %v1943 = vunpack.c.h.b16 %v1267
        %v1944 = vunpack.c.l.b16 %v1268
        %v1945 = vunpack.c.l.b16 %v1269
        %v1946 = vunpack.c.h.b16 %v1269
        %v1947 = vunpack.c.l.b16 %v1270
        %v1948 = vunpack.c.h.b16 %v1270
        %v1949 = vunpack.c.l.b16 %v1271
        %v1950 = vunpack.c.l.b16 %v1272
        %v1951 = vunpack.c.h.b16 %v1272
        %v1952 = vunpack.c.l.b16 %v1273
        %v1953 = vunpack.c.h.b16 %v1273
        %v1954 = vunpack.c.l.b16 %v1274
        %v1955 = vunpack.c.l.b16 %v1275
        %v1956 = vunpack.c.h.b16 %v1275
        %v1957 = vunpack.c.l.b16 %v1276
        %v1958 = vunpack.c.h.b16 %v1276
        %v1959 = vunpack.c.l.b16 %v1277
        %v1960 = vunpack.c.l.b16 %v1278
        %v1961 = vunpack.c.h.b16 %v1278
        %v1962 = vunpack.c.l.b16 %v1279
        %v1963 = vunpack.c.h.b16 %v1279
        %v1964 = vunpack.c.l.b16 %v1280
        %v1965 = vunpack.c.l.b16 %v1281
        %v1966 = vunpack.c.h.b16 %v1281
        %v1967 = vunpack.c.l.b16 %v1282
        %v1968 = vunpack.c.h.b16 %v1282
        %v1969 = vunpack.c.l.b16 %v1283
        %v1970 = vunpack.c.l.b16 %v1284
        %v1971 = vunpack.c.h.b16 %v1284
        %v1972 = vunpack.c.l.b16 %v1285
        %v1973 = vunpack.c.h.b16 %v1285
        %v1974 = vunpack.c.l.b16 %v1286
        %v1975 = vunpack.c.l.b16 %v1287
        %v1976 = vunpack.c.h.b16 %v1287
        %v1977 = vunpack.c.l.b16 %v1288
        %v1978 = vunpack.c.h.b16 %v1288
        %v1979 = vunpack.c.l.b16 %v1289
        %v1980 = vunpack.c.l.b16 %v1290
        %v1981 = vunpack.c.h.b16 %v1290
        %v1982 = vunpack.c.l.b16 %v1291
        %v1983 = vunpack.c.h.b16 %v1291
        %v1984 = vunpack.c.l.b16 %v1292
        %v1985 = vunpack.c.l.b16 %v1293
        %v1986 = vunpack.c.h.b16 %v1293
        %v1987 = vunpack.c.l.b16 %v1294
        %v1988 = vunpack.c.h.b16 %v1294
        %v1989 = vunpack.c.l.b16 %v1295
        %v1990 = vunpack.c.l.b16 %v1296
        %v1991 = vunpack.c.h.b16 %v1296
        %v1992 = vunpack.c.l.b16 %v1297
        %v1993 = vunpack.c.h.b16 %v1297
        %v1994 = vunpack.c.l.b16 %v1298
        %v1995 = vunpack.c.l.b16 %v1299
        %v1996 = vunpack.c.h.b16 %v1299
        %v1997 = vunpack.c.l.b16 %v1300
        %v1998 = vunpack.c.h.b16 %v1300
        %v1999 = vunpack.c.l.b16 %v1301
        %v2000 = vunpack.c.l.b16 %v1302
        %v2001 = vunpack.c.h.b16 %v1302
        %v2002 = vunpack.c.l.b16 %v1303
        %v2003 = vunpack.c.h.b16 %v1303
        %v2004 = vunpack.c.l.b16 %v1304
        %v2005 = vunpack.c.l.b16 %v1305
        %v2006 = vunpack.c.h.b16 %v1305
        %v2007 = vunpack.c.l.b16 %v1306
        %v2008 = vunpack.c.h.b16 %v1306
        %v2009 = vunpack.c.l.b16 %v1307
        %v2010 = vunpack.c.l.b16 %v1308
        %v2011 = vunpack.c.h.b16 %v1308
        %v2012 = vunpack.c.l.b16 %v1309
        %v2013 = vunpack.c.h.b16 %v1309
        %v2014 = vunpack.c.l.b16 %v1310
        %v2015 = vunpack.c.l.b16 %v1311
        %v2016 = vunpack.c.h.b16 %v1311
        %v2017 = vunpack.c.l.b16 %v1312
        %v2018 = vunpack.c.h.b16 %v1312
        %v2019 = vunpack.c.l.b16 %v1313
        %v2020 = vunpack.c.l.b16 %v1314
        %v2021 = vunpack.c.h.b16 %v1314
        %v2022 = vunpack.c.l.b16 %v1315
        %v2023 = vunpack.c.h.b16 %v1315
        %v2024 = vunpack.c.l.b16 %v1316
        %v2025 = vunpack.c.l.b16 %v1317
        %v2026 = vunpack.c.h.b16 %v1317
        %v2027 = vunpack.c.l.b16 %v1318
        %v2028 = vunpack.c.h.b16 %v1318
        %v2029 = vunpack.c.l.b16 %v1319
        %v2030 = vunpack.c.l.b16 %v1320
        %v2031 = vunpack.c.h.b16 %v1320
        %v2032 = vunpack.c.l.b16 %v1321
        %v2033 = vunpack.c.h.b16 %v1321
        %v2034 = vunpack.c.l.b16 %v1322
        %v2035 = vunpack.c.l.b16 %v1323
        %v2036 = vunpack.c.h.b16 %v1323
        %v2037 = vunpack.c.l.b16 %v1324
        %v2038 = vunpack.c.h.b16 %v1324
        %v2039 = vunpack.c.l.b16 %v1325
        %v2040 = vunpack.c.l.b16 %v1326
        %v2041 = vunpack.c.h.b16 %v1326
        %v2042 = vunpack.c.l.b16 %v1327
        %v2043 = vunpack.c.h.b16 %v1327
        %v2044 = vunpack.c.l.b16 %v1328
        %v2045 = vunpack.c.l.b16 %v1329
        %v2046 = vunpack.c.h.b16 %v1329
        %v2047 = vunpack.c.l.b16 %v1330
        %v2048 = vunpack.c.h.b16 %v1330
        %v2049 = vunpack.c.l.b16 %v1331
        %v2050 = vunpack.c.l.b16 %v1332
        %v2051 = vunpack.c.h.b16 %v1332
        %v2052 = vunpack.c.l.b16 %v1333
        %v2053 = vunpack.c.h.b16 %v1333
        %v2054 = vunpack.c.l.b16 %v1334
        %v2055 = vunpack.c.l.b16 %v1335
        %v2056 = vunpack.c.h.b16 %v1335
        %v2057 = vunpack.c.l.b16 %v1336
        %v2058 = vunpack.c.h.b16 %v1336
        %v2059 = vunpack.c.l.b16 %v1337
        %v2060 = vunpack.c.l.b16 %v1338
        %v2061 = vunpack.c.h.b16 %v1338
        %v2062 = vunpack.c.l.b16 %v1339
        %v2063 = vunpack.c.h.b16 %v1339
        %v2064 = vunpack.c.l.b16 %v1340
        %v2065 = vunpack.c.l.b16 %v1341
        %v2066 = vunpack.c.h.b16 %v1341
        %v2067 = vunpack.c.l.b16 %v1342
        %v2068 = vunpack.c.h.b16 %v1342
        %v2069 = vunpack.c.l.b16 %v1343
        %v2070 = vunpack.c.l.b16 %v1344
        %v2071 = vunpack.c.h.b16 %v1344
        %v2072 = vunpack.c.l.b16 %v1345
        %v2073 = vunpack.c.h.b16 %v1345
        %v2074 = vunpack.c.l.b16 %v1346
        %v2075 = vunpack.c.l.b16 %v1347
        %v2076 = vunpack.c.h.b16 %v1347
        %v2077 = vunpack.c.l.b16 %v1348
        %v2078 = vunpack.c.h.b16 %v1348
        %v2079 = vunpack.c.l.b16 %v1349
        %v2080 = vunpack.c.l.b16 %v1350
        %v2081 = vunpack.c.h.b16 %v1350
        %v2082 = vunpack.c.l.b16 %v1351
        %v2083 = vunpack.c.h.b16 %v1351
        %v2084 = vunpack.c.l.b16 %v1352
        %v2085 = vunpack.c.l.b16 %v1353
        %v2086 = vunpack.c.h.b16 %v1353
        %v2087 = vunpack.c.l.b16 %v1354
        %v2088 = vunpack.c.h.b16 %v1354
        %v2089 = vunpack.c.l.b16 %v1355
        %v2090 = vunpack.c.l.b16 %v1356
        %v2091 = vunpack.c.h.b16 %v1356
        %v2092 = vunpack.c.l.b16 %v1357
        %v2093 = vunpack.c.h.b16 %v1357
        %v2094 = vunpack.c.l.b16 %v1358
        %v2095 = vunpack.c.l.b16 %v1359
        %v2096 = vunpack.c.h.b16 %v1359
        %v2097 = vunpack.c.l.b16 %v1360
        %v2098 = vunpack.c.h.b16 %v1360
        %v2099 = vunpack.c.l.b16 %v1361
        %v2100 = vunpack.c.l.b16 %v1362
        %v2101 = vunpack.c.h.b16 %v1362
        %v2102 = vunpack.c.l.b16 %v1363
        %v2103 = vunpack.c.h.b16 %v1363
        %v2104 = vunpack.c.l.b16 %v1364
        %v2105 = vunpack.c.l.b16 %v1365
        %v2106 = vunpack.c.h.b16 %v1365
        %v2107 = vunpack.c.l.b16 %v1366
        %v2108 = vunpack.c.h.b16 %v1366
        %v2109 = vunpack.c.l.b16 %v1367
        %v2110 = vunpack.c.l.b16 %v1368
        %v2111 = vunpack.c.h.b16 %v1368
        %v2112 = vunpack.c.l.b16 %v1369
        %v2113 = vunpack.c.h.b16 %v1369
        %v2114 = vunpack.c.l.b16 %v1370
        %v2115 = vunpack.c.l.b16 %v1371
        %v2116 = vunpack.c.h.b16 %v1371
        %v2117 = vunpack.c.l.b16 %v1372
        %v2118 = vunpack.c.h.b16 %v1372
        %v2119 = vunpack.c.l.b16 %v1373
        %v2120 = vunpack.c.l.b16 %v1374
        %v2121 = vunpack.c.h.b16 %v1374
        %v2122 = vunpack.c.l.b16 %v1375
        %v2123 = vunpack.c.h.b16 %v1375
        %v2124 = vunpack.c.l.b16 %v1376
        %v2125 = vunpack.c.l.b16 %v1377
        %v2126 = vunpack.c.h.b16 %v1377
        %v2127 = vunpack.c.l.b16 %v1378
        %v2128 = vunpack.c.h.b16 %v1378
        %v2129 = vunpack.c.l.b16 %v1379
        %v2130 = vunpack.c.l.b16 %v1380
        %v2131 = vunpack.c.h.b16 %v1380
        %v2132 = vunpack.c.l.b16 %v1381
        %v2133 = vunpack.c.h.b16 %v1381
        %v2134 = vunpack.c.l.b16 %v1382
        %v2135 = vunpack.c.l.b16 %v1383
        %v2136 = vunpack.c.h.b16 %v1383
        %v2137 = vunpack.c.l.b16 %v1384
        %v2138 = vunpack.c.h.b16 %v1384
        %v2139 = vunpack.c.l.b16 %v1385
        %v2140 = vunpack.c.l.b16 %v1386
        %v2141 = vunpack.c.h.b16 %v1386
        %v2142 = vunpack.c.l.b16 %v1387
        %v2143 = vunpack.c.h.b16 %v1387
        %v2144 = vunpack.c.l.b16 %v1388
        %v2145 = vunpack.c.l.b16 %v1389
        %v2146 = vunpack.c.h.b16 %v1389
        %v2147 = vunpack.c.l.b16 %v1390
        %v2148 = vunpack.c.h.b16 %v1390
        %v2149 = vunpack.c.l.b16 %v1391
        %v2150 = vunpack.c.l.b16 %v1392
        %v2151 = vunpack.c.h.b16 %v1392
        %v2152 = vunpack.c.l.b16 %v1393
        %v2153 = vunpack.c.h.b16 %v1393
        %v2154 = vunpack.c.l.b16 %v1394
        %v2155 = vunpack.c.l.b16 %v1395
        %v2156 = vunpack.c.h.b16 %v1395
        %v2157 = vunpack.c.l.b16 %v1396
        %v2158 = vunpack.c.h.b16 %v1396
        %v2159 = vunpack.c.l.b16 %v1397
        %v2160 = vunpack.c.l.b16 %v1398
        %v2161 = vunpack.c.h.b16 %v1398
        %v2162 = vunpack.c.l.b16 %v1399
        %v2163 = vunpack.c.h.b16 %v1399
        %v2164 = vunpack.c.l.b16 %v1400
        %v2165 = vunpack.c.l.b16 %v1401
        %v2166 = vunpack.c.h.b16 %v1401
        %v2167 = vunpack.c.l.b16 %v1402
        %v2168 = vunpack.c.h.b16 %v1402
        %v2169 = vunpack.c.l.b16 %v1403
        %v2170 = vunpack.c.l.b16 %v1404
        %v2171 = vunpack.c.h.b16 %v1404
        %v2172 = vunpack.c.l.b16 %v1405
        %v2173 = vunpack.c.h.b16 %v1405
        %v2174 = vunpack.c.l.b16 %v1406
        %v2175 = vunpack.c.l.b16 %v1407
        %v2176 = vunpack.c.h.b16 %v1407
        %v2177 = vunpack.c.l.b16 %v1408
        %v2178 = vunpack.c.h.b16 %v1408
        %v2179 = vunpack.c.l.b16 %v1409
        %v2180 = vunpack.c.l.b16 %v1410
        %v2181 = vunpack.c.h.b16 %v1410
        %v2182 = vunpack.c.l.b16 %v1411
        %v2183 = vunpack.c.h.b16 %v1411
        %v2184 = vunpack.c.l.b16 %v1412
        %v2185 = vunpack.c.l.b16 %v1413
        %v2186 = vunpack.c.h.b16 %v1413
        %v2187 = vunpack.c.l.b16 %v1414
        %v2188 = vunpack.c.h.b16 %v1414
        %v2189 = vunpack.c.l.b16 %v1415
        %v2190 = vunpack.c.l.b16 %v1416
        %v2191 = vunpack.c.h.b16 %v1416
        %v2192 = vunpack.c.l.b16 %v1417
        %v2193 = vunpack.c.h.b16 %v1417
        %v2194 = vunpack.c.l.b16 %v1418
        %v2195 = vunpack.c.l.b16 %v1419
        %v2196 = vunpack.c.h.b16 %v1419
        %v2197 = vunpack.c.l.b16 %v1420
        %v2198 = vunpack.c.h.b16 %v1420
        %v2199 = vunpack.c.l.b16 %v1421
        %v2200 = vunpack.c.l.b16 %v1422
        %v2201 = vunpack.c.h.b16 %v1422
        %v2202 = vunpack.c.l.b16 %v1423
        %v2203 = vunpack.c.h.b16 %v1423
        %v2204 = vunpack.c.l.b16 %v1424
        %v2205 = vunpack.c.l.b16 %v1425
        %v2206 = vunpack.c.h.b16 %v1425
        %v2207 = vunpack.c.l.b16 %v1426
        %v2208 = vunpack.c.h.b16 %v1426
        %v2209 = vunpack.c.l.b16 %v1427
        %v2210 = vunpack.c.l.b16 %v1428
        %v2211 = vunpack.c.h.b16 %v1428
        %v2212 = vunpack.c.l.b16 %v1429
        %v2213 = vunpack.c.h.b16 %v1429
        %v2214 = vunpack.c.l.b16 %v1430
        %v2215 = vunpack.c.l.b16 %v1431
        %v2216 = vunpack.c.h.b16 %v1431
        %v2217 = vunpack.c.l.b16 %v1432
        %v2218 = vunpack.c.h.b16 %v1432
        %v2219 = vunpack.c.l.b16 %v1433
        %v2220 = vunpack.c.l.b16 %v1434
        %v2221 = vunpack.c.h.b16 %v1434
        %v2222 = vunpack.c.l.b16 %v1435
        %v2223 = vunpack.c.h.b16 %v1435
        %v2224 = vunpack.c.l.b16 %v1436
        %v2225 = vunpack.c.l.b16 %v1437
        %v2226 = vunpack.c.h.b16 %v1437
        %v2227 = vunpack.c.l.b16 %v1438
        %v2228 = vunpack.c.h.b16 %v1438
        %v2229 = vunpack.c.l.b16 %v1439
        %v2230 = vunpack.c.l.b16 %v1440
        %v2231 = vunpack.c.h.b16 %v1440
        %v2232 = vunpack.c.l.b16 %v1441
        %v2233 = vunpack.c.h.b16 %v1441
        %v2234 = vunpack.c.l.b16 %v1442
        %v2235 = vunpack.c.l.b16 %v1443
        %v2236 = vunpack.c.h.b16 %v1443
        %v2237 = vunpack.c.l.b16 %v1444
        %v2238 = vunpack.c.h.b16 %v1444
        %v2239 = vunpack.c.l.b16 %v1445
        %v2240 = vunpack.c.l.b16 %v1446
        %v2241 = vunpack.c.h.b16 %v1446
        %v2242 = vunpack.c.l.b16 %v1447
        %v2243 = vunpack.c.h.b16 %v1447
        %v2244 = vunpack.c.l.b16 %v1448
        %v2245 = vunpack.c.l.b16 %v1449
        %v2246 = vunpack.c.h.b16 %v1449
        %v2247 = vunpack.c.l.b16 %v1450
        %v2248 = vunpack.c.h.b16 %v1450
        %v2249 = vunpack.c.l.b16 %v1451
        %v2250 = vunpack.c.l.b16 %v1452
        %v2251 = vunpack.c.h.b16 %v1452
        %v2252 = vunpack.c.l.b16 %v1453
        %v2253 = vunpack.c.h.b16 %v1453
        %v2254 = vunpack.c.l.b16 %v1454
        %v2255 = vunpack.c.l.b16 %v1455
        %v2256 = vunpack.c.h.b16 %v1455
        %v2257 = vunpack.c.l.b16 %v1456
        %v2258 = vunpack.c.h.b16 %v1456
        %v2259 = vunpack.c.l.b16 %v1457
        %v2260 = vunpack.c.l.b16 %v1458
        %v2261 = vunpack.c.h.b16 %v1458
        %v2262 = vunpack.c.l.b16 %v1459
        %v2263 = vunpack.c.h.b16 %v1459
        %v2264 = vunpack.c.l.b16 %v1460
        %v2265 = vunpack.c.l.b16 %v1461
        %v2266 = vunpack.c.h.b16 %v1461
        %v2267 = vunpack.c.l.b16 %v1462
        %v2268 = vunpack.c.h.b16 %v1462
        %v2269 = vunpack.c.l.b16 %v1463
        %v2270 = vunpack.c.l.b16 %v1464
        %v2271 = vunpack.c.h.b16 %v1464
        %v2272 = vunpack.c.l.b16 %v1465
        %v2273 = vunpack.c.h.b16 %v1465
        %v2274 = vunpack.c.l.b16 %v1466
        %v2275 = vunpack.c.l.b16 %v1467
        %v2276 = vunpack.c.h.b16 %v1467
        %v2277 = vunpack.c.l.b16 %v1468
        %v2278 = vunpack.c.h.b16 %v1468
        %v2279 = vunpack.c.l.b16 %v1469
        %v2280 = vunpack.c.l.b16 %v1470
        %v2281 = vunpack.c.h.b16 %v1470
        %v2282 = vunpack.c.l.b16 %v1471
        %v2283 = vunpack.c.h.b16 %v1471
        %v2284 = vunpack.c.l.b16 %v1472
        %v2285 = vunpack.c.l.b16 %v1473
        %v2286 = vunpack.c.h.b16 %v1473
        %v2287 = vunpack.c.l.b16 %v1474
        %v2288 = vunpack.c.h.b16 %v1474
        %v2289 = vunpack.c.l.b16 %v1475
        %v2290 = vunpack.c.l.b16 %v1476
        %v2291 = vunpack.c.h.b16 %v1476
        %v2292 = vunpack.c.l.b16 %v1477
        %v2293 = vunpack.c.h.b16 %v1477
        %v2294 = vunpack.c.l.b16 %v1478
        %v2295 = vunpack.c.l.b16 %v1479
        %v2296 = vunpack.c.h.b16 %v1479
        %v2297 = vunpack.c.l.b16 %v1480
        %v2298 = vunpack.c.h.b16 %v1480
        %v2299 = vunpack.c.l.b16 %v1481
        %v2300 = vunpack.c.l.b16 %v1482
        %v2301 = vunpack.c.h.b16 %v1482
        %v2302 = vunpack.c.l.b16 %v1483
        %v2303 = vunpack.c.h.b16 %v1483
        %v2304 = vunpack.c.l.b16 %v1484
        %v2305 = vpack.c.b16 %v1810, %v1805
        %v2306 = vpack.c.b16 %v1811, %v1806
        %v2307 = vpack.c.b16 %v1812, %v1807
        %v2308 = vpack.c.b16 %v1813, %v1808
        %v2309 = vpack.c.b16 %v1814, %v1809
        %v2310 = vpack.c.b16 %v1820, %v1815
        %v2311 = vpack.c.b16 %v1821, %v1816
        %v2312 = vpack.c.b16 %v1822, %v1817
        %v2313 = vpack.c.b16 %v1823, %v1818
        %v2314 = vpack.c.b16 %v1824, %v1819
        %v2315 = vpack.c.b16 %v1830, %v1825
        %v2316 = vpack.c.b16 %v1831, %v1826
        %v2317 = vpack.c.b16 %v1832, %v1827
        %v2318 = vpack.c.b16 %v1833, %v1828
        %v2319 = vpack.c.b16 %v1834, %v1829
        %v2320 = vpack.c.b16 %v1840, %v1835
        %v2321 = vpack.c.b16 %v1841, %v1836
        %v2322 = vpack.c.b16 %v1842, %v1837
        %v2323 = vpack.c.b16 %v1843, %v1838
        %v2324 = vpack.c.b16 %v1844, %v1839
        %v2325 = vpack.c.b16 %v1850, %v1845
        %v2326 = vpack.c.b16 %v1851, %v1846
        %v2327 = vpack.c.b16 %v1852, %v1847
        %v2328 = vpack.c.b16 %v1853, %v1848
        %v2329 = vpack.c.b16 %v1854, %v1849
        %v2330 = vpack.c.b16 %v1860, %v1855
        %v2331 = vpack.c.b16 %v1861, %v1856
        %v2332 = vpack.c.b16 %v1862, %v1857
        %v2333 = vpack.c.b16 %v1863, %v1858
        %v2334 = vpack.c.b16 %v1864, %v1859
        %v2335 = vpack.c.b16 %v1870, %v1865
        %v2336 = vpack.c.b16 %v1871, %v1866
        %v2337 = vpack.c.b16 %v1872, %v1867
        %v2338 = vpack.c.b16 %v1873, %v1868
        %v2339 = vpack.c.b16 %v1874, %v1869
        %v2340 = vpack.c.b16 %v1880, %v1875
        %v2341 = vpack.c.b16 %v1881, %v1876
        %v2342 = vpack.c.b16 %v1882, %v1877
        %v2343 = vpack.c.b16 %v1883, %v1878
        %v2344 = vpack.c.b16 %v1884, %v1879
        %v2345 = vpack.c.b16 %v1890, %v1885
        %v2346 = vpack.c.b16 %v1891, %v1886
        %v2347 = vpack.c.b16 %v1892, %v1887
        %v2348 = vpack.c.b16 %v1893, %v1888
        %v2349 = vpack.c.b16 %v1894, %v1889
        %v2350 = vpack.c.b16 %v1900, %v1895
        %v2351 = vpack.c.b16 %v1901, %v1896
        %v2352 = vpack.c.b16 %v1902, %v1897
        %v2353 = vpack.c.b16 %v1903, %v1898
        %v2354 = vpack.c.b16 %v1904, %v1899
        %v2355 = vpack.c.b16 %v1910, %v1905
        %v2356 = vpack.c.b16 %v1911, %v1906
        %v2357 = vpack.c.b16 %v1912, %v1907
        %v2358 = vpack.c.b16 %v1913, %v1908
        %v2359 = vpack.c.b16 %v1914, %v1909
        %v2360 = vpack.c.b16 %v1920, %v1915
        %v2361 = vpack.c.b16 %v1921, %v1916
        %v2362 = vpack.c.b16 %v1922, %v1917
        %v2363 = vpack.c.b16 %v1923, %v1918
        %v2364 = vpack.c.b16 %v1924, %v1919
        %v2365 = vpack.c.b16 %v1930, %v1925
        %v2366 = vpack.c.b16 %v1931, %v1926
        %v2367 = vpack.c.b16 %v1932, %v1927
        %v2368 = vpack.c.b16 %v1933, %v1928
        %v2369 = vpack.c.b16 %v1934, %v1929
        %v2370 = vpack.c.b16 %v1940, %v1935
        %v2371 = vpack.c.b16 %v1941, %v1936
        %v2372 = vpack.c.b16 %v1942, %v1937
        %v2373 = vpack.c.b16 %v1943, %v1938
        %v2374 = vpack.c.b16 %v1944, %v1939
        %v2375 = vpack.c.b16 %v1950, %v1945
        %v2376 = vpack.c.b16 %v1951, %v1946
        %v2377 = vpack.c.b16 %v1952, %v1947
        %v2378 = vpack.c.b16 %v1953, %v1948
        %v2379 = vpack.c.b16 %v1954, %v1949
        %v2380 = vpack.c.b16 %v1960, %v1955
        %v2381 = vpack.c.b16 %v1961, %v1956
        %v2382 = vpack.c.b16 %v1962, %v1957
        %v2383 = vpack.c.b16 %v1963, %v1958
        %v2384 = vpack.c.b16 %v1964, %v1959
        %v2385 = vpack.c.b16 %v1970, %v1965
        %v2386 = vpack.c.b16 %v1971, %v1966
        %v2387 = vpack.c.b16 %v1972, %v1967
        %v2388 = vpack.c.b16 %v1973, %v1968
        %v2389 = vpack.c.b16 %v1974, %v1969
        %v2390 = vpack.c.b16 %v1980, %v1975
        %v2391 = vpack.c.b16 %v1981, %v1976
        %v2392 = vpack.c.b16 %v1982, %v1977
        %v2393 = vpack.c.b16 %v1983, %v1978
        %v2394 = vpack.c.b16 %v1984, %v1979
        %v2395 = vpack.c.b16 %v1990, %v1985
        %v2396 = vpack.c.b16 %v1991, %v1986
        %v2397 = vpack.c.b16 %v1992, %v1987
        %v2398 = vpack.c.b16 %v1993, %v1988
        %v2399 = vpack.c.b16 %v1994, %v1989
        %v2400 = vpack.c.b16 %v2000, %v1995
        %v2401 = vpack.c.b16 %v2001, %v1996
        %v2402 = vpack.c.b16 %v2002, %v1997
        %v2403 = vpack.c.b16 %v2003, %v1998
        %v2404 = vpack.c.b16 %v2004, %v1999
        %v2405 = vpack.c.b16 %v2010, %v2005
        %v2406 = vpack.c.b16 %v2011, %v2006
        %v2407 = vpack.c.b16 %v2012, %v2007
        %v2408 = vpack.c.b16 %v2013, %v2008
        %v2409 = vpack.c.b16 %v2014, %v2009
        %v2410 = vpack.c.b16 %v2020, %v2015
        %v2411 = vpack.c.b16 %v2021, %v2016
        %v2412 = vpack.c.b16 %v2022, %v2017
        %v2413 = vpack.c.b16 %v2023, %v2018
        %v2414 = vpack.c.b16 %v2024, %v2019
        %v2415 = vpack.c.b16 %v2030, %v2025
        %v2416 = vpack.c.b16 %v2031, %v2026
        %v2417 = vpack.c.b16 %v2032, %v2027
        %v2418 = vpack.c.b16 %v2033, %v2028
        %v2419 = vpack.c.b16 %v2034, %v2029
        %v2420 = vpack.c.b16 %v2040, %v2035
        %v2421 = vpack.c.b16 %v2041, %v2036
        %v2422 = vpack.c.b16 %v2042, %v2037
        %v2423 = vpack.c.b16 %v2043, %v2038
        %v2424 = vpack.c.b16 %v2044, %v2039
        %v2425 = vpack.c.b16 %v2050, %v2045
        %v2426 = vpack.c.b16 %v2051, %v2046
        %v2427 = vpack.c.b16 %v2052, %v2047
        %v2428 = vpack.c.b16 %v2053, %v2048
        %v2429 = vpack.c.b16 %v2054, %v2049
        %v2430 = vpack.c.b16 %v2060, %v2055
        %v2431 = vpack.c.b16 %v2061, %v2056
        %v2432 = vpack.c.b16 %v2062, %v2057
        %v2433 = vpack.c.b16 %v2063, %v2058
        %v2434 = vpack.c.b16 %v2064, %v2059
        %v2435 = vpack.c.b16 %v2070, %v2065
        %v2436 = vpack.c.b16 %v2071, %v2066
        %v2437 = vpack.c.b16 %v2072, %v2067
        %v2438 = vpack.c.b16 %v2073, %v2068
        %v2439 = vpack.c.b16 %v2074, %v2069
        %v2440 = vpack.c.b16 %v2080, %v2075
        %v2441 = vpack.c.b16 %v2081, %v2076
        %v2442 = vpack.c.b16 %v2082, %v2077
        %v2443 = vpack.c.b16 %v2083, %v2078
        %v2444 = vpack.c.b16 %v2084, %v2079
        %v2445 = vpack.c.b16 %v2090, %v2085
        %v2446 = vpack.c.b16 %v2091, %v2086
        %v2447 = vpack.c.b16 %v2092, %v2087
        %v2448 = vpack.c.b16 %v2093, %v2088
        %v2449 = vpack.c.b16 %v2094, %v2089
        %v2450 = vpack.c.b16 %v2100, %v2095
        %v2451 = vpack.c.b16 %v2101, %v2096
        %v2452 = vpack.c.b16 %v2102, %v2097
        %v2453 = vpack.c.b16 %v2103, %v2098
        %v2454 = vpack.c.b16 %v2104, %v2099
        %v2455 = vpack.c.b16 %v2110, %v2105
        %v2456 = vpack.c.b16 %v2111, %v2106
        %v2457 = vpack.c.b16 %v2112, %v2107
        %v2458 = vpack.c.b16 %v2113, %v2108
        %v2459 = vpack.c.b16 %v2114, %v2109
        %v2460 = vpack.c.b16 %v2120, %v2115
        %v2461 = vpack.c.b16 %v2121, %v2116
        %v2462 = vpack.c.b16 %v2122, %v2117
        %v2463 = vpack.c.b16 %v2123, %v2118
        %v2464 = vpack.c.b16 %v2124, %v2119
        %v2465 = vpack.c.b16 %v2130, %v2125
        %v2466 = vpack.c.b16 %v2131, %v2126
        %v2467 = vpack.c.b16 %v2132, %v2127
        %v2468 = vpack.c.b16 %v2133, %v2128
        %v2469 = vpack.c.b16 %v2134, %v2129
        %v2470 = vpack.c.b16 %v2140, %v2135
        %v2471 = vpack.c.b16 %v2141, %v2136
        %v2472 = vpack.c.b16 %v2142, %v2137
        %v2473 = vpack.c.b16 %v2143, %v2138
        %v2474 = vpack.c.b16 %v2144, %v2139
        %v2475 = vpack.c.b16 %v2150, %v2145
        %v2476 = vpack.c.b16 %v2151, %v2146
        %v2477 = vpack.c.b16 %v2152, %v2147
        %v2478 = vpack.c.b16 %v2153, %v2148
        %v2479 = vpack.c.b16 %v2154, %v2149
        %v2480 = vpack.c.b16 %v2160, %v2155
        %v2481 = vpack.c.b16 %v2161, %v2156
        %v2482 = vpack.c.b16 %v2162, %v2157
        %v2483 = vpack.c.b16 %v2163, %v2158
        %v2484 = vpack.c.b16 %v2164, %v2159
        %v2485 = vpack.c.b16 %v2170, %v2165
        %v2486 = vpack.c.b16 %v2171, %v2166
        %v2487 = vpack.c.b16 %v2172, %v2167
        %v2488 = vpack.c.b16 %v2173, %v2168
        %v2489 = vpack.c.b16 %v2174, %v2169
        %v2490 = vpack.c.b16 %v2180, %v2175
        %v2491 = vpack.c.b16 %v2181, %v2176
        %v2492 = vpack.c.b16 %v2182, %v2177
        %v2493 = vpack.c.b16 %v2183, %v2178
        %v2494 = vpack.c.b16 %v2184, %v2179
        %v2495 = vpack.c.b16 %v2190, %v2185
        %v2496 = vpack.c.b16 %v2191, %v2186
        %v2497 = vpack.c.b16 %v2192, %v2187
        %v2498 = vpack.c.b16 %v2193, %v2188
        %v2499 = vpack.c.b16 %v2194, %v2189
        %v2500 = vpack.c.b16 %v2200, %v2195
        %v2501 = vpack.c.b16 %v2201, %v2196
        %v2502 = vpack.c.b16 %v2202, %v2197
        %v2503 = vpack.c.b16 %v2203, %v2198
        %v2504 = vpack.c.b16 %v2204, %v2199
        %v2505 = vpack.c.b16 %v2210, %v2205
        %v2506 = vpack.c.b16 %v2211, %v2206
        %v2507 = vpack.c.b16 %v2212, %v2207
        %v2508 = vpack.c.b16 %v2213, %v2208
        %v2509 = vpack.c.b16 %v2214, %v2209
        %v2510 = vpack.c.b16 %v2220, %v2215
        %v2511 = vpack.c.b16 %v2221, %v2216
        %v2512 = vpack.c.b16 %v2222, %v2217
        %v2513 = vpack.c.b16 %v2223, %v2218
        %v2514 = vpack.c.b16 %v2224, %v2219
        %v2515 = vpack.c.b16 %v2230, %v2225
        %v2516 = vpack.c.b16 %v2231, %v2226
        %v2517 = vpack.c.b16 %v2232, %v2227
        %v2518 = vpack.c.b16 %v2233, %v2228
        %v2519 = vpack.c.b16 %v2234, %v2229
        %v2520 = vpack.c.b16 %v2240, %v2235
        %v2521 = vpack.c.b16 %v2241, %v2236
        %v2522 = vpack.c.b16 %v2242, %v2237
        %v2523 = vpack.c.b16 %v2243, %v2238
        %v2524 = vpack.c.b16 %v2244, %v2239
        %v2525 = vpack.c.b16 %v2250, %v2245
        %v2526 = vpack.c.b16 %v2251, %v2246
        %v2527 = vpack.c.b16 %v2252, %v2247
        %v2528 = vpack.c.b16 %v2253, %v2248
        %v2529 = vpack.c.b16 %v2254, %v2249
        %v2530 = vpack.c.b16 %v2260, %v2255
        %v2531 = vpack.c.b16 %v2261, %v2256
        %v2532 = vpack.c.b16 %v2262, %v2257
        %v2533 = vpack.c.b16 %v2263, %v2258
        %v2534 = vpack.c.b16 %v2264, %v2259
        %v2535 = vpack.c.b16 %v2270, %v2265
        %v2536 = vpack.c.b16 %v2271, %v2266
        %v2537 = vpack.c.b16 %v2272, %v2267
        %v2538 = vpack.c.b16 %v2273, %v2268
        %v2539 = vpack.c.b16 %v2274, %v2269
        %v2540 = vpack.c.b16 %v2280, %v2275
        %v2541 = vpack.c.b16 %v2281, %v2276
        %v2542 = vpack.c.b16 %v2282, %v2277
        %v2543 = vpack.c.b16 %v2283, %v2278
        %v2544 = vpack.c.b16 %v2284, %v2279
        %v2545 = vpack.c.b16 %v2290, %v2285
        %v2546 = vpack.c.b16 %v2291, %v2286
        %v2547 = vpack.c.b16 %v2292, %v2287
        %v2548 = vpack.c.b16 %v2293, %v2288
        %v2549 = vpack.c.b16 %v2294, %v2289
        %v2550 = vpack.c.b16 %v2300, %v2295
        %v2551 = vpack.c.b16 %v2301, %v2296
        %v2552 = vpack.c.b16 %v2302, %v2297
        %v2553 = vpack.c.b16 %v2303, %v2298
        %v2554 = vpack.c.b16 %v2304, %v2299
        %vm2805 = vcmask 261120
        %v2807 = vsel %vm2805, %v1135, 0
        %v2810 = vsel %vm2805, %v1142, 0
        %v2813 = vsel %vm2805, %v1149, 0
        %v2816 = vsel %vm2805, %v1156, 0
        %v2819 = vsel %vm2805, %v1163, 0
        %v2822 = vsel %vm2805, %v1170, 0
        %v2825 = vsel %vm2805, %v1177, 0
        %v2828 = vsel %vm2805, %v1184, 0
        %2830 = vmatprep.subr.bf16.mxu0 %v2306
        %2831 = vmatpush1.bf16.msra.mxu0 %v2305
        %2832 = vmatprep.subr.bf16.mxu0 %v2311
        %2833 = vmatpush1.bf16.msra.mxu0 %v2310
        %2834 = vmatprep.subr.bf16.mxu0 %v2316
        %2835 = vmatpush1.bf16.msra.mxu0 %v2315
        %2836 = vmatprep.subr.bf16.mxu0 %v2321
        %2837 = vmatpush1.bf16.msra.mxu0 %v2320
        %2838 = vmatprep.subr.bf16.mxu0 %v2326
        %2839 = vmatpush1.bf16.msra.mxu0 %v2325
        %2840 = vmatprep.subr.bf16.mxu0 %v2331
        %2841 = vmatpush1.bf16.msra.mxu0 %v2330
        %2842 = vmatprep.subr.bf16.mxu0 %v2336
        %2843 = vmatpush1.bf16.msra.mxu0 %v2335
        %2844 = vmatprep.subr.bf16.mxu0 %v2341
        %2845 = vmatpush1.bf16.msra.mxu0 %v2340
        %2846 = vmatprep.subr.bf16.mxu0 %v2346
        %2847 = vmatpush1.bf16.msra.mxu0 %v2345
        %2848 = vmatprep.subr.bf16.mxu0 %v2351
        %2849 = vmatpush1.bf16.msra.mxu0 %v2350
        %2850 = vmatprep.subr.bf16.mxu0 %v2356
        %2851 = vmatpush1.bf16.msra.mxu0 %v2355
        %2852 = vmatprep.subr.bf16.mxu0 %v2361
        %2853 = vmatpush1.bf16.msra.mxu0 %v2360
        %2854 = vmatprep.subr.bf16.mxu0 %v2366
        %2855 = vmatpush1.bf16.msra.mxu0 %v2365
        %2856 = vmatprep.subr.bf16.mxu0 %v2371
        %2857 = vmatpush1.bf16.msra.mxu0 %v2370
        %2858 = vmatprep.subr.bf16.mxu0 %v2376
        %2859 = vmatpush1.bf16.msra.mxu0 %v2375
        %2860 = vmatprep.subr.bf16.mxu0 %v2381
        %2861 = vmatpush1.bf16.msra.mxu0 %v2380
        %2862 = vmatprep.mubr.bf16.mxu0 %v1130
        %2863 = vmatmul.mubr.bf16.gmra.mrb[0].mxu0 %v1129
        %v2864 = vpop.f32.mrb[0].mxu0
        %v2865 = vadd.f32 %v1488, %v2864
        %v2866 = vpop.f32.mrb[0].mxu0
        %v2867 = vadd.f32 %v1492, %v2866
        %v2868 = vpop.f32.mrb[0].mxu0
        %v2869 = vadd.f32 %v1488, %v2868
        %v2870 = vpop.f32.mrb[0].mxu0
        %v2871 = vadd.f32 %v1492, %v2870
        %2872 = vmatprep.mubr.bf16.mxu0 %v1137
        %2873 = vmatmul.mubr.bf16.gmra.mrb[0].mxu0 %v1136
        %v2874 = vpop.f32.mrb[0].mxu0
        %v2875 = vadd.f32 %v1488, %v2874
        %v2876 = vpop.f32.mrb[0].mxu0
        %v2877 = vadd.f32 %v1492, %v2876
        %v2878 = vpop.f32.mrb[0].mxu0
        %v2879 = vadd.f32 %v1488, %v2878
        %v2880 = vpop.f32.mrb[0].mxu0
        %v2881 = vadd.f32 %v1492, %v2880
        %2882 = vmatprep.mubr.bf16.mxu0 %v1144
        %2883 = vmatmul.mubr.bf16.gmra.mrb[0].mxu0 %v1143
        %v2884 = vpop.f32.mrb[0].mxu0
        %v2885 = vadd.f32 %v1488, %v2884
        %v2886 = vpop.f32.mrb[0].mxu0
        %v2887 = vadd.f32 %v1492, %v2886
        %v2888 = vpop.f32.mrb[0].mxu0
        %v2889 = vadd.f32 %v1488, %v2888
        %v2890 = vpop.f32.mrb[0].mxu0
        %v2891 = vadd.f32 %v1492, %v2890
        %2892 = vmatprep.mubr.bf16.mxu0 %v1151
        %2893 = vmatmul.mubr.bf16.gmra.mrb[0].mxu0 %v1150
        %v2894 = vpop.f32.mrb[0].mxu0
        %v2895 = vadd.f32 %v1488, %v2894
        %v2896 = vpop.f32.mrb[0].mxu0
        %v2897 = vadd.f32 %v1492, %v2896
        %v2898 = vpop.f32.mrb[0].mxu0
        %v2899 = vadd.f32 %v1488, %v2898
        %v2900 = vpop.f32.mrb[0].mxu0
        %v2901 = vadd.f32 %v1492, %v2900
        %2902 = vmatprep.mubr.bf16.mxu0 %v1158
        %2903 = vmatmul.mubr.bf16.gmra.mrb[0].mxu0 %v1157
        %v2904 = vpop.f32.mrb[0].mxu0
        %v2905 = vadd.f32 %v1488, %v2904
        %v2906 = vpop.f32.mrb[0].mxu0
        %v2907 = vadd.f32 %v1492, %v2906
        %v2908 = vpop.f32.mrb[0].mxu0
        %v2909 = vadd.f32 %v1488, %v2908
        %v2910 = vpop.f32.mrb[0].mxu0
        %v2911 = vadd.f32 %v1492, %v2910
        %2912 = vmatprep.mubr.bf16.mxu0 %v1165
        %2913 = vmatmul.mubr.bf16.gmra.mrb[0].mxu0 %v1164
        %v2914 = vpop.f32.mrb[0].mxu0
        %v2915 = vadd.f32 %v1488, %v2914
        %v2916 = vpop.f32.mrb[0].mxu0
        %v2917 = vadd.f32 %v1492, %v2916
        %v2918 = vpop.f32.mrb[0].mxu0
        %v2919 = vadd.f32 %v1488, %v2918
        %v2920 = vpop.f32.mrb[0].mxu0
        %v2921 = vadd.f32 %v1492, %v2920
        %2922 = vmatprep.mubr.bf16.mxu0 %v1172
        %2923 = vmatmul.mubr.bf16.gmra.mrb[0].mxu0 %v1171
        %v2924 = vpop.f32.mrb[0].mxu0
        %v2925 = vadd.f32 %v1488, %v2924
        %v2926 = vpop.f32.mrb[0].mxu0
        %v2927 = vadd.f32 %v1492, %v2926
        %v2928 = vpop.f32.mrb[0].mxu0
        %v2929 = vadd.f32 %v1488, %v2928
        %v2930 = vpop.f32.mrb[0].mxu0
        %v2931 = vadd.f32 %v1492, %v2930
        %2932 = vmatprep.mubr.bf16.mxu0 %v1179
        %2933 = vmatmul.mubr.bf16.gmra.mrb[0].mxu0 %v1178
        %v2934 = vpop.f32.mrb[0].mxu0
        %v2935 = vadd.f32 %v1488, %v2934
        %v2936 = vpop.f32.mrb[0].mxu0
        %v2937 = vadd.f32 %v1492, %v2936
        %v2938 = vpop.f32.mrb[0].mxu0
        %v2939 = vadd.f32 %v1488, %v2938
        %v2940 = vpop.f32.mrb[0].mxu0
        %v2941 = vadd.f32 %v1492, %v2940
        %2942 = vdwg.mxu0
        %2943 = vmatprep.subr.bf16.mxu0 %v2386
        %2944 = vmatpush1.bf16.msra.mxu0 %v2385
        %2945 = vmatprep.subr.bf16.mxu0 %v2391
        %2946 = vmatpush1.bf16.msra.mxu0 %v2390
        %2947 = vmatprep.subr.bf16.mxu0 %v2396
        %2948 = vmatpush1.bf16.msra.mxu0 %v2395
        %2949 = vmatprep.subr.bf16.mxu0 %v2401
        %2950 = vmatpush1.bf16.msra.mxu0 %v2400
        %2951 = vmatprep.subr.bf16.mxu0 %v2406
        %2952 = vmatpush1.bf16.msra.mxu0 %v2405
        %2953 = vmatprep.subr.bf16.mxu0 %v2411
        %2954 = vmatpush1.bf16.msra.mxu0 %v2410
        %2955 = vmatprep.subr.bf16.mxu0 %v2416
        %2956 = vmatpush1.bf16.msra.mxu0 %v2415
        %2957 = vmatprep.subr.bf16.mxu0 %v2421
        %2958 = vmatpush1.bf16.msra.mxu0 %v2420
        %2959 = vmatprep.subr.bf16.mxu0 %v2426
        %2960 = vmatpush1.bf16.msra.mxu0 %v2425
        %2961 = vmatprep.subr.bf16.mxu0 %v2431
        %2962 = vmatpush1.bf16.msra.mxu0 %v2430
        %2963 = vmatprep.subr.bf16.mxu0 %v2436
        %2964 = vmatpush1.bf16.msra.mxu0 %v2435
        %2965 = vmatprep.subr.bf16.mxu0 %v2441
        %2966 = vmatpush1.bf16.msra.mxu0 %v2440
        %2967 = vmatprep.subr.bf16.mxu0 %v2446
        %2968 = vmatpush1.bf16.msra.mxu0 %v2445
        %2969 = vmatprep.subr.bf16.mxu0 %v2451
        %2970 = vmatpush1.bf16.msra.mxu0 %v2450
        %2971 = vmatprep.subr.bf16.mxu0 %v2456
        %2972 = vmatpush1.bf16.msra.mxu0 %v2455
        %2973 = vmatprep.subr.bf16.mxu0 %v2461
        %2974 = vmatpush1.bf16.msra.mxu0 %v2460
        %2975 = vmatprep.mubr.bf16.mxu0 %v1132
        %2976 = vmatmul.mubr.bf16.gmra.mrb[0].mxu0 %v1131
        %v2977 = vpop.f32.mrb[0].mxu0
        %v2978 = vadd.f32 %v2865, %v2977
        %v2979 = vpop.f32.mrb[0].mxu0
        %v2980 = vadd.f32 %v2867, %v2979
        %v2981 = vpop.f32.mrb[0].mxu0
        %v2982 = vadd.f32 %v2869, %v2981
        %v2983 = vpop.f32.mrb[0].mxu0
        %v2984 = vadd.f32 %v2871, %v2983
        %2985 = vmatprep.mubr.bf16.mxu0 %v1139
        %2986 = vmatmul.mubr.bf16.gmra.mrb[0].mxu0 %v1138
        %v2987 = vpop.f32.mrb[0].mxu0
        %v2988 = vadd.f32 %v2875, %v2987
        %v2989 = vpop.f32.mrb[0].mxu0
        %v2990 = vadd.f32 %v2877, %v2989
        %v2991 = vpop.f32.mrb[0].mxu0
        %v2992 = vadd.f32 %v2879, %v2991
        %v2993 = vpop.f32.mrb[0].mxu0
        %v2994 = vadd.f32 %v2881, %v2993
        %2995 = vmatprep.mubr.bf16.mxu0 %v1146
        %2996 = vmatmul.mubr.bf16.gmra.mrb[0].mxu0 %v1145
        %v2997 = vpop.f32.mrb[0].mxu0
        %v2998 = vadd.f32 %v2885, %v2997
        %v2999 = vpop.f32.mrb[0].mxu0
        %v3000 = vadd.f32 %v2887, %v2999
        %v3001 = vpop.f32.mrb[0].mxu0
        %v3002 = vadd.f32 %v2889, %v3001
        %v3003 = vpop.f32.mrb[0].mxu0
        %v3004 = vadd.f32 %v2891, %v3003
        %3005 = vmatprep.mubr.bf16.mxu0 %v1153
        %3006 = vmatmul.mubr.bf16.gmra.mrb[0].mxu0 %v1152
        %v3007 = vpop.f32.mrb[0].mxu0
        %v3008 = vadd.f32 %v2895, %v3007
        %v3009 = vpop.f32.mrb[0].mxu0
        %v3010 = vadd.f32 %v2897, %v3009
        %v3011 = vpop.f32.mrb[0].mxu0
        %v3012 = vadd.f32 %v2899, %v3011
        %v3013 = vpop.f32.mrb[0].mxu0
        %v3014 = vadd.f32 %v2901, %v3013
        %3015 = vmatprep.mubr.bf16.mxu0 %v1160
        %3016 = vmatmul.mubr.bf16.gmra.mrb[0].mxu0 %v1159
        %v3017 = vpop.f32.mrb[0].mxu0
        %v3018 = vadd.f32 %v2905, %v3017
        %v3019 = vpop.f32.mrb[0].mxu0
        %v3020 = vadd.f32 %v2907, %v3019
        %v3021 = vpop.f32.mrb[0].mxu0
        %v3022 = vadd.f32 %v2909, %v3021
        %v3023 = vpop.f32.mrb[0].mxu0
        %v3024 = vadd.f32 %v2911, %v3023
        %3025 = vmatprep.mubr.bf16.mxu0 %v1167
        %3026 = vmatmul.mubr.bf16.gmra.mrb[0].mxu0 %v1166
        %v3027 = vpop.f32.mrb[0].mxu0
        %v3028 = vadd.f32 %v2915, %v3027
        %v3029 = vpop.f32.mrb[0].mxu0
        %v3030 = vadd.f32 %v2917, %v3029
        %v3031 = vpop.f32.mrb[0].mxu0
        %v3032 = vadd.f32 %v2919, %v3031
        %v3033 = vpop.f32.mrb[0].mxu0
        %v3034 = vadd.f32 %v2921, %v3033
        %3035 = vmatprep.mubr.bf16.mxu0 %v1174
        %3036 = vmatmul.mubr.bf16.gmra.mrb[0].mxu0 %v1173
        %v3037 = vpop.f32.mrb[0].mxu0
        %v3038 = vadd.f32 %v2925, %v3037
        %v3039 = vpop.f32.mrb[0].mxu0
        %v3040 = vadd.f32 %v2927, %v3039
        %v3041 = vpop.f32.mrb[0].mxu0
        %v3042 = vadd.f32 %v2929, %v3041
        %v3043 = vpop.f32.mrb[0].mxu0
        %v3044 = vadd.f32 %v2931, %v3043
        %3045 = vmatprep.mubr.bf16.mxu0 %v1181
        %3046 = vmatmul.mubr.bf16.gmra.mrb[0].mxu0 %v1180
        %v3047 = vpop.f32.mrb[0].mxu0
        %v3048 = vadd.f32 %v2935, %v3047
        %v3049 = vpop.f32.mrb[0].mxu0
        %v3050 = vadd.f32 %v2937, %v3049
        %v3051 = vpop.f32.mrb[0].mxu0
        %v3052 = vadd.f32 %v2939, %v3051
        %v3053 = vpop.f32.mrb[0].mxu0
        %v3054 = vadd.f32 %v2941, %v3053
        %3055 = vdwg.mxu0
        %3056 = vmatprep.subr.bf16.mxu0 %v2466
        %3057 = vmatpush1.bf16.msra.mxu0 %v2465
        %3058 = vmatprep.subr.bf16.mxu0 %v2471
        %3059 = vmatpush1.bf16.msra.mxu0 %v2470
        %3060 = vmatprep.subr.bf16.mxu0 %v2476
        %3061 = vmatpush1.bf16.msra.mxu0 %v2475
        %3062 = vmatprep.subr.bf16.mxu0 %v2481
        %3063 = vmatpush1.bf16.msra.mxu0 %v2480
        %3064 = vmatprep.subr.bf16.mxu0 %v2486
        %3065 = vmatpush1.bf16.msra.mxu0 %v2485
        %3066 = vmatprep.subr.bf16.mxu0 %v2491
        %3067 = vmatpush1.bf16.msra.mxu0 %v2490
        %3068 = vmatprep.subr.bf16.mxu0 %v2496
        %3069 = vmatpush1.bf16.msra.mxu0 %v2495
        %3070 = vmatprep.subr.bf16.mxu0 %v2501
        %3071 = vmatpush1.bf16.msra.mxu0 %v2500
        %3072 = vmatprep.subr.bf16.mxu0 %v2506
        %3073 = vmatpush1.bf16.msra.mxu0 %v2505
        %3074 = vmatprep.subr.bf16.mxu0 %v2511
        %3075 = vmatpush1.bf16.msra.mxu0 %v2510
        %3076 = vmatprep.subr.bf16.mxu0 %v2516
        %3077 = vmatpush1.bf16.msra.mxu0 %v2515
        %3078 = vmatprep.subr.bf16.mxu0 %v2521
        %3079 = vmatpush1.bf16.msra.mxu0 %v2520
        %3080 = vmatprep.subr.bf16.mxu0 %v2526
        %3081 = vmatpush1.bf16.msra.mxu0 %v2525
        %3082 = vmatprep.subr.bf16.mxu0 %v2531
        %3083 = vmatpush1.bf16.msra.mxu0 %v2530
        %3084 = vmatprep.subr.bf16.mxu0 %v2536
        %3085 = vmatpush1.bf16.msra.mxu0 %v2535
        %3086 = vmatprep.subr.bf16.mxu0 %v2541
        %3087 = vmatpush1.bf16.msra.mxu0 %v2540
        %3088 = vmatprep.mubr.bf16.mxu0 %v1134
        %3089 = vmatmul.mubr.bf16.gmra.mrb[0].mxu0 %v1133
        %v3090 = vpop.f32.mrb[0].mxu0
        %v3091 = vadd.f32 %v2978, %v3090
        %v3092 = vpop.f32.mrb[0].mxu0
        %v3093 = vadd.f32 %v2980, %v3092
        %v3094 = vpop.f32.mrb[0].mxu0
        %v3095 = vadd.f32 %v2982, %v3094
        %v3096 = vpop.f32.mrb[0].mxu0
        %v3097 = vadd.f32 %v2984, %v3096
        %3098 = vmatprep.mubr.bf16.mxu0 %v1141
        %3099 = vmatmul.mubr.bf16.gmra.mrb[0].mxu0 %v1140
        %v3100 = vpop.f32.mrb[0].mxu0
        %v3101 = vadd.f32 %v2988, %v3100
        %v3102 = vpop.f32.mrb[0].mxu0
        %v3103 = vadd.f32 %v2990, %v3102
        %v3104 = vpop.f32.mrb[0].mxu0
        %v3105 = vadd.f32 %v2992, %v3104
        %v3106 = vpop.f32.mrb[0].mxu0
        %v3107 = vadd.f32 %v2994, %v3106
        %3108 = vmatprep.mubr.bf16.mxu0 %v1148
        %3109 = vmatmul.mubr.bf16.gmra.mrb[0].mxu0 %v1147
        %v3110 = vpop.f32.mrb[0].mxu0
        %v3111 = vadd.f32 %v2998, %v3110
        %v3112 = vpop.f32.mrb[0].mxu0
        %v3113 = vadd.f32 %v3000, %v3112
        %v3114 = vpop.f32.mrb[0].mxu0
        %v3115 = vadd.f32 %v3002, %v3114
        %v3116 = vpop.f32.mrb[0].mxu0
        %v3117 = vadd.f32 %v3004, %v3116
        %3118 = vmatprep.mubr.bf16.mxu0 %v1155
        %3119 = vmatmul.mubr.bf16.gmra.mrb[0].mxu0 %v1154
        %v3120 = vpop.f32.mrb[0].mxu0
        %v3121 = vadd.f32 %v3008, %v3120
        %v3122 = vpop.f32.mrb[0].mxu0
        %v3123 = vadd.f32 %v3010, %v3122
        %v3124 = vpop.f32.mrb[0].mxu0
        %v3125 = vadd.f32 %v3012, %v3124
        %v3126 = vpop.f32.mrb[0].mxu0
        %v3127 = vadd.f32 %v3014, %v3126
        %3128 = vmatprep.mubr.bf16.mxu0 %v1162
        %3129 = vmatmul.mubr.bf16.gmra.mrb[0].mxu0 %v1161
        %v3130 = vpop.f32.mrb[0].mxu0
        %v3131 = vadd.f32 %v3018, %v3130
        %v3132 = vpop.f32.mrb[0].mxu0
        %v3133 = vadd.f32 %v3020, %v3132
        %v3134 = vpop.f32.mrb[0].mxu0
        %v3135 = vadd.f32 %v3022, %v3134
        %v3136 = vpop.f32.mrb[0].mxu0
        %v3137 = vadd.f32 %v3024, %v3136
        %3138 = vmatprep.mubr.bf16.mxu0 %v1169
        %3139 = vmatmul.mubr.bf16.gmra.mrb[0].mxu0 %v1168
        %v3140 = vpop.f32.mrb[0].mxu0
        %v3141 = vadd.f32 %v3028, %v3140
        %v3142 = vpop.f32.mrb[0].mxu0
        %v3143 = vadd.f32 %v3030, %v3142
        %v3144 = vpop.f32.mrb[0].mxu0
        %v3145 = vadd.f32 %v3032, %v3144
        %v3146 = vpop.f32.mrb[0].mxu0
        %v3147 = vadd.f32 %v3034, %v3146
        %3148 = vmatprep.mubr.bf16.mxu0 %v1176
        %3149 = vmatmul.mubr.bf16.gmra.mrb[0].mxu0 %v1175
        %v3150 = vpop.f32.mrb[0].mxu0
        %v3151 = vadd.f32 %v3038, %v3150
        %v3152 = vpop.f32.mrb[0].mxu0
        %v3153 = vadd.f32 %v3040, %v3152
        %v3154 = vpop.f32.mrb[0].mxu0
        %v3155 = vadd.f32 %v3042, %v3154
        %v3156 = vpop.f32.mrb[0].mxu0
        %v3157 = vadd.f32 %v3044, %v3156
        %3158 = vmatprep.mubr.bf16.mxu0 %v1183
        %3159 = vmatmul.mubr.bf16.gmra.mrb[0].mxu0 %v1182
        %v3160 = vpop.f32.mrb[0].mxu0
        %v3161 = vadd.f32 %v3048, %v3160
        %v3162 = vpop.f32.mrb[0].mxu0
        %v3163 = vadd.f32 %v3050, %v3162
        %v3164 = vpop.f32.mrb[0].mxu0
        %v3165 = vadd.f32 %v3052, %v3164
        %v3166 = vpop.f32.mrb[0].mxu0
        %v3167 = vadd.f32 %v3054, %v3166
        %3168 = vdwg.mxu0
        %3169 = vmatprep.subr.bf16.mxu0 %v2546
        %3170 = vmatpush1.bf16.msra.mxu0 %v2545
        %3171 = vmatprep.subr.bf16.mxu0 %v2551
        %3172 = vmatpush1.bf16.msra.mxu0 %v2550
        %3173 = vmatprep.subr.bf16.mxu0 0
        %3174 = vmatpush1.bf16.msra.mxu0 0
        %3175 = vmatprep.subr.bf16.mxu0 0
        %3176 = vmatpush1.bf16.msra.mxu0 0
        %3177 = vmatprep.subr.bf16.mxu0 0
        %3178 = vmatpush1.bf16.msra.mxu0 0
        %3179 = vmatprep.subr.bf16.mxu0 0
        %3180 = vmatpush1.bf16.msra.mxu0 0
        %3181 = vmatprep.subr.bf16.mxu0 0
        %3182 = vmatpush1.bf16.msra.mxu0 0
        %3183 = vmatprep.subr.bf16.mxu0 0
        %3184 = vmatpush1.bf16.msra.mxu0 0
        %3185 = vmatprep.subr.bf16.mxu0 0
        %3186 = vmatpush1.bf16.msra.mxu0 0
        %3187 = vmatprep.subr.bf16.mxu0 0
        %3188 = vmatpush1.bf16.msra.mxu0 0
        %3189 = vmatprep.subr.bf16.mxu0 0
        %3190 = vmatpush1.bf16.msra.mxu0 0
        %3191 = vmatprep.subr.bf16.mxu0 0
        %3192 = vmatpush1.bf16.msra.mxu0 0
        %3193 = vmatprep.subr.bf16.mxu0 0
        %3194 = vmatpush1.bf16.msra.mxu0 0
        %3195 = vmatprep.subr.bf16.mxu0 0
        %3196 = vmatpush1.bf16.msra.mxu0 0
        %3197 = vmatprep.subr.bf16.mxu0 0
        %3198 = vmatpush1.bf16.msra.mxu0 0
        %3199 = vmatprep.subr.bf16.mxu0 0
        %3200 = vmatpush1.bf16.msra.mxu0 0
        %3201 = vmatprep.mubr.bf16.mxu0 0
        %3202 = vmatmul.mubr.bf16.gmra.mrb[0].mxu0 %v2807
        %v3203 = vpop.f32.mrb[0].mxu0
        %v3204 = vadd.f32 %v3091, %v3203
        %v3205 = vpop.f32.mrb[0].mxu0
        %v3206 = vadd.f32 %v3093, %v3205
        %v3207 = vpop.f32.mrb[0].mxu0
        %v3208 = vadd.f32 %v3095, %v3207
        %v3209 = vpop.f32.mrb[0].mxu0
        %v3210 = vadd.f32 %v3097, %v3209
        %3211 = vmatprep.mubr.bf16.mxu0 0
        %3212 = vmatmul.mubr.bf16.gmra.mrb[0].mxu0 %v2810
        %v3213 = vpop.f32.mrb[0].mxu0
        %v3214 = vadd.f32 %v3101, %v3213
        %v3215 = vpop.f32.mrb[0].mxu0
        %v3216 = vadd.f32 %v3103, %v3215
        %v3217 = vpop.f32.mrb[0].mxu0
        %v3218 = vadd.f32 %v3105, %v3217
        %v3219 = vpop.f32.mrb[0].mxu0
        %v3220 = vadd.f32 %v3107, %v3219
        %3221 = vmatprep.mubr.bf16.mxu0 0
        %3222 = vmatmul.mubr.bf16.gmra.mrb[0].mxu0 %v2813
        %v3223 = vpop.f32.mrb[0].mxu0
        %v3224 = vadd.f32 %v3111, %v3223
        %v3225 = vpop.f32.mrb[0].mxu0
        %v3226 = vadd.f32 %v3113, %v3225
        %v3227 = vpop.f32.mrb[0].mxu0
        %v3228 = vadd.f32 %v3115, %v3227
        %v3229 = vpop.f32.mrb[0].mxu0
        %v3230 = vadd.f32 %v3117, %v3229
        %3231 = vmatprep.mubr.bf16.mxu0 0
        %3232 = vmatmul.mubr.bf16.gmra.mrb[0].mxu0 %v2816
        %v3233 = vpop.f32.mrb[0].mxu0
        %v3234 = vadd.f32 %v3121, %v3233
        %v3235 = vpop.f32.mrb[0].mxu0
        %v3236 = vadd.f32 %v3123, %v3235
        %v3237 = vpop.f32.mrb[0].mxu0
        %v3238 = vadd.f32 %v3125, %v3237
        %v3239 = vpop.f32.mrb[0].mxu0
        %v3240 = vadd.f32 %v3127, %v3239
        %3241 = vmatprep.mubr.bf16.mxu0 0
        %3242 = vmatmul.mubr.bf16.gmra.mrb[0].mxu0 %v2819
        %v3243 = vpop.f32.mrb[0].mxu0
        %v3244 = vadd.f32 %v3131, %v3243
        %v3245 = vpop.f32.mrb[0].mxu0
        %v3246 = vadd.f32 %v3133, %v3245
        %v3247 = vpop.f32.mrb[0].mxu0
        %v3248 = vadd.f32 %v3135, %v3247
        %v3249 = vpop.f32.mrb[0].mxu0
        %v3250 = vadd.f32 %v3137, %v3249
        %3251 = vmatprep.mubr.bf16.mxu0 0
        %3252 = vmatmul.mubr.bf16.gmra.mrb[0].mxu0 %v2822
        %v3253 = vpop.f32.mrb[0].mxu0
        %v3254 = vadd.f32 %v3141, %v3253
        %v3255 = vpop.f32.mrb[0].mxu0
        %v3256 = vadd.f32 %v3143, %v3255
        %v3257 = vpop.f32.mrb[0].mxu0
        %v3258 = vadd.f32 %v3145, %v3257
        %v3259 = vpop.f32.mrb[0].mxu0
        %v3260 = vadd.f32 %v3147, %v3259
        %3261 = vmatprep.mubr.bf16.mxu0 0
        %3262 = vmatmul.mubr.bf16.gmra.mrb[0].mxu0 %v2825
        %v3263 = vpop.f32.mrb[0].mxu0
        %v3264 = vadd.f32 %v3151, %v3263
        %v3265 = vpop.f32.mrb[0].mxu0
        %v3266 = vadd.f32 %v3153, %v3265
        %v3267 = vpop.f32.mrb[0].mxu0
        %v3268 = vadd.f32 %v3155, %v3267
        %v3269 = vpop.f32.mrb[0].mxu0
        %v3270 = vadd.f32 %v3157, %v3269
        %3271 = vmatprep.mubr.bf16.mxu0 0
        %3272 = vmatmul.mubr.bf16.gmra.mrb[0].mxu0 %v2828
        %v3273 = vpop.f32.mrb[0].mxu0
        %v3274 = vadd.f32 %v3161, %v3273
        %v3275 = vpop.f32.mrb[0].mxu0
        %v3276 = vadd.f32 %v3163, %v3275
        %v3277 = vpop.f32.mrb[0].mxu0
        %v3278 = vadd.f32 %v3165, %v3277
        %v3279 = vpop.f32.mrb[0].mxu0
        %v3280 = vadd.f32 %v3167, %v3279
        %3281 = vdwg.mxu0
        %3282 = vmatprep.subr.bf16.mxu0 %v2308
        %3283 = vmatpush1.bf16.msra.mxu0 %v2307
        %3284 = vmatprep.subr.bf16.mxu0 %v2313
        %3285 = vmatpush1.bf16.msra.mxu0 %v2312
        %3286 = vmatprep.subr.bf16.mxu0 %v2318
        %3287 = vmatpush1.bf16.msra.mxu0 %v2317
        %3288 = vmatprep.subr.bf16.mxu0 %v2323
        %3289 = vmatpush1.bf16.msra.mxu0 %v2322
        %3290 = vmatprep.subr.bf16.mxu0 %v2328
        %3291 = vmatpush1.bf16.msra.mxu0 %v2327
        %3292 = vmatprep.subr.bf16.mxu0 %v2333
        %3293 = vmatpush1.bf16.msra.mxu0 %v2332
        %3294 = vmatprep.subr.bf16.mxu0 %v2338
        %3295 = vmatpush1.bf16.msra.mxu0 %v2337
        %3296 = vmatprep.subr.bf16.mxu0 %v2343
        %3297 = vmatpush1.bf16.msra.mxu0 %v2342
        %3298 = vmatprep.subr.bf16.mxu0 %v2348
        %3299 = vmatpush1.bf16.msra.mxu0 %v2347
        %3300 = vmatprep.subr.bf16.mxu0 %v2353
        %3301 = vmatpush1.bf16.msra.mxu0 %v2352
        %3302 = vmatprep.subr.bf16.mxu0 %v2358
        %3303 = vmatpush1.bf16.msra.mxu0 %v2357
        %3304 = vmatprep.subr.bf16.mxu0 %v2363
        %3305 = vmatpush1.bf16.msra.mxu0 %v2362
        %3306 = vmatprep.subr.bf16.mxu0 %v2368
        %3307 = vmatpush1.bf16.msra.mxu0 %v2367
        %3308 = vmatprep.subr.bf16.mxu0 %v2373
        %3309 = vmatpush1.bf16.msra.mxu0 %v2372
        %3310 = vmatprep.subr.bf16.mxu0 %v2378
        %3311 = vmatpush1.bf16.msra.mxu0 %v2377
        %3312 = vmatprep.subr.bf16.mxu0 %v2383
        %3313 = vmatpush1.bf16.msra.mxu0 %v2382
        %3314 = vmatprep.mubr.bf16.mxu0 %v1130
        %3315 = vmatmul.mubr.bf16.gmra.mrb[0].mxu0 %v1129
        %v3316 = vpop.f32.mrb[0].mxu0
        %v3317 = vadd.f32 %v1496, %v3316
        %v3318 = vpop.f32.mrb[0].mxu0
        %v3319 = vadd.f32 %v1500, %v3318
        %v3320 = vpop.f32.mrb[0].mxu0
        %v3321 = vadd.f32 %v1496, %v3320
        %v3322 = vpop.f32.mrb[0].mxu0
        %v3323 = vadd.f32 %v1500, %v3322
        %3324 = vmatprep.mubr.bf16.mxu0 %v1137
        %3325 = vmatmul.mubr.bf16.gmra.mrb[0].mxu0 %v1136
        %v3326 = vpop.f32.mrb[0].mxu0
        %v3327 = vadd.f32 %v1496, %v3326
        %v3328 = vpop.f32.mrb[0].mxu0
        %v3329 = vadd.f32 %v1500, %v3328
        %v3330 = vpop.f32.mrb[0].mxu0
        %v3331 = vadd.f32 %v1496, %v3330
        %v3332 = vpop.f32.mrb[0].mxu0
        %v3333 = vadd.f32 %v1500, %v3332
        %3334 = vmatprep.mubr.bf16.mxu0 %v1144
        %3335 = vmatmul.mubr.bf16.gmra.mrb[0].mxu0 %v1143
        %v3336 = vpop.f32.mrb[0].mxu0
        %v3337 = vadd.f32 %v1496, %v3336
        %v3338 = vpop.f32.mrb[0].mxu0
        %v3339 = vadd.f32 %v1500, %v3338
        %v3340 = vpop.f32.mrb[0].mxu0
        %v3341 = vadd.f32 %v1496, %v3340
        %v3342 = vpop.f32.mrb[0].mxu0
        %v3343 = vadd.f32 %v1500, %v3342
        %3344 = vmatprep.mubr.bf16.mxu0 %v1151
        %3345 = vmatmul.mubr.bf16.gmra.mrb[0].mxu0 %v1150
        %v3346 = vpop.f32.mrb[0].mxu0
        %v3347 = vadd.f32 %v1496, %v3346
        %v3348 = vpop.f32.mrb[0].mxu0
        %v3349 = vadd.f32 %v1500, %v3348
        %v3350 = vpop.f32.mrb[0].mxu0
        %v3351 = vadd.f32 %v1496, %v3350
        %v3352 = vpop.f32.mrb[0].mxu0
        %v3353 = vadd.f32 %v1500, %v3352
        %3354 = vmatprep.mubr.bf16.mxu0 %v1158
        %3355 = vmatmul.mubr.bf16.gmra.mrb[0].mxu0 %v1157
        %v3356 = vpop.f32.mrb[0].mxu0
        %v3357 = vadd.f32 %v1496, %v3356
        %v3358 = vpop.f32.mrb[0].mxu0
        %v3359 = vadd.f32 %v1500, %v3358
        %v3360 = vpop.f32.mrb[0].mxu0
        %v3361 = vadd.f32 %v1496, %v3360
        %v3362 = vpop.f32.mrb[0].mxu0
        %v3363 = vadd.f32 %v1500, %v3362
        %3364 = vmatprep.mubr.bf16.mxu0 %v1165
        %3365 = vmatmul.mubr.bf16.gmra.mrb[0].mxu0 %v1164
        %v3366 = vpop.f32.mrb[0].mxu0
        %v3367 = vadd.f32 %v1496, %v3366
        %v3368 = vpop.f32.mrb[0].mxu0
        %v3369 = vadd.f32 %v1500, %v3368
        %v3370 = vpop.f32.mrb[0].mxu0
        %v3371 = vadd.f32 %v1496, %v3370
        %v3372 = vpop.f32.mrb[0].mxu0
        %v3373 = vadd.f32 %v1500, %v3372
        %3374 = vmatprep.mubr.bf16.mxu0 %v1172
        %3375 = vmatmul.mubr.bf16.gmra.mrb[0].mxu0 %v1171
        %v3376 = vpop.f32.mrb[0].mxu0
        %v3377 = vadd.f32 %v1496, %v3376
        %v3378 = vpop.f32.mrb[0].mxu0
        %v3379 = vadd.f32 %v1500, %v3378
        %v3380 = vpop.f32.mrb[0].mxu0
        %v3381 = vadd.f32 %v1496, %v3380
        %v3382 = vpop.f32.mrb[0].mxu0
        %v3383 = vadd.f32 %v1500, %v3382
        %3384 = vmatprep.mubr.bf16.mxu0 %v1179
        %3385 = vmatmul.mubr.bf16.gmra.mrb[0].mxu0 %v1178
        %v3386 = vpop.f32.mrb[0].mxu0
        %v3387 = vadd.f32 %v1496, %v3386
        %v3388 = vpop.f32.mrb[0].mxu0
        %v3389 = vadd.f32 %v1500, %v3388
        %v3390 = vpop.f32.mrb[0].mxu0
        %v3391 = vadd.f32 %v1496, %v3390
        %v3392 = vpop.f32.mrb[0].mxu0
        %v3393 = vadd.f32 %v1500, %v3392
        %3394 = vdwg.mxu0
        %3395 = vmatprep.subr.bf16.mxu0 %v2388
        %3396 = vmatpush1.bf16.msra.mxu0 %v2387
        %3397 = vmatprep.subr.bf16.mxu0 %v2393
        %3398 = vmatpush1.bf16.msra.mxu0 %v2392
        %3399 = vmatprep.subr.bf16.mxu0 %v2398
        %3400 = vmatpush1.bf16.msra.mxu0 %v2397
        %3401 = vmatprep.subr.bf16.mxu0 %v2403
        %3402 = vmatpush1.bf16.msra.mxu0 %v2402
        %3403 = vmatprep.subr.bf16.mxu0 %v2408
        %3404 = vmatpush1.bf16.msra.mxu0 %v2407
        %3405 = vmatprep.subr.bf16.mxu0 %v2413
        %3406 = vmatpush1.bf16.msra.mxu0 %v2412
        %3407 = vmatprep.subr.bf16.mxu0 %v2418
        %3408 = vmatpush1.bf16.msra.mxu0 %v2417
        %3409 = vmatprep.subr.bf16.mxu0 %v2423
        %3410 = vmatpush1.bf16.msra.mxu0 %v2422
        %3411 = vmatprep.subr.bf16.mxu0 %v2428
        %3412 = vmatpush1.bf16.msra.mxu0 %v2427
        %3413 = vmatprep.subr.bf16.mxu0 %v2433
        %3414 = vmatpush1.bf16.msra.mxu0 %v2432
        %3415 = vmatprep.subr.bf16.mxu0 %v2438
        %3416 = vmatpush1.bf16.msra.mxu0 %v2437
        %3417 = vmatprep.subr.bf16.mxu0 %v2443
        %3418 = vmatpush1.bf16.msra.mxu0 %v2442
        %3419 = vmatprep.subr.bf16.mxu0 %v2448
        %3420 = vmatpush1.bf16.msra.mxu0 %v2447
        %3421 = vmatprep.subr.bf16.mxu0 %v2453
        %3422 = vmatpush1.bf16.msra.mxu0 %v2452
        %3423 = vmatprep.subr.bf16.mxu0 %v2458
        %3424 = vmatpush1.bf16.msra.mxu0 %v2457
        %3425 = vmatprep.subr.bf16.mxu0 %v2463
        %3426 = vmatpush1.bf16.msra.mxu0 %v2462
        %3427 = vmatprep.mubr.bf16.mxu0 %v1132
        %3428 = vmatmul.mubr.bf16.gmra.mrb[0].mxu0 %v1131
        %v3429 = vpop.f32.mrb[0].mxu0
        %v3430 = vadd.f32 %v3317, %v3429
        %v3431 = vpop.f32.mrb[0].mxu0
        %v3432 = vadd.f32 %v3319, %v3431
        %v3433 = vpop.f32.mrb[0].mxu0
        %v3434 = vadd.f32 %v3321, %v3433
        %v3435 = vpop.f32.mrb[0].mxu0
        %v3436 = vadd.f32 %v3323, %v3435
        %3437 = vmatprep.mubr.bf16.mxu0 %v1139
        %3438 = vmatmul.mubr.bf16.gmra.mrb[0].mxu0 %v1138
        %v3439 = vpop.f32.mrb[0].mxu0
        %v3440 = vadd.f32 %v3327, %v3439
        %v3441 = vpop.f32.mrb[0].mxu0
        %v3442 = vadd.f32 %v3329, %v3441
        %v3443 = vpop.f32.mrb[0].mxu0
        %v3444 = vadd.f32 %v3331, %v3443
        %v3445 = vpop.f32.mrb[0].mxu0
        %v3446 = vadd.f32 %v3333, %v3445
        %3447 = vmatprep.mubr.bf16.mxu0 %v1146
        %3448 = vmatmul.mubr.bf16.gmra.mrb[0].mxu0 %v1145
        %v3449 = vpop.f32.mrb[0].mxu0
        %v3450 = vadd.f32 %v3337, %v3449
        %v3451 = vpop.f32.mrb[0].mxu0
        %v3452 = vadd.f32 %v3339, %v3451
        %v3453 = vpop.f32.mrb[0].mxu0
        %v3454 = vadd.f32 %v3341, %v3453
        %v3455 = vpop.f32.mrb[0].mxu0
        %v3456 = vadd.f32 %v3343, %v3455
        %3457 = vmatprep.mubr.bf16.mxu0 %v1153
        %3458 = vmatmul.mubr.bf16.gmra.mrb[0].mxu0 %v1152
        %v3459 = vpop.f32.mrb[0].mxu0
        %v3460 = vadd.f32 %v3347, %v3459
        %v3461 = vpop.f32.mrb[0].mxu0
        %v3462 = vadd.f32 %v3349, %v3461
        %v3463 = vpop.f32.mrb[0].mxu0
        %v3464 = vadd.f32 %v3351, %v3463
        %v3465 = vpop.f32.mrb[0].mxu0
        %v3466 = vadd.f32 %v3353, %v3465
        %3467 = vmatprep.mubr.bf16.mxu0 %v1160
        %3468 = vmatmul.mubr.bf16.gmra.mrb[0].mxu0 %v1159
        %v3469 = vpop.f32.mrb[0].mxu0
        %v3470 = vadd.f32 %v3357, %v3469
        %v3471 = vpop.f32.mrb[0].mxu0
        %v3472 = vadd.f32 %v3359, %v3471
        %v3473 = vpop.f32.mrb[0].mxu0
        %v3474 = vadd.f32 %v3361, %v3473
        %v3475 = vpop.f32.mrb[0].mxu0
        %v3476 = vadd.f32 %v3363, %v3475
        %3477 = vmatprep.mubr.bf16.mxu0 %v1167
        %3478 = vmatmul.mubr.bf16.gmra.mrb[0].mxu0 %v1166
        %v3479 = vpop.f32.mrb[0].mxu0
        %v3480 = vadd.f32 %v3367, %v3479
        %v3481 = vpop.f32.mrb[0].mxu0
        %v3482 = vadd.f32 %v3369, %v3481
        %v3483 = vpop.f32.mrb[0].mxu0
        %v3484 = vadd.f32 %v3371, %v3483
        %v3485 = vpop.f32.mrb[0].mxu0
        %v3486 = vadd.f32 %v3373, %v3485
        %3487 = vmatprep.mubr.bf16.mxu0 %v1174
        %3488 = vmatmul.mubr.bf16.gmra.mrb[0].mxu0 %v1173
        %v3489 = vpop.f32.mrb[0].mxu0
        %v3490 = vadd.f32 %v3377, %v3489
        %v3491 = vpop.f32.mrb[0].mxu0
        %v3492 = vadd.f32 %v3379, %v3491
        %v3493 = vpop.f32.mrb[0].mxu0
        %v3494 = vadd.f32 %v3381, %v3493
        %v3495 = vpop.f32.mrb[0].mxu0
        %v3496 = vadd.f32 %v3383, %v3495
        %3497 = vmatprep.mubr.bf16.mxu0 %v1181
        %3498 = vmatmul.mubr.bf16.gmra.mrb[0].mxu0 %v1180
        %v3499 = vpop.f32.mrb[0].mxu0
        %v3500 = vadd.f32 %v3387, %v3499
        %v3501 = vpop.f32.mrb[0].mxu0
        %v3502 = vadd.f32 %v3389, %v3501
        %v3503 = vpop.f32.mrb[0].mxu0
        %v3504 = vadd.f32 %v3391, %v3503
        %v3505 = vpop.f32.mrb[0].mxu0
        %v3506 = vadd.f32 %v3393, %v3505
        %3507 = vdwg.mxu0
        %3508 = vmatprep.subr.bf16.mxu0 %v2468
        %3509 = vmatpush1.bf16.msra.mxu0 %v2467
        %3510 = vmatprep.subr.bf16.mxu0 %v2473
        %3511 = vmatpush1.bf16.msra.mxu0 %v2472
        %3512 = vmatprep.subr.bf16.mxu0 %v2478
        %3513 = vmatpush1.bf16.msra.mxu0 %v2477
        %3514 = vmatprep.subr.bf16.mxu0 %v2483
        %3515 = vmatpush1.bf16.msra.mxu0 %v2482
        %3516 = vmatprep.subr.bf16.mxu0 %v2488
        %3517 = vmatpush1.bf16.msra.mxu0 %v2487
        %3518 = vmatprep.subr.bf16.mxu0 %v2493
        %3519 = vmatpush1.bf16.msra.mxu0 %v2492
        %3520 = vmatprep.subr.bf16.mxu0 %v2498
        %3521 = vmatpush1.bf16.msra.mxu0 %v2497
        %3522 = vmatprep.subr.bf16.mxu0 %v2503
        %3523 = vmatpush1.bf16.msra.mxu0 %v2502
        %3524 = vmatprep.subr.bf16.mxu0 %v2508
        %3525 = vmatpush1.bf16.msra.mxu0 %v2507
        %3526 = vmatprep.subr.bf16.mxu0 %v2513
        %3527 = vmatpush1.bf16.msra.mxu0 %v2512
        %3528 = vmatprep.subr.bf16.mxu0 %v2518
        %3529 = vmatpush1.bf16.msra.mxu0 %v2517
        %3530 = vmatprep.subr.bf16.mxu0 %v2523
        %3531 = vmatpush1.bf16.msra.mxu0 %v2522
        %3532 = vmatprep.subr.bf16.mxu0 %v2528
        %3533 = vmatpush1.bf16.msra.mxu0 %v2527
        %3534 = vmatprep.subr.bf16.mxu0 %v2533
        %3535 = vmatpush1.bf16.msra.mxu0 %v2532
        %3536 = vmatprep.subr.bf16.mxu0 %v2538
        %3537 = vmatpush1.bf16.msra.mxu0 %v2537
        %3538 = vmatprep.subr.bf16.mxu0 %v2543
        %3539 = vmatpush1.bf16.msra.mxu0 %v2542
        %3540 = vmatprep.mubr.bf16.mxu0 %v1134
        %3541 = vmatmul.mubr.bf16.gmra.mrb[0].mxu0 %v1133
        %v3542 = vpop.f32.mrb[0].mxu0
        %v3543 = vadd.f32 %v3430, %v3542
        %v3544 = vpop.f32.mrb[0].mxu0
        %v3545 = vadd.f32 %v3432, %v3544
        %v3546 = vpop.f32.mrb[0].mxu0
        %v3547 = vadd.f32 %v3434, %v3546
        %v3548 = vpop.f32.mrb[0].mxu0
        %v3549 = vadd.f32 %v3436, %v3548
        %3550 = vmatprep.mubr.bf16.mxu0 %v1141
        %3551 = vmatmul.mubr.bf16.gmra.mrb[0].mxu0 %v1140
        %v3552 = vpop.f32.mrb[0].mxu0
        %v3553 = vadd.f32 %v3440, %v3552
        %v3554 = vpop.f32.mrb[0].mxu0
        %v3555 = vadd.f32 %v3442, %v3554
        %v3556 = vpop.f32.mrb[0].mxu0
        %v3557 = vadd.f32 %v3444, %v3556
        %v3558 = vpop.f32.mrb[0].mxu0
        %v3559 = vadd.f32 %v3446, %v3558
        %3560 = vmatprep.mubr.bf16.mxu0 %v1148
        %3561 = vmatmul.mubr.bf16.gmra.mrb[0].mxu0 %v1147
        %v3562 = vpop.f32.mrb[0].mxu0
        %v3563 = vadd.f32 %v3450, %v3562
        %v3564 = vpop.f32.mrb[0].mxu0
        %v3565 = vadd.f32 %v3452, %v3564
        %v3566 = vpop.f32.mrb[0].mxu0
        %v3567 = vadd.f32 %v3454, %v3566
        %v3568 = vpop.f32.mrb[0].mxu0
        %v3569 = vadd.f32 %v3456, %v3568
        %3570 = vmatprep.mubr.bf16.mxu0 %v1155
        %3571 = vmatmul.mubr.bf16.gmra.mrb[0].mxu0 %v1154
        %v3572 = vpop.f32.mrb[0].mxu0
        %v3573 = vadd.f32 %v3460, %v3572
        %v3574 = vpop.f32.mrb[0].mxu0
        %v3575 = vadd.f32 %v3462, %v3574
        %v3576 = vpop.f32.mrb[0].mxu0
        %v3577 = vadd.f32 %v3464, %v3576
        %v3578 = vpop.f32.mrb[0].mxu0
        %v3579 = vadd.f32 %v3466, %v3578
        %3580 = vmatprep.mubr.bf16.mxu0 %v1162
        %3581 = vmatmul.mubr.bf16.gmra.mrb[0].mxu0 %v1161
        %v3582 = vpop.f32.mrb[0].mxu0
        %v3583 = vadd.f32 %v3470, %v3582
        %v3584 = vpop.f32.mrb[0].mxu0
        %v3585 = vadd.f32 %v3472, %v3584
        %v3586 = vpop.f32.mrb[0].mxu0
        %v3587 = vadd.f32 %v3474, %v3586
        %v3588 = vpop.f32.mrb[0].mxu0
        %v3589 = vadd.f32 %v3476, %v3588
        %3590 = vmatprep.mubr.bf16.mxu0 %v1169
        %3591 = vmatmul.mubr.bf16.gmra.mrb[0].mxu0 %v1168
        %v3592 = vpop.f32.mrb[0].mxu0
        %v3593 = vadd.f32 %v3480, %v3592
        %v3594 = vpop.f32.mrb[0].mxu0
        %v3595 = vadd.f32 %v3482, %v3594
        %v3596 = vpop.f32.mrb[0].mxu0
        %v3597 = vadd.f32 %v3484, %v3596
        %v3598 = vpop.f32.mrb[0].mxu0
        %v3599 = vadd.f32 %v3486, %v3598
        %3600 = vmatprep.mubr.bf16.mxu0 %v1176
        %3601 = vmatmul.mubr.bf16.gmra.mrb[0].mxu0 %v1175
        %v3602 = vpop.f32.mrb[0].mxu0
        %v3603 = vadd.f32 %v3490, %v3602
        %v3604 = vpop.f32.mrb[0].mxu0
        %v3605 = vadd.f32 %v3492, %v3604
        %v3606 = vpop.f32.mrb[0].mxu0
        %v3607 = vadd.f32 %v3494, %v3606
        %v3608 = vpop.f32.mrb[0].mxu0
        %v3609 = vadd.f32 %v3496, %v3608
        %3610 = vmatprep.mubr.bf16.mxu0 %v1183
        %3611 = vmatmul.mubr.bf16.gmra.mrb[0].mxu0 %v1182
        %v3612 = vpop.f32.mrb[0].mxu0
        %v3613 = vadd.f32 %v3500, %v3612
        %v3614 = vpop.f32.mrb[0].mxu0
        %v3615 = vadd.f32 %v3502, %v3614
        %v3616 = vpop.f32.mrb[0].mxu0
        %v3617 = vadd.f32 %v3504, %v3616
        %v3618 = vpop.f32.mrb[0].mxu0
        %v3619 = vadd.f32 %v3506, %v3618
        %3620 = vdwg.mxu0
        %3621 = vmatprep.subr.bf16.mxu0 %v2548
        %3622 = vmatpush1.bf16.msra.mxu0 %v2547
        %3623 = vmatprep.subr.bf16.mxu0 %v2553
        %3624 = vmatpush1.bf16.msra.mxu0 %v2552
        %3625 = vmatprep.subr.bf16.mxu0 0
        %3626 = vmatpush1.bf16.msra.mxu0 0
        %3627 = vmatprep.subr.bf16.mxu0 0
        %3628 = vmatpush1.bf16.msra.mxu0 0
        %3629 = vmatprep.subr.bf16.mxu0 0
        %3630 = vmatpush1.bf16.msra.mxu0 0
        %3631 = vmatprep.subr.bf16.mxu0 0
        %3632 = vmatpush1.bf16.msra.mxu0 0
        %3633 = vmatprep.subr.bf16.mxu0 0
        %3634 = vmatpush1.bf16.msra.mxu0 0
        %3635 = vmatprep.subr.bf16.mxu0 0
        %3636 = vmatpush1.bf16.msra.mxu0 0
        %3637 = vmatprep.subr.bf16.mxu0 0
        %3638 = vmatpush1.bf16.msra.mxu0 0
        %3639 = vmatprep.subr.bf16.mxu0 0
        %3640 = vmatpush1.bf16.msra.mxu0 0
        %3641 = vmatprep.subr.bf16.mxu0 0
        %3642 = vmatpush1.bf16.msra.mxu0 0
        %3643 = vmatprep.subr.bf16.mxu0 0
        %3644 = vmatpush1.bf16.msra.mxu0 0
        %3645 = vmatprep.subr.bf16.mxu0 0
        %3646 = vmatpush1.bf16.msra.mxu0 0
        %3647 = vmatprep.subr.bf16.mxu0 0
        %3648 = vmatpush1.bf16.msra.mxu0 0
        %3649 = vmatprep.subr.bf16.mxu0 0
        %3650 = vmatpush1.bf16.msra.mxu0 0
        %3651 = vmatprep.subr.bf16.mxu0 0
        %3652 = vmatpush1.bf16.msra.mxu0 0
        %3653 = vmatprep.mubr.bf16.mxu0 0
        %3654 = vmatmul.mubr.bf16.gmra.mrb[0].mxu0 %v2807
        %v3655 = vpop.f32.mrb[0].mxu0
        %v3656 = vadd.f32 %v3543, %v3655
        %v3657 = vpop.f32.mrb[0].mxu0
        %v3658 = vadd.f32 %v3545, %v3657
        %v3659 = vpop.f32.mrb[0].mxu0
        %v3660 = vadd.f32 %v3547, %v3659
        %v3661 = vpop.f32.mrb[0].mxu0
        %v3662 = vadd.f32 %v3549, %v3661
        %3663 = vmatprep.mubr.bf16.mxu0 0
        %3664 = vmatmul.mubr.bf16.gmra.mrb[0].mxu0 %v2810
        %v3665 = vpop.f32.mrb[0].mxu0
        %v3666 = vadd.f32 %v3553, %v3665
        %v3667 = vpop.f32.mrb[0].mxu0
        %v3668 = vadd.f32 %v3555, %v3667
        %v3669 = vpop.f32.mrb[0].mxu0
        %v3670 = vadd.f32 %v3557, %v3669
        %v3671 = vpop.f32.mrb[0].mxu0
        %v3672 = vadd.f32 %v3559, %v3671
        %3673 = vmatprep.mubr.bf16.mxu0 0
        %3674 = vmatmul.mubr.bf16.gmra.mrb[0].mxu0 %v2813
        %v3675 = vpop.f32.mrb[0].mxu0
        %v3676 = vadd.f32 %v3563, %v3675
        %v3677 = vpop.f32.mrb[0].mxu0
        %v3678 = vadd.f32 %v3565, %v3677
        %v3679 = vpop.f32.mrb[0].mxu0
        %v3680 = vadd.f32 %v3567, %v3679
        %v3681 = vpop.f32.mrb[0].mxu0
        %v3682 = vadd.f32 %v3569, %v3681
        %3683 = vmatprep.mubr.bf16.mxu0 0
        %3684 = vmatmul.mubr.bf16.gmra.mrb[0].mxu0 %v2816
        %v3685 = vpop.f32.mrb[0].mxu0
        %v3686 = vadd.f32 %v3573, %v3685
        %v3687 = vpop.f32.mrb[0].mxu0
        %v3688 = vadd.f32 %v3575, %v3687
        %v3689 = vpop.f32.mrb[0].mxu0
        %v3690 = vadd.f32 %v3577, %v3689
        %v3691 = vpop.f32.mrb[0].mxu0
        %v3692 = vadd.f32 %v3579, %v3691
        %3693 = vmatprep.mubr.bf16.mxu0 0
        %3694 = vmatmul.mubr.bf16.gmra.mrb[0].mxu0 %v2819
        %v3695 = vpop.f32.mrb[0].mxu0
        %v3696 = vadd.f32 %v3583, %v3695
        %v3697 = vpop.f32.mrb[0].mxu0
        %v3698 = vadd.f32 %v3585, %v3697
        %v3699 = vpop.f32.mrb[0].mxu0
        %v3700 = vadd.f32 %v3587, %v3699
        %v3701 = vpop.f32.mrb[0].mxu0
        %v3702 = vadd.f32 %v3589, %v3701
        %3703 = vmatprep.mubr.bf16.mxu0 0
        %3704 = vmatmul.mubr.bf16.gmra.mrb[0].mxu0 %v2822
        %v3705 = vpop.f32.mrb[0].mxu0
        %v3706 = vadd.f32 %v3593, %v3705
        %v3707 = vpop.f32.mrb[0].mxu0
        %v3708 = vadd.f32 %v3595, %v3707
        %v3709 = vpop.f32.mrb[0].mxu0
        %v3710 = vadd.f32 %v3597, %v3709
        %v3711 = vpop.f32.mrb[0].mxu0
        %v3712 = vadd.f32 %v3599, %v3711
        %3713 = vmatprep.mubr.bf16.mxu0 0
        %3714 = vmatmul.mubr.bf16.gmra.mrb[0].mxu0 %v2825
        %v3715 = vpop.f32.mrb[0].mxu0
        %v3716 = vadd.f32 %v3603, %v3715
        %v3717 = vpop.f32.mrb[0].mxu0
        %v3718 = vadd.f32 %v3605, %v3717
        %v3719 = vpop.f32.mrb[0].mxu0
        %v3720 = vadd.f32 %v3607, %v3719
        %v3721 = vpop.f32.mrb[0].mxu0
        %v3722 = vadd.f32 %v3609, %v3721
        %3723 = vmatprep.mubr.bf16.mxu0 0
        %3724 = vmatmul.mubr.bf16.gmra.mrb[0].mxu0 %v2828
        %v3725 = vpop.f32.mrb[0].mxu0
        %v3726 = vadd.f32 %v3613, %v3725
        %v3727 = vpop.f32.mrb[0].mxu0
        %v3728 = vadd.f32 %v3615, %v3727
        %v3729 = vpop.f32.mrb[0].mxu0
        %v3730 = vadd.f32 %v3617, %v3729
        %v3731 = vpop.f32.mrb[0].mxu0
        %v3732 = vadd.f32 %v3619, %v3731
        %3733 = vdwg.mxu0
        %3734 = vmatprep.subr.bf16.mxu0 0
        %3735 = vmatpush1.bf16.msra.mxu0 %v2309
        %3736 = vmatprep.subr.bf16.mxu0 0
        %3737 = vmatpush1.bf16.msra.mxu0 %v2314
        %3738 = vmatprep.subr.bf16.mxu0 0
        %3739 = vmatpush1.bf16.msra.mxu0 %v2319
        %3740 = vmatprep.subr.bf16.mxu0 0
        %3741 = vmatpush1.bf16.msra.mxu0 %v2324
        %3742 = vmatprep.subr.bf16.mxu0 0
        %3743 = vmatpush1.bf16.msra.mxu0 %v2329
        %3744 = vmatprep.subr.bf16.mxu0 0
        %3745 = vmatpush1.bf16.msra.mxu0 %v2334
        %3746 = vmatprep.subr.bf16.mxu0 0
        %3747 = vmatpush1.bf16.msra.mxu0 %v2339
        %3748 = vmatprep.subr.bf16.mxu0 0
        %3749 = vmatpush1.bf16.msra.mxu0 %v2344
        %3750 = vmatprep.subr.bf16.mxu0 0
        %3751 = vmatpush1.bf16.msra.mxu0 %v2349
        %3752 = vmatprep.subr.bf16.mxu0 0
        %3753 = vmatpush1.bf16.msra.mxu0 %v2354
        %3754 = vmatprep.subr.bf16.mxu0 0
        %3755 = vmatpush1.bf16.msra.mxu0 %v2359
        %3756 = vmatprep.subr.bf16.mxu0 0
        %3757 = vmatpush1.bf16.msra.mxu0 %v2364
        %3758 = vmatprep.subr.bf16.mxu0 0
        %3759 = vmatpush1.bf16.msra.mxu0 %v2369
        %3760 = vmatprep.subr.bf16.mxu0 0
        %3761 = vmatpush1.bf16.msra.mxu0 %v2374
        %3762 = vmatprep.subr.bf16.mxu0 0
        %3763 = vmatpush1.bf16.msra.mxu0 %v2379
        %3764 = vmatprep.subr.bf16.mxu0 0
        %3765 = vmatpush1.bf16.msra.mxu0 %v2384
        %3766 = vmatprep.mubr.bf16.mxu0 %v1130
        %3767 = vmatmul.mubr.bf16.gmra.mrb[0].mxu0 %v1129
        %v3768 = vpop.f32.mrb[0].mxu0
        %v3769 = vadd.f32 %v1504, %v3768
        %v3770 = vpop.f32.mrb[0].mxu0
        %v3771 = vpop.f32.mrb[0].mxu0
        %v3772 = vadd.f32 %v1504, %v3771
        %v3773 = vpop.f32.mrb[0].mxu0
        %3774 = vmatprep.mubr.bf16.mxu0 %v1137
        %3775 = vmatmul.mubr.bf16.gmra.mrb[0].mxu0 %v1136
        %v3776 = vpop.f32.mrb[0].mxu0
        %v3777 = vadd.f32 %v1504, %v3776
        %v3778 = vpop.f32.mrb[0].mxu0
        %v3779 = vpop.f32.mrb[0].mxu0
        %v3780 = vadd.f32 %v1504, %v3779
        %v3781 = vpop.f32.mrb[0].mxu0
        %3782 = vmatprep.mubr.bf16.mxu0 %v1144
        %3783 = vmatmul.mubr.bf16.gmra.mrb[0].mxu0 %v1143
        %v3784 = vpop.f32.mrb[0].mxu0
        %v3785 = vadd.f32 %v1504, %v3784
        %v3786 = vpop.f32.mrb[0].mxu0
        %v3787 = vpop.f32.mrb[0].mxu0
        %v3788 = vadd.f32 %v1504, %v3787
        %v3789 = vpop.f32.mrb[0].mxu0
        %3790 = vmatprep.mubr.bf16.mxu0 %v1151
        %3791 = vmatmul.mubr.bf16.gmra.mrb[0].mxu0 %v1150
        %v3792 = vpop.f32.mrb[0].mxu0
        %v3793 = vadd.f32 %v1504, %v3792
        %v3794 = vpop.f32.mrb[0].mxu0
        %v3795 = vpop.f32.mrb[0].mxu0
        %v3796 = vadd.f32 %v1504, %v3795
        %v3797 = vpop.f32.mrb[0].mxu0
        %3798 = vmatprep.mubr.bf16.mxu0 %v1158
        %3799 = vmatmul.mubr.bf16.gmra.mrb[0].mxu0 %v1157
        %v3800 = vpop.f32.mrb[0].mxu0
        %v3801 = vadd.f32 %v1504, %v3800
        %v3802 = vpop.f32.mrb[0].mxu0
        %v3803 = vpop.f32.mrb[0].mxu0
        %v3804 = vadd.f32 %v1504, %v3803
        %v3805 = vpop.f32.mrb[0].mxu0
        %3806 = vmatprep.mubr.bf16.mxu0 %v1165
        %3807 = vmatmul.mubr.bf16.gmra.mrb[0].mxu0 %v1164
        %v3808 = vpop.f32.mrb[0].mxu0
        %v3809 = vadd.f32 %v1504, %v3808
        %v3810 = vpop.f32.mrb[0].mxu0
        %v3811 = vpop.f32.mrb[0].mxu0
        %v3812 = vadd.f32 %v1504, %v3811
        %v3813 = vpop.f32.mrb[0].mxu0
        %3814 = vmatprep.mubr.bf16.mxu0 %v1172
        %3815 = vmatmul.mubr.bf16.gmra.mrb[0].mxu0 %v1171
        %v3816 = vpop.f32.mrb[0].mxu0
        %v3817 = vadd.f32 %v1504, %v3816
        %v3818 = vpop.f32.mrb[0].mxu0
        %v3819 = vpop.f32.mrb[0].mxu0
        %v3820 = vadd.f32 %v1504, %v3819
        %v3821 = vpop.f32.mrb[0].mxu0
        %3822 = vmatprep.mubr.bf16.mxu0 %v1179
        %3823 = vmatmul.mubr.bf16.gmra.mrb[0].mxu0 %v1178
        %v3824 = vpop.f32.mrb[0].mxu0
        %v3825 = vadd.f32 %v1504, %v3824
        %v3826 = vpop.f32.mrb[0].mxu0
        %v3827 = vpop.f32.mrb[0].mxu0
        %v3828 = vadd.f32 %v1504, %v3827
        %v3829 = vpop.f32.mrb[0].mxu0
        %3830 = vdwg.mxu0
        %3831 = vmatprep.subr.bf16.mxu0 0
        %3832 = vmatpush1.bf16.msra.mxu0 %v2389
        %3833 = vmatprep.subr.bf16.mxu0 0
        %3834 = vmatpush1.bf16.msra.mxu0 %v2394
        %3835 = vmatprep.subr.bf16.mxu0 0
        %3836 = vmatpush1.bf16.msra.mxu0 %v2399
        %3837 = vmatprep.subr.bf16.mxu0 0
        %3838 = vmatpush1.bf16.msra.mxu0 %v2404
        %3839 = vmatprep.subr.bf16.mxu0 0
        %3840 = vmatpush1.bf16.msra.mxu0 %v2409
        %3841 = vmatprep.subr.bf16.mxu0 0
        %3842 = vmatpush1.bf16.msra.mxu0 %v2414
        %3843 = vmatprep.subr.bf16.mxu0 0
        %3844 = vmatpush1.bf16.msra.mxu0 %v2419
        %3845 = vmatprep.subr.bf16.mxu0 0
        %3846 = vmatpush1.bf16.msra.mxu0 %v2424
        %3847 = vmatprep.subr.bf16.mxu0 0
        %3848 = vmatpush1.bf16.msra.mxu0 %v2429
        %3849 = vmatprep.subr.bf16.mxu0 0
        %3850 = vmatpush1.bf16.msra.mxu0 %v2434
        %3851 = vmatprep.subr.bf16.mxu0 0
        %3852 = vmatpush1.bf16.msra.mxu0 %v2439
        %3853 = vmatprep.subr.bf16.mxu0 0
        %3854 = vmatpush1.bf16.msra.mxu0 %v2444
        %3855 = vmatprep.subr.bf16.mxu0 0
        %3856 = vmatpush1.bf16.msra.mxu0 %v2449
        %3857 = vmatprep.subr.bf16.mxu0 0
        %3858 = vmatpush1.bf16.msra.mxu0 %v2454
        %3859 = vmatprep.subr.bf16.mxu0 0
        %3860 = vmatpush1.bf16.msra.mxu0 %v2459
        %3861 = vmatprep.subr.bf16.mxu0 0
        %3862 = vmatpush1.bf16.msra.mxu0 %v2464
        %3863 = vmatprep.mubr.bf16.mxu0 %v1132
        %3864 = vmatmul.mubr.bf16.gmra.mrb[0].mxu0 %v1131
        %v3865 = vpop.f32.mrb[0].mxu0
        %v3866 = vadd.f32 %v3769, %v3865
        %v3867 = vpop.f32.mrb[0].mxu0
        %v3868 = vpop.f32.mrb[0].mxu0
        %v3869 = vadd.f32 %v3772, %v3868
        %v3870 = vpop.f32.mrb[0].mxu0
        %3871 = vmatprep.mubr.bf16.mxu0 %v1139
        %3872 = vmatmul.mubr.bf16.gmra.mrb[0].mxu0 %v1138
        %v3873 = vpop.f32.mrb[0].mxu0
        %v3874 = vadd.f32 %v3777, %v3873
        %v3875 = vpop.f32.mrb[0].mxu0
        %v3876 = vpop.f32.mrb[0].mxu0
        %v3877 = vadd.f32 %v3780, %v3876
        %v3878 = vpop.f32.mrb[0].mxu0
        %3879 = vmatprep.mubr.bf16.mxu0 %v1146
        %3880 = vmatmul.mubr.bf16.gmra.mrb[0].mxu0 %v1145
        %v3881 = vpop.f32.mrb[0].mxu0
        %v3882 = vadd.f32 %v3785, %v3881
        %v3883 = vpop.f32.mrb[0].mxu0
        %v3884 = vpop.f32.mrb[0].mxu0
        %v3885 = vadd.f32 %v3788, %v3884
        %v3886 = vpop.f32.mrb[0].mxu0
        %3887 = vmatprep.mubr.bf16.mxu0 %v1153
        %3888 = vmatmul.mubr.bf16.gmra.mrb[0].mxu0 %v1152
        %v3889 = vpop.f32.mrb[0].mxu0
        %v3890 = vadd.f32 %v3793, %v3889
        %v3891 = vpop.f32.mrb[0].mxu0
        %v3892 = vpop.f32.mrb[0].mxu0
        %v3893 = vadd.f32 %v3796, %v3892
        %v3894 = vpop.f32.mrb[0].mxu0
        %3895 = vmatprep.mubr.bf16.mxu0 %v1160
        %3896 = vmatmul.mubr.bf16.gmra.mrb[0].mxu0 %v1159
        %v3897 = vpop.f32.mrb[0].mxu0
        %v3898 = vadd.f32 %v3801, %v3897
        %v3899 = vpop.f32.mrb[0].mxu0
        %v3900 = vpop.f32.mrb[0].mxu0
        %v3901 = vadd.f32 %v3804, %v3900
        %v3902 = vpop.f32.mrb[0].mxu0
        %3903 = vmatprep.mubr.bf16.mxu0 %v1167
        %3904 = vmatmul.mubr.bf16.gmra.mrb[0].mxu0 %v1166
        %v3905 = vpop.f32.mrb[0].mxu0
        %v3906 = vadd.f32 %v3809, %v3905
        %v3907 = vpop.f32.mrb[0].mxu0
        %v3908 = vpop.f32.mrb[0].mxu0
        %v3909 = vadd.f32 %v3812, %v3908
        %v3910 = vpop.f32.mrb[0].mxu0
        %3911 = vmatprep.mubr.bf16.mxu0 %v1174
        %3912 = vmatmul.mubr.bf16.gmra.mrb[0].mxu0 %v1173
        %v3913 = vpop.f32.mrb[0].mxu0
        %v3914 = vadd.f32 %v3817, %v3913
        %v3915 = vpop.f32.mrb[0].mxu0
        %v3916 = vpop.f32.mrb[0].mxu0
        %v3917 = vadd.f32 %v3820, %v3916
        %v3918 = vpop.f32.mrb[0].mxu0
        %3919 = vmatprep.mubr.bf16.mxu0 %v1181
        %3920 = vmatmul.mubr.bf16.gmra.mrb[0].mxu0 %v1180
        %v3921 = vpop.f32.mrb[0].mxu0
        %v3922 = vadd.f32 %v3825, %v3921
        %v3923 = vpop.f32.mrb[0].mxu0
        %v3924 = vpop.f32.mrb[0].mxu0
        %v3925 = vadd.f32 %v3828, %v3924
        %v3926 = vpop.f32.mrb[0].mxu0
        %3927 = vdwg.mxu0
        %3928 = vmatprep.subr.bf16.mxu0 0
        %3929 = vmatpush1.bf16.msra.mxu0 %v2469
        %3930 = vmatprep.subr.bf16.mxu0 0
        %3931 = vmatpush1.bf16.msra.mxu0 %v2474
        %3932 = vmatprep.subr.bf16.mxu0 0
        %3933 = vmatpush1.bf16.msra.mxu0 %v2479
        %3934 = vmatprep.subr.bf16.mxu0 0
        %3935 = vmatpush1.bf16.msra.mxu0 %v2484
        %3936 = vmatprep.subr.bf16.mxu0 0
        %3937 = vmatpush1.bf16.msra.mxu0 %v2489
        %3938 = vmatprep.subr.bf16.mxu0 0
        %3939 = vmatpush1.bf16.msra.mxu0 %v2494
        %3940 = vmatprep.subr.bf16.mxu0 0
        %3941 = vmatpush1.bf16.msra.mxu0 %v2499
        %3942 = vmatprep.subr.bf16.mxu0 0
        %3943 = vmatpush1.bf16.msra.mxu0 %v2504
        %3944 = vmatprep.subr.bf16.mxu0 0
        %3945 = vmatpush1.bf16.msra.mxu0 %v2509
        %3946 = vmatprep.subr.bf16.mxu0 0
        %3947 = vmatpush1.bf16.msra.mxu0 %v2514
        %3948 = vmatprep.subr.bf16.mxu0 0
        %3949 = vmatpush1.bf16.msra.mxu0 %v2519
        %3950 = vmatprep.subr.bf16.mxu0 0
        %3951 = vmatpush1.bf16.msra.mxu0 %v2524
        %3952 = vmatprep.subr.bf16.mxu0 0
        %3953 = vmatpush1.bf16.msra.mxu0 %v2529
        %3954 = vmatprep.subr.bf16.mxu0 0
        %3955 = vmatpush1.bf16.msra.mxu0 %v2534
        %3956 = vmatprep.subr.bf16.mxu0 0
        %3957 = vmatpush1.bf16.msra.mxu0 %v2539
        %3958 = vmatprep.subr.bf16.mxu0 0
        %3959 = vmatpush1.bf16.msra.mxu0 %v2544
        %3960 = vmatprep.mubr.bf16.mxu0 %v1134
        %3961 = vmatmul.mubr.bf16.gmra.mrb[0].mxu0 %v1133
        %v3962 = vpop.f32.mrb[0].mxu0
        %v3963 = vadd.f32 %v3866, %v3962
        %v3964 = vpop.f32.mrb[0].mxu0
        %v3965 = vpop.f32.mrb[0].mxu0
        %v3966 = vadd.f32 %v3869, %v3965
        %v3967 = vpop.f32.mrb[0].mxu0
        %3968 = vmatprep.mubr.bf16.mxu0 %v1141
        %3969 = vmatmul.mubr.bf16.gmra.mrb[0].mxu0 %v1140
        %v3970 = vpop.f32.mrb[0].mxu0
        %v3971 = vadd.f32 %v3874, %v3970
        %v3972 = vpop.f32.mrb[0].mxu0
        %v3973 = vpop.f32.mrb[0].mxu0
        %v3974 = vadd.f32 %v3877, %v3973
        %v3975 = vpop.f32.mrb[0].mxu0
        %3976 = vmatprep.mubr.bf16.mxu0 %v1148
        %3977 = vmatmul.mubr.bf16.gmra.mrb[0].mxu0 %v1147
        %v3978 = vpop.f32.mrb[0].mxu0
        %v3979 = vadd.f32 %v3882, %v3978
        %v3980 = vpop.f32.mrb[0].mxu0
        %v3981 = vpop.f32.mrb[0].mxu0
        %v3982 = vadd.f32 %v3885, %v3981
        %v3983 = vpop.f32.mrb[0].mxu0
        %3984 = vmatprep.mubr.bf16.mxu0 %v1155
        %3985 = vmatmul.mubr.bf16.gmra.mrb[0].mxu0 %v1154
        %v3986 = vpop.f32.mrb[0].mxu0
        %v3987 = vadd.f32 %v3890, %v3986
        %v3988 = vpop.f32.mrb[0].mxu0
        %v3989 = vpop.f32.mrb[0].mxu0
        %v3990 = vadd.f32 %v3893, %v3989
        %v3991 = vpop.f32.mrb[0].mxu0
        %3992 = vmatprep.mubr.bf16.mxu0 %v1162
        %3993 = vmatmul.mubr.bf16.gmra.mrb[0].mxu0 %v1161
        %v3994 = vpop.f32.mrb[0].mxu0
        %v3995 = vadd.f32 %v3898, %v3994
        %v3996 = vpop.f32.mrb[0].mxu0
        %v3997 = vpop.f32.mrb[0].mxu0
        %v3998 = vadd.f32 %v3901, %v3997
        %v3999 = vpop.f32.mrb[0].mxu0
        %4000 = vmatprep.mubr.bf16.mxu0 %v1169
        %4001 = vmatmul.mubr.bf16.gmra.mrb[0].mxu0 %v1168
        %v4002 = vpop.f32.mrb[0].mxu0
        %v4003 = vadd.f32 %v3906, %v4002
        %v4004 = vpop.f32.mrb[0].mxu0
        %v4005 = vpop.f32.mrb[0].mxu0
        %v4006 = vadd.f32 %v3909, %v4005
        %v4007 = vpop.f32.mrb[0].mxu0
        %4008 = vmatprep.mubr.bf16.mxu0 %v1176
        %4009 = vmatmul.mubr.bf16.gmra.mrb[0].mxu0 %v1175
        %v4010 = vpop.f32.mrb[0].mxu0
        %v4011 = vadd.f32 %v3914, %v4010
        %v4012 = vpop.f32.mrb[0].mxu0
        %v4013 = vpop.f32.mrb[0].mxu0
        %v4014 = vadd.f32 %v3917, %v4013
        %v4015 = vpop.f32.mrb[0].mxu0
        %4016 = vmatprep.mubr.bf16.mxu0 %v1183
        %4017 = vmatmul.mubr.bf16.gmra.mrb[0].mxu0 %v1182
        %v4018 = vpop.f32.mrb[0].mxu0
        %v4019 = vadd.f32 %v3922, %v4018
        %v4020 = vpop.f32.mrb[0].mxu0
        %v4021 = vpop.f32.mrb[0].mxu0
        %v4022 = vadd.f32 %v3925, %v4021
        %v4023 = vpop.f32.mrb[0].mxu0
        %4024 = vdwg.mxu0
        %4025 = vmatprep.subr.bf16.mxu0 0
        %4026 = vmatpush1.bf16.msra.mxu0 %v2549
        %4027 = vmatprep.subr.bf16.mxu0 0
        %4028 = vmatpush1.bf16.msra.mxu0 %v2554
        %4029 = vmatprep.subr.bf16.mxu0 0
        %4030 = vmatpush1.bf16.msra.mxu0 0
        %4031 = vmatprep.subr.bf16.mxu0 0
        %4032 = vmatpush1.bf16.msra.mxu0 0
        %4033 = vmatprep.subr.bf16.mxu0 0
        %4034 = vmatpush1.bf16.msra.mxu0 0
        %4035 = vmatprep.subr.bf16.mxu0 0
        %4036 = vmatpush1.bf16.msra.mxu0 0
        %4037 = vmatprep.subr.bf16.mxu0 0
        %4038 = vmatpush1.bf16.msra.mxu0 0
        %4039 = vmatprep.subr.bf16.mxu0 0
        %4040 = vmatpush1.bf16.msra.mxu0 0
        %4041 = vmatprep.subr.bf16.mxu0 0
        %4042 = vmatpush1.bf16.msra.mxu0 0
        %4043 = vmatprep.subr.bf16.mxu0 0
        %4044 = vmatpush1.bf16.msra.mxu0 0
        %4045 = vmatprep.subr.bf16.mxu0 0
        %4046 = vmatpush1.bf16.msra.mxu0 0
        %4047 = vmatprep.subr.bf16.mxu0 0
        %4048 = vmatpush1.bf16.msra.mxu0 0
        %4049 = vmatprep.subr.bf16.mxu0 0
        %4050 = vmatpush1.bf16.msra.mxu0 0
        %4051 = vmatprep.subr.bf16.mxu0 0
        %4052 = vmatpush1.bf16.msra.mxu0 0
        %4053 = vmatprep.subr.bf16.mxu0 0
        %4054 = vmatpush1.bf16.msra.mxu0 0
        %4055 = vmatprep.subr.bf16.mxu0 0
        %4056 = vmatpush1.bf16.msra.mxu0 0
        %4057 = vmatprep.mubr.bf16.mxu0 0
        %4058 = vmatmul.mubr.bf16.gmra.mrb[0].mxu0 %v2807
        %v4059 = vpop.f32.mrb[0].mxu0
        %v4060 = vadd.f32 %v3963, %v4059
        %v4061 = vpop.f32.mrb[0].mxu0
        %v4062 = vpop.f32.mrb[0].mxu0
        %v4063 = vadd.f32 %v3966, %v4062
        %v4064 = vpop.f32.mrb[0].mxu0
        %4065 = vmatprep.mubr.bf16.mxu0 0
        %4066 = vmatmul.mubr.bf16.gmra.mrb[0].mxu0 %v2810
        %v4067 = vpop.f32.mrb[0].mxu0
        %v4068 = vadd.f32 %v3971, %v4067
        %v4069 = vpop.f32.mrb[0].mxu0
        %v4070 = vpop.f32.mrb[0].mxu0
        %v4071 = vadd.f32 %v3974, %v4070
        %v4072 = vpop.f32.mrb[0].mxu0
        %4073 = vmatprep.mubr.bf16.mxu0 0
        %4074 = vmatmul.mubr.bf16.gmra.mrb[0].mxu0 %v2813
        %v4075 = vpop.f32.mrb[0].mxu0
        %v4076 = vadd.f32 %v3979, %v4075
        %v4077 = vpop.f32.mrb[0].mxu0
        %v4078 = vpop.f32.mrb[0].mxu0
        %v4079 = vadd.f32 %v3982, %v4078
        %v4080 = vpop.f32.mrb[0].mxu0
        %4081 = vmatprep.mubr.bf16.mxu0 0
        %4082 = vmatmul.mubr.bf16.gmra.mrb[0].mxu0 %v2816
        %v4083 = vpop.f32.mrb[0].mxu0
        %v4084 = vadd.f32 %v3987, %v4083
        %v4085 = vpop.f32.mrb[0].mxu0
        %v4086 = vpop.f32.mrb[0].mxu0
        %v4087 = vadd.f32 %v3990, %v4086
        %v4088 = vpop.f32.mrb[0].mxu0
        %4089 = vmatprep.mubr.bf16.mxu0 0
        %4090 = vmatmul.mubr.bf16.gmra.mrb[0].mxu0 %v2819
        %v4091 = vpop.f32.mrb[0].mxu0
        %v4092 = vadd.f32 %v3995, %v4091
        %v4093 = vpop.f32.mrb[0].mxu0
        %v4094 = vpop.f32.mrb[0].mxu0
        %v4095 = vadd.f32 %v3998, %v4094
        %v4096 = vpop.f32.mrb[0].mxu0
        %4097 = vmatprep.mubr.bf16.mxu0 0
        %4098 = vmatmul.mubr.bf16.gmra.mrb[0].mxu0 %v2822
        %v4099 = vpop.f32.mrb[0].mxu0
        %v4100 = vadd.f32 %v4003, %v4099
        %v4101 = vpop.f32.mrb[0].mxu0
        %v4102 = vpop.f32.mrb[0].mxu0
        %v4103 = vadd.f32 %v4006, %v4102
        %v4104 = vpop.f32.mrb[0].mxu0
        %4105 = vmatprep.mubr.bf16.mxu0 0
        %4106 = vmatmul.mubr.bf16.gmra.mrb[0].mxu0 %v2825
        %v4107 = vpop.f32.mrb[0].mxu0
        %v4108 = vadd.f32 %v4011, %v4107
        %v4109 = vpop.f32.mrb[0].mxu0
        %v4110 = vpop.f32.mrb[0].mxu0
        %v4111 = vadd.f32 %v4014, %v4110
        %v4112 = vpop.f32.mrb[0].mxu0
        %4113 = vmatprep.mubr.bf16.mxu0 0
        %4114 = vmatmul.mubr.bf16.gmra.mrb[0].mxu0 %v2828
        %v4115 = vpop.f32.mrb[0].mxu0
        %v4116 = vadd.f32 %v4019, %v4115
        %v4117 = vpop.f32.mrb[0].mxu0
        %v4118 = vpop.f32.mrb[0].mxu0
        %v4119 = vadd.f32 %v4022, %v4118
        %v4120 = vpop.f32.mrb[0].mxu0
        %4121 = vdwg.mxu0
        %4123 = vset.pattern.permute.xlu0 0
        %4124 = vperm.xlu0 %4123, %v402
        %v4125 = vpop.permute.xlu0 %4124
        %4128 = vset.pattern.permute.xlu0 0
        %4129 = vperm.xlu0 %4128, %v403
        %v4130 = vpop.permute.xlu0 %4129
        %4133 = vset.pattern.permute.xlu0 0
        %4134 = vperm.xlu0 %4133, %v404
        %v4135 = vpop.permute.xlu0 %4134
        %4138 = vset.pattern.permute.xlu0 0
        %4139 = vperm.xlu0 %4138, %v405
        %v4140 = vpop.permute.xlu0 %4139
        %4143 = vset.pattern.permute.xlu0 0
        %4144 = vperm.xlu0 %4143, %v406
        %v4145 = vpop.permute.xlu0 %4144
        %4148 = vset.pattern.permute.xlu0 0
        %4149 = vperm.xlu0 %4148, %v407
        %v4150 = vpop.permute.xlu0 %4149
        %4153 = vset.pattern.permute.xlu0 0
        %4154 = vperm.xlu0 %4153, %v408
        %v4155 = vpop.permute.xlu0 %4154
        %4158 = vset.pattern.permute.xlu0 0
        %4159 = vperm.xlu0 %4158, %v409
        %v4160 = vpop.permute.xlu0 %4159
        %4163 = vset.pattern.permute.xlu0 0
        %4164 = vperm.xlu0 %4163, %v410
        %v4165 = vpop.permute.xlu0 %4164
        %4168 = vset.pattern.permute.xlu0 0
        %4169 = vperm.xlu0 %4168, %v411
        %v4170 = vpop.permute.xlu0 %4169
        %4173 = vset.pattern.permute.xlu0 0
        %4174 = vperm.xlu0 %4173, %v412
        %v4175 = vpop.permute.xlu0 %4174
        %4178 = vset.pattern.permute.xlu0 0
        %4179 = vperm.xlu0 %4178, %v413
        %v4180 = vpop.permute.xlu0 %4179
        %4183 = vset.pattern.permute.xlu0 0
        %4184 = vperm.xlu0 %4183, %v414
        %v4185 = vpop.permute.xlu0 %4184
        %4188 = vset.pattern.permute.xlu0 0
        %4189 = vperm.xlu0 %4188, %v415
        %v4190 = vpop.permute.xlu0 %4189
        %4193 = vset.pattern.permute.xlu0 0
        %4194 = vperm.xlu0 %4193, %v416
        %v4195 = vpop.permute.xlu0 %4194
        %4198 = vset.pattern.permute.xlu0 0
        %4199 = vperm.xlu0 %4198, %v417
        %v4200 = vpop.permute.xlu0 %4199
        %v4202 = vlaneseq
        %v4203 = vshrl.u32 %v4202, 7
        %v4204 = vsub.s32 0, %v4203
        %v4205 = vrot.slane %v418, %v4204
        %v4206 = vlaneseq
        %v4207 = vshrl.u32 %v4206, 7
        %v4208 = vsub.s32 0, %v4207
        %v4209 = vrot.slane %v419, %v4208
        %v4210 = vlaneseq
        %v4211 = vshrl.u32 %v4210, 7
        %v4212 = vsub.s32 0, %v4211
        %v4213 = vrot.slane %v420, %v4212
        %v4214 = vlaneseq
        %v4215 = vshrl.u32 %v4214, 7
        %v4216 = vsub.s32 0, %v4215
        %v4217 = vrot.slane %v421, %v4216
        %v4218 = vlaneseq
        %v4219 = vshrl.u32 %v4218, 7
        %v4220 = vsub.s32 0, %v4219
        %v4221 = vrot.slane %v422, %v4220
        %v4222 = vmul.f32 %v4125, %v4205
        %v4223 = vmul.f32 %v4125, %v4209
        %v4224 = vmul.f32 %v4125, %v4213
        %v4225 = vmul.f32 %v4125, %v4217
        %v4226 = vmul.f32 %v4125, %v4221
        %v4227 = vmul.f32 %v4130, %v4205
        %v4228 = vmul.f32 %v4130, %v4209
        %v4229 = vmul.f32 %v4130, %v4213
        %v4230 = vmul.f32 %v4130, %v4217
        %v4231 = vmul.f32 %v4130, %v4221
        %v4232 = vmul.f32 %v4135, %v4205
        %v4233 = vmul.f32 %v4135, %v4209
        %v4234 = vmul.f32 %v4135, %v4213
        %v4235 = vmul.f32 %v4135, %v4217
        %v4236 = vmul.f32 %v4135, %v4221
        %v4237 = vmul.f32 %v4140, %v4205
        %v4238 = vmul.f32 %v4140, %v4209
        %v4239 = vmul.f32 %v4140, %v4213
        %v4240 = vmul.f32 %v4140, %v4217
        %v4241 = vmul.f32 %v4140, %v4221
        %v4242 = vmul.f32 %v4145, %v4205
        %v4243 = vmul.f32 %v4145, %v4209
        %v4244 = vmul.f32 %v4145, %v4213
        %v4245 = vmul.f32 %v4145, %v4217
        %v4246 = vmul.f32 %v4145, %v4221
        %v4247 = vmul.f32 %v4150, %v4205
        %v4248 = vmul.f32 %v4150, %v4209
        %v4249 = vmul.f32 %v4150, %v4213
        %v4250 = vmul.f32 %v4150, %v4217
        %v4251 = vmul.f32 %v4150, %v4221
        %v4252 = vmul.f32 %v4155, %v4205
        %v4253 = vmul.f32 %v4155, %v4209
        %v4254 = vmul.f32 %v4155, %v4213
        %v4255 = vmul.f32 %v4155, %v4217
        %v4256 = vmul.f32 %v4155, %v4221
        %v4257 = vmul.f32 %v4160, %v4205
        %v4258 = vmul.f32 %v4160, %v4209
        %v4259 = vmul.f32 %v4160, %v4213
        %v4260 = vmul.f32 %v4160, %v4217
        %v4261 = vmul.f32 %v4160, %v4221
        %v4262 = vmul.f32 %v4165, %v4205
        %v4263 = vmul.f32 %v4165, %v4209
        %v4264 = vmul.f32 %v4165, %v4213
        %v4265 = vmul.f32 %v4165, %v4217
        %v4266 = vmul.f32 %v4165, %v4221
        %v4267 = vmul.f32 %v4170, %v4205
        %v4268 = vmul.f32 %v4170, %v4209
        %v4269 = vmul.f32 %v4170, %v4213
        %v4270 = vmul.f32 %v4170, %v4217
        %v4271 = vmul.f32 %v4170, %v4221
        %v4272 = vmul.f32 %v4175, %v4205
        %v4273 = vmul.f32 %v4175, %v4209
        %v4274 = vmul.f32 %v4175, %v4213
        %v4275 = vmul.f32 %v4175, %v4217
        %v4276 = vmul.f32 %v4175, %v4221
        %v4277 = vmul.f32 %v4180, %v4205
        %v4278 = vmul.f32 %v4180, %v4209
        %v4279 = vmul.f32 %v4180, %v4213
        %v4280 = vmul.f32 %v4180, %v4217
        %v4281 = vmul.f32 %v4180, %v4221
        %v4282 = vmul.f32 %v4185, %v4205
        %v4283 = vmul.f32 %v4185, %v4209
        %v4284 = vmul.f32 %v4185, %v4213
        %v4285 = vmul.f32 %v4185, %v4217
        %v4286 = vmul.f32 %v4185, %v4221
        %v4287 = vmul.f32 %v4190, %v4205
        %v4288 = vmul.f32 %v4190, %v4209
        %v4289 = vmul.f32 %v4190, %v4213
        %v4290 = vmul.f32 %v4190, %v4217
        %v4291 = vmul.f32 %v4190, %v4221
        %v4292 = vmul.f32 %v4195, %v4205
        %v4293 = vmul.f32 %v4195, %v4209
        %v4294 = vmul.f32 %v4195, %v4213
        %v4295 = vmul.f32 %v4195, %v4217
        %v4296 = vmul.f32 %v4195, %v4221
        %v4297 = vmul.f32 %v4200, %v4205
        %v4298 = vmul.f32 %v4200, %v4209
        %v4299 = vmul.f32 %v4200, %v4213
        %v4300 = vmul.f32 %v4200, %v4217
        %v4301 = vmul.f32 %v4200, %v4221
        %v4302 = vadd.f32 %v3204, %v4222
        %v4303 = vadd.f32 %v3206, %v4223
        %v4304 = vadd.f32 %v3656, %v4224
        %v4305 = vadd.f32 %v3658, %v4225
        %v4306 = vadd.f32 %v4060, %v4226
        %v4307 = vadd.f32 %v3208, %v4227
        %v4308 = vadd.f32 %v3210, %v4228
        %v4309 = vadd.f32 %v3660, %v4229
        %v4310 = vadd.f32 %v3662, %v4230
        %v4311 = vadd.f32 %v4063, %v4231
        %v4312 = vadd.f32 %v3214, %v4232
        %v4313 = vadd.f32 %v3216, %v4233
        %v4314 = vadd.f32 %v3666, %v4234
        %v4315 = vadd.f32 %v3668, %v4235
        %v4316 = vadd.f32 %v4068, %v4236
        %v4317 = vadd.f32 %v3218, %v4237
        %v4318 = vadd.f32 %v3220, %v4238
        %v4319 = vadd.f32 %v3670, %v4239
        %v4320 = vadd.f32 %v3672, %v4240
        %v4321 = vadd.f32 %v4071, %v4241
        %v4322 = vadd.f32 %v3224, %v4242
        %v4323 = vadd.f32 %v3226, %v4243
        %v4324 = vadd.f32 %v3676, %v4244
        %v4325 = vadd.f32 %v3678, %v4245
        %v4326 = vadd.f32 %v4076, %v4246
        %v4327 = vadd.f32 %v3228, %v4247
        %v4328 = vadd.f32 %v3230, %v4248
        %v4329 = vadd.f32 %v3680, %v4249
        %v4330 = vadd.f32 %v3682, %v4250
        %v4331 = vadd.f32 %v4079, %v4251
        %v4332 = vadd.f32 %v3234, %v4252
        %v4333 = vadd.f32 %v3236, %v4253
        %v4334 = vadd.f32 %v3686, %v4254
        %v4335 = vadd.f32 %v3688, %v4255
        %v4336 = vadd.f32 %v4084, %v4256
        %v4337 = vadd.f32 %v3238, %v4257
        %v4338 = vadd.f32 %v3240, %v4258
        %v4339 = vadd.f32 %v3690, %v4259
        %v4340 = vadd.f32 %v3692, %v4260
        %v4341 = vadd.f32 %v4087, %v4261
        %v4342 = vadd.f32 %v3244, %v4262
        %v4343 = vadd.f32 %v3246, %v4263
        %v4344 = vadd.f32 %v3696, %v4264
        %v4345 = vadd.f32 %v3698, %v4265
        %v4346 = vadd.f32 %v4092, %v4266
        %v4347 = vadd.f32 %v3248, %v4267
        %v4348 = vadd.f32 %v3250, %v4268
        %v4349 = vadd.f32 %v3700, %v4269
        %v4350 = vadd.f32 %v3702, %v4270
        %v4351 = vadd.f32 %v4095, %v4271
        %v4352 = vadd.f32 %v3254, %v4272
        %v4353 = vadd.f32 %v3256, %v4273
        %v4354 = vadd.f32 %v3706, %v4274
        %v4355 = vadd.f32 %v3708, %v4275
        %v4356 = vadd.f32 %v4100, %v4276
        %v4357 = vadd.f32 %v3258, %v4277
        %v4358 = vadd.f32 %v3260, %v4278
        %v4359 = vadd.f32 %v3710, %v4279
        %v4360 = vadd.f32 %v3712, %v4280
        %v4361 = vadd.f32 %v4103, %v4281
        %v4362 = vadd.f32 %v3264, %v4282
        %v4363 = vadd.f32 %v3266, %v4283
        %v4364 = vadd.f32 %v3716, %v4284
        %v4365 = vadd.f32 %v3718, %v4285
        %v4366 = vadd.f32 %v4108, %v4286
        %v4367 = vadd.f32 %v3268, %v4287
        %v4368 = vadd.f32 %v3270, %v4288
        %v4369 = vadd.f32 %v3720, %v4289
        %v4370 = vadd.f32 %v3722, %v4290
        %v4371 = vadd.f32 %v4111, %v4291
        %v4372 = vadd.f32 %v3274, %v4292
        %v4373 = vadd.f32 %v3276, %v4293
        %v4374 = vadd.f32 %v3726, %v4294
        %v4375 = vadd.f32 %v3728, %v4295
        %v4376 = vadd.f32 %v4116, %v4296
        %v4377 = vadd.f32 %v3278, %v4297
        %v4378 = vadd.f32 %v3280, %v4298
        %v4379 = vadd.f32 %v3730, %v4299
        %v4380 = vadd.f32 %v3732, %v4300
        %v4381 = vadd.f32 %v4119, %v4301
        %4382 = vset.pattern.permute.xlu0 1
        %4383 = vperm.xlu0 %4382, %v402
        %v4384 = vpop.permute.xlu0 %4383
        %4386 = vset.pattern.permute.xlu0 1
        %4387 = vperm.xlu0 %4386, %v403
        %v4388 = vpop.permute.xlu0 %4387
        %4390 = vset.pattern.permute.xlu0 1
        %4391 = vperm.xlu0 %4390, %v404
        %v4392 = vpop.permute.xlu0 %4391
        %4394 = vset.pattern.permute.xlu0 1
        %4395 = vperm.xlu0 %4394, %v405
        %v4396 = vpop.permute.xlu0 %4395
        %4398 = vset.pattern.permute.xlu0 1
        %4399 = vperm.xlu0 %4398, %v406
        %v4400 = vpop.permute.xlu0 %4399
        %4402 = vset.pattern.permute.xlu0 1
        %4403 = vperm.xlu0 %4402, %v407
        %v4404 = vpop.permute.xlu0 %4403
        %4406 = vset.pattern.permute.xlu0 1
        %4407 = vperm.xlu0 %4406, %v408
        %v4408 = vpop.permute.xlu0 %4407
        %4410 = vset.pattern.permute.xlu0 1
        %4411 = vperm.xlu0 %4410, %v409
        %v4412 = vpop.permute.xlu0 %4411
        %4414 = vset.pattern.permute.xlu0 1
        %4415 = vperm.xlu0 %4414, %v410
        %v4416 = vpop.permute.xlu0 %4415
        %4418 = vset.pattern.permute.xlu0 1
        %4419 = vperm.xlu0 %4418, %v411
        %v4420 = vpop.permute.xlu0 %4419
        %4422 = vset.pattern.permute.xlu0 1
        %4423 = vperm.xlu0 %4422, %v412
        %v4424 = vpop.permute.xlu0 %4423
        %4426 = vset.pattern.permute.xlu0 1
        %4427 = vperm.xlu0 %4426, %v413
        %v4428 = vpop.permute.xlu0 %4427
        %4430 = vset.pattern.permute.xlu0 1
        %4431 = vperm.xlu0 %4430, %v414
        %v4432 = vpop.permute.xlu0 %4431
        %4434 = vset.pattern.permute.xlu0 1
        %4435 = vperm.xlu0 %4434, %v415
        %v4436 = vpop.permute.xlu0 %4435
        %4438 = vset.pattern.permute.xlu0 1
        %4439 = vperm.xlu0 %4438, %v416
        %v4440 = vpop.permute.xlu0 %4439
        %4442 = vset.pattern.permute.xlu0 1
        %4443 = vperm.xlu0 %4442, %v417
        %v4444 = vpop.permute.xlu0 %4443
        %v4446 = vlaneseq
        %v4447 = vshrl.u32 %v4446, 7
        %v4448 = vsub.s32 1, %v4447
        %v4449 = vrot.slane %v418, %v4448
        %v4450 = vlaneseq
        %v4451 = vshrl.u32 %v4450, 7
        %v4452 = vsub.s32 1, %v4451
        %v4453 = vrot.slane %v419, %v4452
        %v4454 = vlaneseq
        %v4455 = vshrl.u32 %v4454, 7
        %v4456 = vsub.s32 1, %v4455
        %v4457 = vrot.slane %v420, %v4456
        %v4458 = vlaneseq
        %v4459 = vshrl.u32 %v4458, 7
        %v4460 = vsub.s32 1, %v4459
        %v4461 = vrot.slane %v421, %v4460
        %v4462 = vlaneseq
        %v4463 = vshrl.u32 %v4462, 7
        %v4464 = vsub.s32 1, %v4463
        %v4465 = vrot.slane %v422, %v4464
        %v4466 = vmul.f32 %v4384, %v4449
        %v4467 = vmul.f32 %v4384, %v4453
        %v4468 = vmul.f32 %v4384, %v4457
        %v4469 = vmul.f32 %v4384, %v4461
        %v4470 = vmul.f32 %v4384, %v4465
        %v4471 = vmul.f32 %v4388, %v4449
        %v4472 = vmul.f32 %v4388, %v4453
        %v4473 = vmul.f32 %v4388, %v4457
        %v4474 = vmul.f32 %v4388, %v4461
        %v4475 = vmul.f32 %v4388, %v4465
        %v4476 = vmul.f32 %v4392, %v4449
        %v4477 = vmul.f32 %v4392, %v4453
        %v4478 = vmul.f32 %v4392, %v4457
        %v4479 = vmul.f32 %v4392, %v4461
        %v4480 = vmul.f32 %v4392, %v4465
        %v4481 = vmul.f32 %v4396, %v4449
        %v4482 = vmul.f32 %v4396, %v4453
        %v4483 = vmul.f32 %v4396, %v4457
        %v4484 = vmul.f32 %v4396, %v4461
        %v4485 = vmul.f32 %v4396, %v4465
        %v4486 = vmul.f32 %v4400, %v4449
        %v4487 = vmul.f32 %v4400, %v4453
        %v4488 = vmul.f32 %v4400, %v4457
        %v4489 = vmul.f32 %v4400, %v4461
        %v4490 = vmul.f32 %v4400, %v4465
        %v4491 = vmul.f32 %v4404, %v4449
        %v4492 = vmul.f32 %v4404, %v4453
        %v4493 = vmul.f32 %v4404, %v4457
        %v4494 = vmul.f32 %v4404, %v4461
        %v4495 = vmul.f32 %v4404, %v4465
        %v4496 = vmul.f32 %v4408, %v4449
        %v4497 = vmul.f32 %v4408, %v4453
        %v4498 = vmul.f32 %v4408, %v4457
        %v4499 = vmul.f32 %v4408, %v4461
        %v4500 = vmul.f32 %v4408, %v4465
        %v4501 = vmul.f32 %v4412, %v4449
        %v4502 = vmul.f32 %v4412, %v4453
        %v4503 = vmul.f32 %v4412, %v4457
        %v4504 = vmul.f32 %v4412, %v4461
        %v4505 = vmul.f32 %v4412, %v4465
        %v4506 = vmul.f32 %v4416, %v4449
        %v4507 = vmul.f32 %v4416, %v4453
        %v4508 = vmul.f32 %v4416, %v4457
        %v4509 = vmul.f32 %v4416, %v4461
        %v4510 = vmul.f32 %v4416, %v4465
        %v4511 = vmul.f32 %v4420, %v4449
        %v4512 = vmul.f32 %v4420, %v4453
        %v4513 = vmul.f32 %v4420, %v4457
        %v4514 = vmul.f32 %v4420, %v4461
        %v4515 = vmul.f32 %v4420, %v4465
        %v4516 = vmul.f32 %v4424, %v4449
        %v4517 = vmul.f32 %v4424, %v4453
        %v4518 = vmul.f32 %v4424, %v4457
        %v4519 = vmul.f32 %v4424, %v4461
        %v4520 = vmul.f32 %v4424, %v4465
        %v4521 = vmul.f32 %v4428, %v4449
        %v4522 = vmul.f32 %v4428, %v4453
        %v4523 = vmul.f32 %v4428, %v4457
        %v4524 = vmul.f32 %v4428, %v4461
        %v4525 = vmul.f32 %v4428, %v4465
        %v4526 = vmul.f32 %v4432, %v4449
        %v4527 = vmul.f32 %v4432, %v4453
        %v4528 = vmul.f32 %v4432, %v4457
        %v4529 = vmul.f32 %v4432, %v4461
        %v4530 = vmul.f32 %v4432, %v4465
        %v4531 = vmul.f32 %v4436, %v4449
        %v4532 = vmul.f32 %v4436, %v4453
        %v4533 = vmul.f32 %v4436, %v4457
        %v4534 = vmul.f32 %v4436, %v4461
        %v4535 = vmul.f32 %v4436, %v4465
        %v4536 = vmul.f32 %v4440, %v4449
        %v4537 = vmul.f32 %v4440, %v4453
        %v4538 = vmul.f32 %v4440, %v4457
        %v4539 = vmul.f32 %v4440, %v4461
        %v4540 = vmul.f32 %v4440, %v4465
        %v4541 = vmul.f32 %v4444, %v4449
        %v4542 = vmul.f32 %v4444, %v4453
        %v4543 = vmul.f32 %v4444, %v4457
        %v4544 = vmul.f32 %v4444, %v4461
        %v4545 = vmul.f32 %v4444, %v4465
        %v4546 = vadd.f32 %v4302, %v4466
        %v4547 = vadd.f32 %v4303, %v4467
        %v4548 = vadd.f32 %v4304, %v4468
        %v4549 = vadd.f32 %v4305, %v4469
        %v4550 = vadd.f32 %v4306, %v4470
        %v4551 = vadd.f32 %v4307, %v4471
        %v4552 = vadd.f32 %v4308, %v4472
        %v4553 = vadd.f32 %v4309, %v4473
        %v4554 = vadd.f32 %v4310, %v4474
        %v4555 = vadd.f32 %v4311, %v4475
        %v4556 = vadd.f32 %v4312, %v4476
        %v4557 = vadd.f32 %v4313, %v4477
        %v4558 = vadd.f32 %v4314, %v4478
        %v4559 = vadd.f32 %v4315, %v4479
        %v4560 = vadd.f32 %v4316, %v4480
        %v4561 = vadd.f32 %v4317, %v4481
        %v4562 = vadd.f32 %v4318, %v4482
        %v4563 = vadd.f32 %v4319, %v4483
        %v4564 = vadd.f32 %v4320, %v4484
        %v4565 = vadd.f32 %v4321, %v4485
        %v4566 = vadd.f32 %v4322, %v4486
        %v4567 = vadd.f32 %v4323, %v4487
        %v4568 = vadd.f32 %v4324, %v4488
        %v4569 = vadd.f32 %v4325, %v4489
        %v4570 = vadd.f32 %v4326, %v4490
        %v4571 = vadd.f32 %v4327, %v4491
        %v4572 = vadd.f32 %v4328, %v4492
        %v4573 = vadd.f32 %v4329, %v4493
        %v4574 = vadd.f32 %v4330, %v4494
        %v4575 = vadd.f32 %v4331, %v4495
        %v4576 = vadd.f32 %v4332, %v4496
        %v4577 = vadd.f32 %v4333, %v4497
        %v4578 = vadd.f32 %v4334, %v4498
        %v4579 = vadd.f32 %v4335, %v4499
        %v4580 = vadd.f32 %v4336, %v4500
        %v4581 = vadd.f32 %v4337, %v4501
        %v4582 = vadd.f32 %v4338, %v4502
        %v4583 = vadd.f32 %v4339, %v4503
        %v4584 = vadd.f32 %v4340, %v4504
        %v4585 = vadd.f32 %v4341, %v4505
        %v4586 = vadd.f32 %v4342, %v4506
        %v4587 = vadd.f32 %v4343, %v4507
        %v4588 = vadd.f32 %v4344, %v4508
        %v4589 = vadd.f32 %v4345, %v4509
        %v4590 = vadd.f32 %v4346, %v4510
        %v4591 = vadd.f32 %v4347, %v4511
        %v4592 = vadd.f32 %v4348, %v4512
        %v4593 = vadd.f32 %v4349, %v4513
        %v4594 = vadd.f32 %v4350, %v4514
        %v4595 = vadd.f32 %v4351, %v4515
        %v4596 = vadd.f32 %v4352, %v4516
        %v4597 = vadd.f32 %v4353, %v4517
        %v4598 = vadd.f32 %v4354, %v4518
        %v4599 = vadd.f32 %v4355, %v4519
        %v4600 = vadd.f32 %v4356, %v4520
        %v4601 = vadd.f32 %v4357, %v4521
        %v4602 = vadd.f32 %v4358, %v4522
        %v4603 = vadd.f32 %v4359, %v4523
        %v4604 = vadd.f32 %v4360, %v4524
        %v4605 = vadd.f32 %v4361, %v4525
        %v4606 = vadd.f32 %v4362, %v4526
        %v4607 = vadd.f32 %v4363, %v4527
        %v4608 = vadd.f32 %v4364, %v4528
        %v4609 = vadd.f32 %v4365, %v4529
        %v4610 = vadd.f32 %v4366, %v4530
        %v4611 = vadd.f32 %v4367, %v4531
        %v4612 = vadd.f32 %v4368, %v4532
        %v4613 = vadd.f32 %v4369, %v4533
        %v4614 = vadd.f32 %v4370, %v4534
        %v4615 = vadd.f32 %v4371, %v4535
        %v4616 = vadd.f32 %v4372, %v4536
        %v4617 = vadd.f32 %v4373, %v4537
        %v4618 = vadd.f32 %v4374, %v4538
        %v4619 = vadd.f32 %v4375, %v4539
        %v4620 = vadd.f32 %v4376, %v4540
        %v4621 = vadd.f32 %v4377, %v4541
        %v4622 = vadd.f32 %v4378, %v4542
        %v4623 = vadd.f32 %v4379, %v4543
        %v4624 = vadd.f32 %v4380, %v4544
        %v4625 = vadd.f32 %v4381, %v4545
        %v4626 = vmax.f32 %v4546, 0.0
        %v4627 = vmax.f32 %v4547, 0.0
        %v4628 = vmax.f32 %v4548, 0.0
        %v4629 = vmax.f32 %v4549, 0.0
        %v4630 = vmax.f32 %v4550, 0.0
        %v4631 = vmax.f32 %v4551, 0.0
        %v4632 = vmax.f32 %v4552, 0.0
        %v4633 = vmax.f32 %v4553, 0.0
        %v4634 = vmax.f32 %v4554, 0.0
        %v4635 = vmax.f32 %v4555, 0.0
        %v4636 = vmax.f32 %v4556, 0.0
        %v4637 = vmax.f32 %v4557, 0.0
        %v4638 = vmax.f32 %v4558, 0.0
        %v4639 = vmax.f32 %v4559, 0.0
        %v4640 = vmax.f32 %v4560, 0.0
        %v4641 = vmax.f32 %v4561, 0.0
        %v4642 = vmax.f32 %v4562, 0.0
        %v4643 = vmax.f32 %v4563, 0.0
        %v4644 = vmax.f32 %v4564, 0.0
        %v4645 = vmax.f32 %v4565, 0.0
        %v4646 = vmax.f32 %v4566, 0.0
        %v4647 = vmax.f32 %v4567, 0.0
        %v4648 = vmax.f32 %v4568, 0.0
        %v4649 = vmax.f32 %v4569, 0.0
        %v4650 = vmax.f32 %v4570, 0.0
        %v4651 = vmax.f32 %v4571, 0.0
        %v4652 = vmax.f32 %v4572, 0.0
        %v4653 = vmax.f32 %v4573, 0.0
        %v4654 = vmax.f32 %v4574, 0.0
        %v4655 = vmax.f32 %v4575, 0.0
        %v4656 = vmax.f32 %v4576, 0.0
        %v4657 = vmax.f32 %v4577, 0.0
        %v4658 = vmax.f32 %v4578, 0.0
        %v4659 = vmax.f32 %v4579, 0.0
        %v4660 = vmax.f32 %v4580, 0.0
        %v4661 = vmax.f32 %v4581, 0.0
        %v4662 = vmax.f32 %v4582, 0.0
        %v4663 = vmax.f32 %v4583, 0.0
        %v4664 = vmax.f32 %v4584, 0.0
        %v4665 = vmax.f32 %v4585, 0.0
        %v4666 = vmax.f32 %v4586, 0.0
        %v4667 = vmax.f32 %v4587, 0.0
        %v4668 = vmax.f32 %v4588, 0.0
        %v4669 = vmax.f32 %v4589, 0.0
        %v4670 = vmax.f32 %v4590, 0.0
        %v4671 = vmax.f32 %v4591, 0.0
        %v4672 = vmax.f32 %v4592, 0.0
        %v4673 = vmax.f32 %v4593, 0.0
        %v4674 = vmax.f32 %v4594, 0.0
        %v4675 = vmax.f32 %v4595, 0.0
        %v4676 = vmax.f32 %v4596, 0.0
        %v4677 = vmax.f32 %v4597, 0.0
        %v4678 = vmax.f32 %v4598, 0.0
        %v4679 = vmax.f32 %v4599, 0.0
        %v4680 = vmax.f32 %v4600, 0.0
        %v4681 = vmax.f32 %v4601, 0.0
        %v4682 = vmax.f32 %v4602, 0.0
        %v4683 = vmax.f32 %v4603, 0.0
        %v4684 = vmax.f32 %v4604, 0.0
        %v4685 = vmax.f32 %v4605, 0.0
        %v4686 = vmax.f32 %v4606, 0.0
        %v4687 = vmax.f32 %v4607, 0.0
        %v4688 = vmax.f32 %v4608, 0.0
        %v4689 = vmax.f32 %v4609, 0.0
        %v4690 = vmax.f32 %v4610, 0.0
        %v4691 = vmax.f32 %v4611, 0.0
        %v4692 = vmax.f32 %v4612, 0.0
        %v4693 = vmax.f32 %v4613, 0.0
        %v4694 = vmax.f32 %v4614, 0.0
        %v4695 = vmax.f32 %v4615, 0.0
        %v4696 = vmax.f32 %v4616, 0.0
        %v4697 = vmax.f32 %v4617, 0.0
        %v4698 = vmax.f32 %v4618, 0.0
        %v4699 = vmax.f32 %v4619, 0.0
        %v4700 = vmax.f32 %v4620, 0.0
        %v4701 = vmax.f32 %v4621, 0.0
        %v4702 = vmax.f32 %v4622, 0.0
        %v4703 = vmax.f32 %v4623, 0.0
        %v4704 = vmax.f32 %v4624, 0.0
        %v4705 = vmax.f32 %v4625, 0.0
        %v4706 = vlaneseq
        %v4707 = vshrl.u32 %v4706, 7
        %v4708 = vsub.s32 3, %v4707
        %v4709 = vrot.slane %v418, %v4708
        %v4710 = vlaneseq
        %v4711 = vshrl.u32 %v4710, 7
        %v4712 = vsub.s32 3, %v4711
        %v4713 = vrot.slane %v419, %v4712
        %v4714 = vlaneseq
        %v4715 = vshrl.u32 %v4714, 7
        %v4716 = vsub.s32 3, %v4715
        %v4717 = vrot.slane %v420, %v4716
        %v4718 = vlaneseq
        %v4719 = vshrl.u32 %v4718, 7
        %v4720 = vsub.s32 3, %v4719
        %v4721 = vrot.slane %v421, %v4720
        %v4722 = vlaneseq
        %v4723 = vshrl.u32 %v4722, 7
        %v4724 = vsub.s32 3, %v4723
        %v4725 = vrot.slane %v422, %v4724
        %v4726 = vmul.f32 %v4626, %v4709
        %v4727 = vmul.f32 %v4627, %v4713
        %v4728 = vmul.f32 %v4628, %v4717
        %v4729 = vmul.f32 %v4629, %v4721
        %v4730 = vmul.f32 %v4630, %v4725
        %v4731 = vmul.f32 %v4631, %v4709
        %v4732 = vmul.f32 %v4632, %v4713
        %v4733 = vmul.f32 %v4633, %v4717
        %v4734 = vmul.f32 %v4634, %v4721
        %v4735 = vmul.f32 %v4635, %v4725
        %v4736 = vmul.f32 %v4636, %v4709
        %v4737 = vmul.f32 %v4637, %v4713
        %v4738 = vmul.f32 %v4638, %v4717
        %v4739 = vmul.f32 %v4639, %v4721
        %v4740 = vmul.f32 %v4640, %v4725
        %v4741 = vmul.f32 %v4641, %v4709
        %v4742 = vmul.f32 %v4642, %v4713
        %v4743 = vmul.f32 %v4643, %v4717
        %v4744 = vmul.f32 %v4644, %v4721
        %v4745 = vmul.f32 %v4645, %v4725
        %v4746 = vmul.f32 %v4646, %v4709
        %v4747 = vmul.f32 %v4647, %v4713
        %v4748 = vmul.f32 %v4648, %v4717
        %v4749 = vmul.f32 %v4649, %v4721
        %v4750 = vmul.f32 %v4650, %v4725
        %v4751 = vmul.f32 %v4651, %v4709
        %v4752 = vmul.f32 %v4652, %v4713
        %v4753 = vmul.f32 %v4653, %v4717
        %v4754 = vmul.f32 %v4654, %v4721
        %v4755 = vmul.f32 %v4655, %v4725
        %v4756 = vmul.f32 %v4656, %v4709
        %v4757 = vmul.f32 %v4657, %v4713
        %v4758 = vmul.f32 %v4658, %v4717
        %v4759 = vmul.f32 %v4659, %v4721
        %v4760 = vmul.f32 %v4660, %v4725
        %v4761 = vmul.f32 %v4661, %v4709
        %v4762 = vmul.f32 %v4662, %v4713
        %v4763 = vmul.f32 %v4663, %v4717
        %v4764 = vmul.f32 %v4664, %v4721
        %v4765 = vmul.f32 %v4665, %v4725
        %v4766 = vmul.f32 %v4666, %v4709
        %v4767 = vmul.f32 %v4667, %v4713
        %v4768 = vmul.f32 %v4668, %v4717
        %v4769 = vmul.f32 %v4669, %v4721
        %v4770 = vmul.f32 %v4670, %v4725
        %v4771 = vmul.f32 %v4671, %v4709
        %v4772 = vmul.f32 %v4672, %v4713
        %v4773 = vmul.f32 %v4673, %v4717
        %v4774 = vmul.f32 %v4674, %v4721
        %v4775 = vmul.f32 %v4675, %v4725
        %v4776 = vmul.f32 %v4676, %v4709
        %v4777 = vmul.f32 %v4677, %v4713
        %v4778 = vmul.f32 %v4678, %v4717
        %v4779 = vmul.f32 %v4679, %v4721
        %v4780 = vmul.f32 %v4680, %v4725
        %v4781 = vmul.f32 %v4681, %v4709
        %v4782 = vmul.f32 %v4682, %v4713
        %v4783 = vmul.f32 %v4683, %v4717
        %v4784 = vmul.f32 %v4684, %v4721
        %v4785 = vmul.f32 %v4685, %v4725
        %v4786 = vmul.f32 %v4686, %v4709
        %v4787 = vmul.f32 %v4687, %v4713
        %v4788 = vmul.f32 %v4688, %v4717
        %v4789 = vmul.f32 %v4689, %v4721
        %v4790 = vmul.f32 %v4690, %v4725
        %v4791 = vmul.f32 %v4691, %v4709
        %v4792 = vmul.f32 %v4692, %v4713
        %v4793 = vmul.f32 %v4693, %v4717
        %v4794 = vmul.f32 %v4694, %v4721
        %v4795 = vmul.f32 %v4695, %v4725
        %v4796 = vmul.f32 %v4696, %v4709
        %v4797 = vmul.f32 %v4697, %v4713
        %v4798 = vmul.f32 %v4698, %v4717
        %v4799 = vmul.f32 %v4699, %v4721
        %v4800 = vmul.f32 %v4700, %v4725
        %v4801 = vmul.f32 %v4701, %v4709
        %v4802 = vmul.f32 %v4702, %v4713
        %v4803 = vmul.f32 %v4703, %v4717
        %v4804 = vmul.f32 %v4704, %v4721
        %v4805 = vmul.f32 %v4705, %v4725
        %v4806 = vadd.f32 %v4726, %v4727
        %v4807 = vadd.f32 %v4806, %v4728
        %v4808 = vadd.f32 %v4807, %v4729
        %vm4809 = vcmask 719872
        %v4810 = vsel %vm4809, %v4730, 0.0
        %v4811 = vadd.f32 %v4808, %v4810
        %4812 = vadd.xlane.f32.xlu0 %v4811
        %v4813 = vpop.xlane.xlu0 %4812
        %v4814 = vadd.f32 %v4731, %v4732
        %v4815 = vadd.f32 %v4814, %v4733
        %v4816 = vadd.f32 %v4815, %v4734
        %v4817 = vsel %vm4809, %v4735, 0.0
        %v4818 = vadd.f32 %v4816, %v4817
        %4819 = vadd.xlane.f32.xlu0 %v4818
        %v4820 = vpop.xlane.xlu0 %4819
        %v4821 = vadd.f32 %v4736, %v4737
        %v4822 = vadd.f32 %v4821, %v4738
        %v4823 = vadd.f32 %v4822, %v4739
        %v4824 = vsel %vm4809, %v4740, 0.0
        %v4825 = vadd.f32 %v4823, %v4824
        %4826 = vadd.xlane.f32.xlu0 %v4825
        %v4827 = vpop.xlane.xlu0 %4826
        %v4828 = vadd.f32 %v4741, %v4742
        %v4829 = vadd.f32 %v4828, %v4743
        %v4830 = vadd.f32 %v4829, %v4744
        %v4831 = vsel %vm4809, %v4745, 0.0
        %v4832 = vadd.f32 %v4830, %v4831
        %4833 = vadd.xlane.f32.xlu0 %v4832
        %v4834 = vpop.xlane.xlu0 %4833
        %v4835 = vadd.f32 %v4746, %v4747
        %v4836 = vadd.f32 %v4835, %v4748
        %v4837 = vadd.f32 %v4836, %v4749
        %v4838 = vsel %vm4809, %v4750, 0.0
        %v4839 = vadd.f32 %v4837, %v4838
        %4840 = vadd.xlane.f32.xlu0 %v4839
        %v4841 = vpop.xlane.xlu0 %4840
        %v4842 = vadd.f32 %v4751, %v4752
        %v4843 = vadd.f32 %v4842, %v4753
        %v4844 = vadd.f32 %v4843, %v4754
        %v4845 = vsel %vm4809, %v4755, 0.0
        %v4846 = vadd.f32 %v4844, %v4845
        %4847 = vadd.xlane.f32.xlu0 %v4846
        %v4848 = vpop.xlane.xlu0 %4847
        %v4849 = vadd.f32 %v4756, %v4757
        %v4850 = vadd.f32 %v4849, %v4758
        %v4851 = vadd.f32 %v4850, %v4759
        %v4852 = vsel %vm4809, %v4760, 0.0
        %v4853 = vadd.f32 %v4851, %v4852
        %4854 = vadd.xlane.f32.xlu0 %v4853
        %v4855 = vpop.xlane.xlu0 %4854
        %v4856 = vadd.f32 %v4761, %v4762
        %v4857 = vadd.f32 %v4856, %v4763
        %v4858 = vadd.f32 %v4857, %v4764
        %v4859 = vsel %vm4809, %v4765, 0.0
        %v4860 = vadd.f32 %v4858, %v4859
        %4861 = vadd.xlane.f32.xlu0 %v4860
        %v4862 = vpop.xlane.xlu0 %4861
        %v4863 = vadd.f32 %v4766, %v4767
        %v4864 = vadd.f32 %v4863, %v4768
        %v4865 = vadd.f32 %v4864, %v4769
        %v4866 = vsel %vm4809, %v4770, 0.0
        %v4867 = vadd.f32 %v4865, %v4866
        %4868 = vadd.xlane.f32.xlu0 %v4867
        %v4869 = vpop.xlane.xlu0 %4868
        %v4870 = vadd.f32 %v4771, %v4772
        %v4871 = vadd.f32 %v4870, %v4773
        %v4872 = vadd.f32 %v4871, %v4774
        %v4873 = vsel %vm4809, %v4775, 0.0
        %v4874 = vadd.f32 %v4872, %v4873
        %4875 = vadd.xlane.f32.xlu0 %v4874
        %v4876 = vpop.xlane.xlu0 %4875
        %v4877 = vadd.f32 %v4776, %v4777
        %v4878 = vadd.f32 %v4877, %v4778
        %v4879 = vadd.f32 %v4878, %v4779
        %v4880 = vsel %vm4809, %v4780, 0.0
        %v4881 = vadd.f32 %v4879, %v4880
        %4882 = vadd.xlane.f32.xlu0 %v4881
        %v4883 = vpop.xlane.xlu0 %4882
        %v4884 = vadd.f32 %v4781, %v4782
        %v4885 = vadd.f32 %v4884, %v4783
        %v4886 = vadd.f32 %v4885, %v4784
        %v4887 = vsel %vm4809, %v4785, 0.0
        %v4888 = vadd.f32 %v4886, %v4887
        %4889 = vadd.xlane.f32.xlu0 %v4888
        %v4890 = vpop.xlane.xlu0 %4889
        %v4891 = vadd.f32 %v4786, %v4787
        %v4892 = vadd.f32 %v4891, %v4788
        %v4893 = vadd.f32 %v4892, %v4789
        %v4894 = vsel %vm4809, %v4790, 0.0
        %v4895 = vadd.f32 %v4893, %v4894
        %4896 = vadd.xlane.f32.xlu0 %v4895
        %v4897 = vpop.xlane.xlu0 %4896
        %v4898 = vadd.f32 %v4791, %v4792
        %v4899 = vadd.f32 %v4898, %v4793
        %v4900 = vadd.f32 %v4899, %v4794
        %v4901 = vsel %vm4809, %v4795, 0.0
        %v4902 = vadd.f32 %v4900, %v4901
        %4903 = vadd.xlane.f32.xlu0 %v4902
        %v4904 = vpop.xlane.xlu0 %4903
        %v4905 = vadd.f32 %v4796, %v4797
        %v4906 = vadd.f32 %v4905, %v4798
        %v4907 = vadd.f32 %v4906, %v4799
        %v4908 = vsel %vm4809, %v4800, 0.0
        %v4909 = vadd.f32 %v4907, %v4908
        %4910 = vadd.xlane.f32.xlu0 %v4909
        %v4911 = vpop.xlane.xlu0 %4910
        %v4912 = vadd.f32 %v4801, %v4802
        %v4913 = vadd.f32 %v4912, %v4803
        %v4914 = vadd.f32 %v4913, %v4804
        %v4915 = vsel %vm4809, %v4805, 0.0
        %v4916 = vadd.f32 %v4914, %v4915
        %4917 = vadd.xlane.f32.xlu0 %v4916
        %v4918 = vpop.xlane.xlu0 %4917
        %v4919 = vlaneseq
        %v4920 = vshrl.u32 %v4919, 7
        %v4921 = vsub.s32 4, %v4920
        %v4922 = vrot.slane %v418, %v4921
        %v4923 = vadd.f32 %v4813, %v4922
        %v4924 = vadd.f32 %v4820, %v4922
        %v4925 = vadd.f32 %v4827, %v4922
        %v4926 = vadd.f32 %v4834, %v4922
        %v4927 = vadd.f32 %v4841, %v4922
        %v4928 = vadd.f32 %v4848, %v4922
        %v4929 = vadd.f32 %v4855, %v4922
        %v4930 = vadd.f32 %v4862, %v4922
        %v4931 = vadd.f32 %v4869, %v4922
        %v4932 = vadd.f32 %v4876, %v4922
        %v4933 = vadd.f32 %v4883, %v4922
        %v4934 = vadd.f32 %v4890, %v4922
        %v4935 = vadd.f32 %v4897, %v4922
        %v4936 = vadd.f32 %v4904, %v4922
        %v4937 = vadd.f32 %v4911, %v4922
        %v4938 = vadd.f32 %v4918, %v4922
        %vm4939 = vcmask 7168
        %4940 = vst.msk [vmem:[%s384] sm:$0xff] %vm4939, %v4923
        %4941 = vst.msk [vmem:[%s384 + $0x8] sm:$0xff] %vm4939, %v4924
        %4942 = vst.msk [vmem:[%s384 + $0x10] sm:$0xff] %vm4939, %v4925
        %4943 = vst.msk [vmem:[%s384 + $0x18] sm:$0xff] %vm4939, %v4926
        %4944 = vst.msk [vmem:[%s384 + $0x20] sm:$0xff] %vm4939, %v4927
        %4945 = vst.msk [vmem:[%s384 + $0x28] sm:$0xff] %vm4939, %v4928
        %4946 = vst.msk [vmem:[%s384 + $0x30] sm:$0xff] %vm4939, %v4929
        %4947 = vst.msk [vmem:[%s384 + $0x38] sm:$0xff] %vm4939, %v4930
        %4948 = vst.msk [vmem:[%s384 + $0x40] sm:$0xff] %vm4939, %v4931
        %4949 = vst.msk [vmem:[%s384 + $0x48] sm:$0xff] %vm4939, %v4932
        %4950 = vst.msk [vmem:[%s384 + $0x50] sm:$0xff] %vm4939, %v4933
        %4951 = vst.msk [vmem:[%s384 + $0x58] sm:$0xff] %vm4939, %v4934
        %4952 = vst.msk [vmem:[%s384 + $0x60] sm:$0xff] %vm4939, %v4935
        %4953 = vst.msk [vmem:[%s384 + $0x68] sm:$0xff] %vm4939, %v4936
        %4954 = vst.msk [vmem:[%s384 + $0x70] sm:$0xff] %vm4939, %v4937
        %4955 = vst.msk [vmem:[%s384 + $0x78] sm:$0xff] %vm4939, %v4938
        %p4956 = scmp.lt.s32.totalorder %s26, 1
        %s4957 = scalar_select %p4956, %s26, 1
        %s4958 = smul.addr %s4957, 16
        %s4959 = smul.addr %s4958, 8
        %s4960 = scalar_lea.vmem %s6, %s4959
        // Predicated region
        $region61: #{critic_forward.1} parent=43 // pred_check
          %p4961 = pneg %p190
        $region62: #{critic_forward.1} parent=43 // pred_check_branch
          %4963 = sbr.rel (%p4961) target = $region64
        $region63: #{critic_forward.1} parent=43 // pred_region
          _
        $region64: #{critic_forward.1} parent=43 // pred_fallthru
          _
      $region44: #{critic_forward.1} parent=5 // pred_fallthru
        _
      %p4964 = scmp.le.s32.totalorder 2, %s21
      // Predicated region
      $region65: #{critic_forward.1} parent=5 // pred_check
        %p4965 = pneg %p4964
      $region66: #{critic_forward.1} parent=5 // pred_check_branch
        %4967 = sbr.rel (%p4965) target = $region68
      $region67: #{critic_forward.1} parent=5 // pred_region
        %s4968 = ssub.s32 %s21, 2
        // Predicated region
        $region69: #{critic_forward.1} parent=67 // pred_check
          %p4969 = pneg %p196
        $region70: #{critic_forward.1} parent=67 // pred_check_branch
          %4971 = sbr.rel (%p4969) target = $region72
        $region71: #{critic_forward.1} parent=67 // pred_region
          %p4972 = scmp.lt.s32.totalorder %s27, 1
          %s4973 = scalar_select %p4972, %s27, 1
          %s4974 = smul.addr %s4973, 16
          %s4975 = smul.addr %s4974, 8
          %s4976 = scalar_lea.vmem %s6, %s4975
        $region72: #{critic_forward.1} parent=67 // pred_fallthru
          _
      $region68: #{critic_forward.1} parent=5 // pred_fallthru
        _
    $region6: #{critic_forward.1} parent=1 // loop_footer
      %s25 = sadd.s32 1, %s21
    $region7: #{critic_forward.1} parent=1 // loop_footer_branch
      %20 = sbr.rel target = $region3
    $region8: #{critic_forward.1} parent=1 // loop_exit
      _
    %4977 = vsyncpa [#allocation3], 1
    %s4978 = scalar_lea.sflag [#allocation3], 1
    %4979 = vsyncpa %s4978, 1
    %4980 = vsyncpa [#allocation5], 1
    %s4981 = scalar_lea.sflag [#allocation5], 1
    %4982 = vsyncpa %s4981, 1
    %4983 = vsyncpa [#allocation8], 1
    %s4984 = scalar_lea.sflag [#allocation8], 1
    %4985 = vsyncpa %s4984, 1

</llo_original>
